<compile_context>
chip_gen: v5e
topology: v5e:2x2
jax: 0.10.0
libtpu: 0.0.40
codegen_flags: <defaults>
</compile_context>

<pallas_src>
import math
import random
import functools

import numpy as np
import jax
import jax.numpy as jnp
from jax.experimental import pallas as pl
from jax.experimental.pallas import tpu as pltpu


# ------------------------- trace-time parameter setup (plain numpy glue) -------------------------
def disk_kernel(kernel_size: float) -> np.ndarray:
    """Replicates LensBlur.__disk_kernel exactly (float32, normalized)."""
    kernel_dim = int(math.ceil(kernel_size) * 2 + 1)
    fraction = kernel_size % 1
    center = kernel_dim // 2
    ii, jj = np.meshgrid(np.arange(kernel_dim), np.arange(kernel_dim), indexing="ij")
    radius = center - 1 if fraction != 0 else center
    kernel = (((ii - center) ** 2 + (jj - center) ** 2) <= radius ** 2).astype(np.float32)
    if fraction != 0:
        radius2 = center
        kernel2 = (((ii - center) ** 2 + (jj - center) ** 2) <= radius2 ** 2).astype(np.float32)
        kernel = np.clip(kernel + kernel2 * np.float32(fraction), 0.0, 1.0)
    kernel = kernel / kernel.sum()
    return kernel.astype(np.float32)


def _build_taps(w_np: np.ndarray):
    """Static tap list: (dj, ((di, weight), ...)) with lane shift dj outermost, zero taps skipped."""
    kd = w_np.shape[0]
    taps = []
    for dj in range(kd):
        col = tuple((di, float(w_np[di, dj])) for di in range(kd) if w_np[di, dj] != 0.0)
        if col:
            taps.append((dj, col))
    return tuple(taps)


def _round_up(a: int, b: int) -> int:
    return (a + b - 1) // b * b


def _sublane_tile(itemsize: int) -> int:
    return {4: 8, 2: 16, 1: 32}.get(int(itemsize), 8)


def _vmem_capacity_bytes() -> int:
    try:
        cap = int(getattr(pltpu.get_tpu_info(), "vmem_capacity_bytes"))
        if cap > 0:
            return cap
    except Exception:
        pass
    return 64 << 20  # conservative fallback = v7x per-TensorCore VMEM


# --------------------------------------- Pallas kernel -------------------------------------------
def _lens_blur_kernel(x_ref, o_ref, xp_ref, col_ref, *, taps, pad, H, W, lane_off, n_acc):
    # x_ref  : (CB, H, W)                    unpadded channel block (auto-pipelined VMEM)
    # o_ref  : (CB, H, W)                    output channel block
    # xp_ref : (CB, Hp, lane_off + W + pad)  reflect-padded slab; image interior starts at lane
    #                                        `lane_off` (=128) so the interior store is lane-aligned
    # col_ref: (CB, Hp, W)                   dj-shifted, lane-aligned column-slab scratch
    CB = x_ref.shape[0]
    x = x_ref[...].astype(jnp.float32)

    # ---- fused reflect padding, built as wide values -> 3 lane-contiguous stores ----
    top = [x[:, k:k + 1, :] for k in range(pad, 0, -1)]
    bot = [x[:, H - 1 - k:H - k, :] for k in range(1, pad + 1)]
    x_rows = jnp.concatenate(top + [x] + bot, axis=1)            # (CB, Hp, W), rows reflect-padded
    xp_ref[:, :, lane_off:lane_off + W] = x_rows                 # lane-aligned interior store
    left = jnp.concatenate([x_rows[:, :, k:k + 1] for k in range(pad, 0, -1)], axis=2)
    right = jnp.concatenate([x_rows[:, :, W - 1 - k:W - k] for k in range(1, pad + 1)], axis=2)
    xp_ref[:, :, lane_off - pad:lane_off] = left                 # left reflect border (pad lanes)
    xp_ref[:, :, lane_off + W:lane_off + W + pad] = right        # right reflect border (pad lanes)

    # ---- cross-correlation (matches F.conv2d); weights baked as constants, zero taps skipped ----
    # dj (lane) shift hoisted: one misaligned slab copy per kernel column into col_ref; the inner
    # di taps are lane-aligned sublane-offset loads. Round-robin partial accumulators break the
    # serial vadd chain.
    accs = [jnp.zeros((CB, H, W), jnp.float32) for _ in range(n_acc)]
    t = 0
    for dj, col_taps in taps:
        src = lane_off - pad + dj
        col_ref[...] = xp_ref[:, :, src:src + W]
        for di, w in col_taps:
            accs[t % n_acc] = accs[t % n_acc] + w * col_ref[:, di:di + H, :]
            t += 1
    acc = accs[0]
    for a in accs[1:]:
        acc = acc + a
    o_ref[...] = acc.astype(o_ref.dtype)


def lens_blur(x: jax.Array, kernel_size: float) -> jax.Array:
    """Equivalent of LensBlur.__lens_blur(x, kernel_size) for a CHW image."""
    if kernel_size == 0:
        return x
    w_np = disk_kernel(kernel_size)
    kd = int(w_np.shape[0])
    pad = kd // 2
    C, H, W = x.shape
    assert pad <= H - 1 and pad <= W - 1, "reflect padding requires pad <= H-1 and pad <= W-1"
    Hp = H + 2 * pad
    lane_off = _round_up(pad, 128)             # image interior starts at a multiple of 128 lanes
    Wp_scratch = lane_off + W + pad
    taps = _build_taps(w_np)
    n_taps = sum(len(ct) for _, ct in taps)
    n_acc = max(1, min(4, n_taps))

    # ---- VMEM footprint with real (sublane x 128-lane) layout padding ----
    itemsize = int(np.dtype(x.dtype).itemsize)
    sub = _sublane_tile(itemsize)
    w_pad = _round_up(W, 128)
    io_bytes = 2 * 2 * _round_up(H, sub) * w_pad * itemsize          # in + out, double-buffered
    xp_bytes = _round_up(Hp, 8) * _round_up(Wp_scratch, 128) * 4     # padded slab scratch (f32)
    col_bytes = _round_up(Hp, 8) * w_pad * 4                         # column slab scratch (f32)
    tmp_bytes = (n_acc + 1) * _round_up(H, 8) * w_pad * 4            # f32 partial accs + x copy
    per_chan = io_bytes + xp_bytes + col_bytes + tmp_bytes

    # Channels-per-block: largest divisor of C that fits the per-step budget, while keeping the
    # grid >= 2 steps (C >= 2) so both v7x TensorCores get a block under "parallel" semantics.
    cap = _vmem_capacity_bytes()
    budget = min(24 << 20, cap // 5)    # ~24 MiB on v5e/v6e (128 MiB VMEM), ~12 MiB on v7x (64 MiB)
    CB = 1
    for d in range(1, C + 1):
        if C % d == 0 and (C // d >= 2 or C < 2) and d * per_chan <= budget:
            CB = d
    assert C % CB == 0  # grid covers all channels exactly
    # TODO(synk): spatial (row) tiling with a pad-row halo (memory_space=pl.ANY + manual
    # pltpu.make_async_copy of overlapping row windows) for channels whose padded footprint alone
    # exceeds `budget` (multi-MP images on v7x's 64 MiB VMEM).

    need = CB * per_chan
    vmem_limit = int(min(int(0.85 * cap), max(32 << 20, 2 * need)))  # never exceed physical VMEM

    kern = functools.partial(_lens_blur_kernel, taps=taps, pad=pad, H=H, W=W,
                             lane_off=lane_off, n_acc=n_acc)
    return pl.pallas_call(
        kern,
        out_shape=jax.ShapeDtypeStruct((C, H, W), x.dtype),
        grid=(C // CB,),
        in_specs=[pl.BlockSpec((CB, H, W), lambda c: (c, 0, 0))],
        out_specs=pl.BlockSpec((CB, H, W), lambda c: (c, 0, 0)),
        scratch_shapes=[pltpu.VMEM((CB, Hp, Wp_scratch), jnp.float32),
                        pltpu.VMEM((CB, Hp, W), jnp.float32)],
        compiler_params=pltpu.CompilerParams(
            dimension_semantics=("parallel",),      # channel blocks are independent
            vmem_limit_bytes=vmem_limit,
        ),
    )(x)


# --------------------------------------- pure-JAX reference --------------------------------------
def lens_blur_ref(x: jax.Array, kernel_size: float) -> jax.Array:
    if kernel_size == 0:
        return x
    w_np = disk_kernel(kernel_size)
    kd = int(w_np.shape[0])
    pad = kd // 2
    C, H, W = x.shape
    xp = jnp.pad(x, ((0, 0), (pad, pad), (pad, pad)), mode="reflect").astype(jnp.float32)
    out = jnp.zeros((C, H, W), jnp.float32)
    for dj, col_taps in _build_taps(w_np):
        for di, w in col_taps:
            out = out + w * xp[:, di:di + H, dj:dj + W]
    return out.astype(x.dtype)


if __name__ == "__main__":
    # Deterministic "random" kernel size, mimicking forward()'s random.uniform(*kernel_range).
    random.seed(0)
    kernel_size = random.uniform(0, 5)   # fixed by the seed; exercises the fractional-radius path

    # Small CHW image (the module's forward expects a single channels-first image tensor).
    C, H, W = 4, 16, 16
    x = jax.random.normal(jax.random.PRNGKey(0), (C, H, W), dtype=jnp.float32)

    out = jax.block_until_ready(lens_blur(x, kernel_size))
    ref = lens_blur_ref(x, kernel_size)

    assert out.shape == (C, H, W) and out.dtype == x.dtype
    np.testing.assert_allclose(np.asarray(out), np.asarray(ref), rtol=1e-5, atol=1e-5)

    print("KERNEL_OK")
</pallas_src>

<mosaic_0001>
module attributes {stable_mosaic.version = 11 : i64} {
  func.func @_lens_blur_kernel(%arg0: i32, %arg1: memref<2x16x16xf32, #tpu.memory_space<vmem>>, %arg2: memref<2x16x16xf32, #tpu.memory_space<vmem>>, %arg3: memref<2x26x149xf32, #tpu.memory_space<vmem>>, %arg4: memref<2x26x16xf32, #tpu.memory_space<vmem>>) attributes {dimension_semantics = [#tpu.dimension_semantics<parallel>], iteration_bounds = array<i64: 2>, scalar_prefetch = 0 : i64, scratch_operands = 2 : i64, tpu.core_type = #tpu.core_type<tc>, window_params = [{transform_indices = @transform_0, window_bounds = array<i64: 2, 16, 16>}, {transform_indices = @transform_1, window_bounds = array<i64: 2, 16, 16>}]} {
    %c0 = arith.constant 0 : index
    %c0_0 = arith.constant 0 : index
    %c0_1 = arith.constant 0 : index
    %0 = vector.load %arg1[%c0, %c0_0, %c0_1] : memref<2x16x16xf32, #tpu.memory_space<vmem>>, vector<2x16x16xf32>
    %1 = vector.extract_strided_slice %0 {offsets = [0, 5, 0], sizes = [2, 1, 16], strides = [1, 1, 1]} : vector<2x16x16xf32> to vector<2x1x16xf32>
    %2 = vector.extract_strided_slice %0 {offsets = [0, 4, 0], sizes = [2, 1, 16], strides = [1, 1, 1]} : vector<2x16x16xf32> to vector<2x1x16xf32>
    %3 = vector.extract_strided_slice %0 {offsets = [0, 3, 0], sizes = [2, 1, 16], strides = [1, 1, 1]} : vector<2x16x16xf32> to vector<2x1x16xf32>
    %4 = vector.extract_strided_slice %0 {offsets = [0, 2, 0], sizes = [2, 1, 16], strides = [1, 1, 1]} : vector<2x16x16xf32> to vector<2x1x16xf32>
    %5 = vector.extract_strided_slice %0 {offsets = [0, 1, 0], sizes = [2, 1, 16], strides = [1, 1, 1]} : vector<2x16x16xf32> to vector<2x1x16xf32>
    %6 = vector.extract_strided_slice %0 {offsets = [0, 14, 0], sizes = [2, 1, 16], strides = [1, 1, 1]} : vector<2x16x16xf32> to vector<2x1x16xf32>
    %7 = vector.extract_strided_slice %0 {offsets = [0, 13, 0], sizes = [2, 1, 16], strides = [1, 1, 1]} : vector<2x16x16xf32> to vector<2x1x16xf32>
    %8 = vector.extract_strided_slice %0 {offsets = [0, 12, 0], sizes = [2, 1, 16], strides = [1, 1, 1]} : vector<2x16x16xf32> to vector<2x1x16xf32>
    %9 = vector.extract_strided_slice %0 {offsets = [0, 11, 0], sizes = [2, 1, 16], strides = [1, 1, 1]} : vector<2x16x16xf32> to vector<2x1x16xf32>
    %10 = vector.extract_strided_slice %0 {offsets = [0, 10, 0], sizes = [2, 1, 16], strides = [1, 1, 1]} : vector<2x16x16xf32> to vector<2x1x16xf32>
    %11 = tpu.concatenate %1, %2, %3, %4, %5, %0, %6, %7, %8, %9, %10 in 1 : vector<2x1x16xf32>, vector<2x1x16xf32>, vector<2x1x16xf32>, vector<2x1x16xf32>, vector<2x1x16xf32>, vector<2x16x16xf32>, vector<2x1x16xf32>, vector<2x1x16xf32>, vector<2x1x16xf32>, vector<2x1x16xf32>, vector<2x1x16xf32> -> vector<2x26x16xf32>
    %c0_2 = arith.constant 0 : index
    %c0_3 = arith.constant 0 : index
    %c128 = arith.constant 128 : index
    %12 = vector.load %arg3[%c0_2, %c0_3, %c128] : memref<2x26x149xf32, #tpu.memory_space<vmem>>, vector<2x26x16xf32>
    tpu.vector_store %arg3[%c0_2, %c0_3, %c128], %11 {strides = array<i32>} : memref<2x26x149xf32, #tpu.memory_space<vmem>>, vector<2x26x16xf32>,
    %13 = vector.extract_strided_slice %11 {offsets = [0, 0, 5], sizes = [2, 26, 1], strides = [1, 1, 1]} : vector<2x26x16xf32> to vector<2x26x1xf32>
    %14 = vector.extract_strided_slice %11 {offsets = [0, 0, 4], sizes = [2, 26, 1], strides = [1, 1, 1]} : vector<2x26x16xf32> to vector<2x26x1xf32>
    %15 = vector.extract_strided_slice %11 {offsets = [0, 0, 3], sizes = [2, 26, 1], strides = [1, 1, 1]} : vector<2x26x16xf32> to vector<2x26x1xf32>
    %16 = vector.extract_strided_slice %11 {offsets = [0, 0, 2], sizes = [2, 26, 1], strides = [1, 1, 1]} : vector<2x26x16xf32> to vector<2x26x1xf32>
    %17 = vector.extract_strided_slice %11 {offsets = [0, 0, 1], sizes = [2, 26, 1], strides = [1, 1, 1]} : vector<2x26x16xf32> to vector<2x26x1xf32>
    %18 = tpu.concatenate %13, %14, %15, %16, %17 in 2 : vector<2x26x1xf32>, vector<2x26x1xf32>, vector<2x26x1xf32>, vector<2x26x1xf32>, vector<2x26x1xf32> -> vector<2x26x5xf32>
    %19 = vector.extract_strided_slice %11 {offsets = [0, 0, 14], sizes = [2, 26, 1], strides = [1, 1, 1]} : vector<2x26x16xf32> to vector<2x26x1xf32>
    %20 = vector.extract_strided_slice %11 {offsets = [0, 0, 13], sizes = [2, 26, 1], strides = [1, 1, 1]} : vector<2x26x16xf32> to vector<2x26x1xf32>
    %21 = vector.extract_strided_slice %11 {offsets = [0, 0, 12], sizes = [2, 26, 1], strides = [1, 1, 1]} : vector<2x26x16xf32> to vector<2x26x1xf32>
    %22 = vector.extract_strided_slice %11 {offsets = [0, 0, 11], sizes = [2, 26, 1], strides = [1, 1, 1]} : vector<2x26x16xf32> to vector<2x26x1xf32>
    %23 = vector.extract_strided_slice %11 {offsets = [0, 0, 10], sizes = [2, 26, 1], strides = [1, 1, 1]} : vector<2x26x16xf32> to vector<2x26x1xf32>
    %24 = tpu.concatenate %19, %20, %21, %22, %23 in 2 : vector<2x26x1xf32>, vector<2x26x1xf32>, vector<2x26x1xf32>, vector<2x26x1xf32>, vector<2x26x1xf32> -> vector<2x26x5xf32>
    %c0_4 = arith.constant 0 : index
    %c0_5 = arith.constant 0 : index
    %c123 = arith.constant 123 : index
    %25 = vector.load %arg3[%c0_4, %c0_5, %c123] : memref<2x26x149xf32, #tpu.memory_space<vmem>>, vector<2x26x5xf32>
    tpu.vector_store %arg3[%c0_4, %c0_5, %c123], %18 {strides = array<i32>} : memref<2x26x149xf32, #tpu.memory_space<vmem>>, vector<2x26x5xf32>,
    %c0_6 = arith.constant 0 : index
    %c0_7 = arith.constant 0 : index
    %c144 = arith.constant 144 : index
    %26 = vector.load %arg3[%c0_6, %c0_7, %c144] : memref<2x26x149xf32, #tpu.memory_space<vmem>>, vector<2x26x5xf32>
    tpu.vector_store %arg3[%c0_6, %c0_7, %c144], %24 {strides = array<i32>} : memref<2x26x149xf32, #tpu.memory_space<vmem>>, vector<2x26x5xf32>,
    %cst = arith.constant 0.000000e+00 : f32
    %27 = vector.broadcast %cst : f32 to vector<2x16x16xf32>
    %cst_8 = arith.constant 0.000000e+00 : f32
    %28 = vector.broadcast %cst_8 : f32 to vector<2x16x16xf32>
    %cst_9 = arith.constant 0.000000e+00 : f32
    %29 = vector.broadcast %cst_9 : f32 to vector<2x16x16xf32>
    %cst_10 = arith.constant 0.000000e+00 : f32
    %30 = vector.broadcast %cst_10 : f32 to vector<2x16x16xf32>
    %c0_11 = arith.constant 0 : index
    %c0_12 = arith.constant 0 : index
    %c123_13 = arith.constant 123 : index
    %31 = vector.load %arg3[%c0_11, %c0_12, %c123_13] : memref<2x26x149xf32, #tpu.memory_space<vmem>>, vector<2x26x16xf32>
    %c0_14 = arith.constant 0 : index
    %c0_15 = arith.constant 0 : index
    %c0_16 = arith.constant 0 : index
    %32 = vector.load %arg4[%c0_14, %c0_15, %c0_16] : memref<2x26x16xf32, #tpu.memory_space<vmem>>, vector<2x26x16xf32>
    tpu.vector_store %arg4[%c0_14, %c0_15, %c0_16], %31 {strides = array<i32>} : memref<2x26x16xf32, #tpu.memory_space<vmem>>, vector<2x26x16xf32>,
    %c0_17 = arith.constant 0 : index
    %c5 = arith.constant 5 : index
    %c0_18 = arith.constant 0 : index
    %33 = vector.load %arg4[%c0_17, %c5, %c0_18] : memref<2x26x16xf32, #tpu.memory_space<vmem>>, vector<2x16x16xf32>
    %cst_19 = arith.constant 0.00395863783 : f32
    %34 = vector.broadcast %cst_19 : f32 to vector<2x16x16xf32>
    %35 = arith.mulf %34, %33 : vector<2x16x16xf32>
    %36 = arith.addf %27, %35 : vector<2x16x16xf32>
    %c0_20 = arith.constant 0 : index
    %c0_21 = arith.constant 0 : index
    %c124 = arith.constant 124 : index
    %37 = vector.load %arg3[%c0_20, %c0_21, %c124] : memref<2x26x149xf32, #tpu.memory_space<vmem>>, vector<2x26x16xf32>
    %c0_22 = arith.constant 0 : index
    %c0_23 = arith.constant 0 : index
    %c0_24 = arith.constant 0 : index
    %38 = vector.load %arg4[%c0_22, %c0_23, %c0_24] : memref<2x26x16xf32, #tpu.memory_space<vmem>>, vector<2x26x16xf32>
    tpu.vector_store %arg4[%c0_22, %c0_23, %c0_24], %37 {strides = array<i32>} : memref<2x26x16xf32, #tpu.memory_space<vmem>>, vector<2x26x16xf32>,
    %c0_25 = arith.constant 0 : index
    %c2 = arith.constant 2 : index
    %c0_26 = arith.constant 0 : index
    %39 = vector.load %arg4[%c0_25, %c2, %c0_26] : memref<2x26x16xf32, #tpu.memory_space<vmem>>, vector<2x16x16xf32>
    %cst_27 = arith.constant 0.00395863783 : f32
    %40 = vector.broadcast %cst_27 : f32 to vector<2x16x16xf32>
    %41 = arith.mulf %40, %39 : vector<2x16x16xf32>
    %42 = arith.addf %28, %41 : vector<2x16x16xf32>
    %c0_28 = arith.constant 0 : index
    %c3 = arith.constant 3 : index
    %c0_29 = arith.constant 0 : index
    %43 = vector.load %arg4[%c0_28, %c3, %c0_29] : memref<2x26x16xf32, #tpu.memory_space<vmem>>, vector<2x16x16xf32>
    %cst_30 = arith.constant 0.00395863783 : f32
    %44 = vector.broadcast %cst_30 : f32 to vector<2x16x16xf32>
    %45 = arith.mulf %44, %43 : vector<2x16x16xf32>
    %46 = arith.addf %29, %45 : vector<2x16x16xf32>
    %c0_31 = arith.constant 0 : index
    %c4 = arith.constant 4 : index
    %c0_32 = arith.constant 0 : index
    %47 = vector.load %arg4[%c0_31, %c4, %c0_32] : memref<2x26x16xf32, #tpu.memory_space<vmem>>, vector<2x16x16xf32>
    %cst_33 = arith.constant 0.00395863783 : f32
    %48 = vector.broadcast %cst_33 : f32 to vector<2x16x16xf32>
    %49 = arith.mulf %48, %47 : vector<2x16x16xf32>
    %50 = arith.addf %30, %49 : vector<2x16x16xf32>
    %c0_34 = arith.constant 0 : index
    %c5_35 = arith.constant 5 : index
    %c0_36 = arith.constant 0 : index
    %51 = vector.load %arg4[%c0_34, %c5_35, %c0_36] : memref<2x26x16xf32, #tpu.memory_space<vmem>>, vector<2x16x16xf32>
    %cst_37 = arith.constant 0.0178229306 : f32
    %52 = vector.broadcast %cst_37 : f32 to vector<2x16x16xf32>
    %53 = arith.mulf %52, %51 : vector<2x16x16xf32>
    %54 = arith.addf %36, %53 : vector<2x16x16xf32>
    %c0_38 = arith.constant 0 : index
    %c6 = arith.constant 6 : index
    %c0_39 = arith.constant 0 : index
    %55 = vector.load %arg4[%c0_38, %c6, %c0_39] : memref<2x26x16xf32, #tpu.memory_space<vmem>>, vector<2x16x16xf32>
    %cst_40 = arith.constant 0.00395863783 : f32
    %56 = vector.broadcast %cst_40 : f32 to vector<2x16x16xf32>
    %57 = arith.mulf %56, %55 : vector<2x16x16xf32>
    %58 = arith.addf %42, %57 : vector<2x16x16xf32>
    %c0_41 = arith.constant 0 : index
    %c7 = arith.constant 7 : index
    %c0_42 = arith.constant 0 : index
    %59 = vector.load %arg4[%c0_41, %c7, %c0_42] : memref<2x26x16xf32, #tpu.memory_space<vmem>>, vector<2x16x16xf32>
    %cst_43 = arith.constant 0.00395863783 : f32
    %60 = vector.broadcast %cst_43 : f32 to vector<2x16x16xf32>
    %61 = arith.mulf %60, %59 : vector<2x16x16xf32>
    %62 = arith.addf %46, %61 : vector<2x16x16xf32>
    %c0_44 = arith.constant 0 : index
    %c8 = arith.constant 8 : index
    %c0_45 = arith.constant 0 : index
    %63 = vector.load %arg4[%c0_44, %c8, %c0_45] : memref<2x26x16xf32, #tpu.memory_space<vmem>>, vector<2x16x16xf32>
    %cst_46 = arith.constant 0.00395863783 : f32
    %64 = vector.broadcast %cst_46 : f32 to vector<2x16x16xf32>
    %65 = arith.mulf %64, %63 : vector<2x16x16xf32>
    %66 = arith.addf %50, %65 : vector<2x16x16xf32>
    %c0_47 = arith.constant 0 : index
    %c0_48 = arith.constant 0 : index
    %c125 = arith.constant 125 : index
    %67 = vector.load %arg3[%c0_47, %c0_48, %c125] : memref<2x26x149xf32, #tpu.memory_space<vmem>>, vector<2x26x16xf32>
    %c0_49 = arith.constant 0 : index
    %c0_50 = arith.constant 0 : index
    %c0_51 = arith.constant 0 : index
    %68 = vector.load %arg4[%c0_49, %c0_50, %c0_51] : memref<2x26x16xf32, #tpu.memory_space<vmem>>, vector<2x26x16xf32>
    tpu.vector_store %arg4[%c0_49, %c0_50, %c0_51], %67 {strides = array<i32>} : memref<2x26x16xf32, #tpu.memory_space<vmem>>, vector<2x26x16xf32>,
    %c0_52 = arith.constant 0 : index
    %c1 = arith.constant 1 : index
    %c0_53 = arith.constant 0 : index
    %69 = vector.load %arg4[%c0_52, %c1, %c0_53] : memref<2x26x16xf32, #tpu.memory_space<vmem>>, vector<2x16x16xf32>
    %cst_54 = arith.constant 0.00395863783 : f32
    %70 = vector.broadcast %cst_54 : f32 to vector<2x16x16xf32>
    %71 = arith.mulf %70, %69 : vector<2x16x16xf32>
    %72 = arith.addf %54, %71 : vector<2x16x16xf32>
    %c0_55 = arith.constant 0 : index
    %c2_56 = arith.constant 2 : index
    %c0_57 = arith.constant 0 : index
    %73 = vector.load %arg4[%c0_55, %c2_56, %c0_57] : memref<2x26x16xf32, #tpu.memory_space<vmem>>, vector<2x16x16xf32>
    %cst_58 = arith.constant 0.00395863783 : f32
    %74 = vector.broadcast %cst_58 : f32 to vector<2x16x16xf32>
    %75 = arith.mulf %74, %73 : vector<2x16x16xf32>
    %76 = arith.addf %58, %75 : vector<2x16x16xf32>
    %c0_59 = arith.constant 0 : index
    %c3_60 = arith.constant 3 : index
    %c0_61 = arith.constant 0 : index
    %77 = vector.load %arg4[%c0_59, %c3_60, %c0_61] : memref<2x26x16xf32, #tpu.memory_space<vmem>>, vector<2x16x16xf32>
    %cst_62 = arith.constant 0.0178229306 : f32
    %78 = vector.broadcast %cst_62 : f32 to vector<2x16x16xf32>
    %79 = arith.mulf %78, %77 : vector<2x16x16xf32>
    %80 = arith.addf %62, %79 : vector<2x16x16xf32>
    %c0_63 = arith.constant 0 : index
    %c4_64 = arith.constant 4 : index
    %c0_65 = arith.constant 0 : index
    %81 = vector.load %arg4[%c0_63, %c4_64, %c0_65] : memref<2x26x16xf32, #tpu.memory_space<vmem>>, vector<2x16x16xf32>
    %cst_66 = arith.constant 0.0178229306 : f32
    %82 = vector.broadcast %cst_66 : f32 to vector<2x16x16xf32>
    %83 = arith.mulf %82, %81 : vector<2x16x16xf32>
    %84 = arith.addf %66, %83 : vector<2x16x16xf32>
    %c0_67 = arith.constant 0 : index
    %c5_68 = arith.constant 5 : index
    %c0_69 = arith.constant 0 : index
    %85 = vector.load %arg4[%c0_67, %c5_68, %c0_69] : memref<2x26x16xf32, #tpu.memory_space<vmem>>, vector<2x16x16xf32>
    %cst_70 = arith.constant 0.0178229306 : f32
    %86 = vector.broadcast %cst_70 : f32 to vector<2x16x16xf32>
    %87 = arith.mulf %86, %85 : vector<2x16x16xf32>
    %88 = arith.addf %72, %87 : vector<2x16x16xf32>
    %c0_71 = arith.constant 0 : index
    %c6_72 = arith.constant 6 : index
    %c0_73 = arith.constant 0 : index
    %89 = vector.load %arg4[%c0_71, %c6_72, %c0_73] : memref<2x26x16xf32, #tpu.memory_space<vmem>>, vector<2x16x16xf32>
    %cst_74 = arith.constant 0.0178229306 : f32
    %90 = vector.broadcast %cst_74 : f32 to vector<2x16x16xf32>
    %91 = arith.mulf %90, %89 : vector<2x16x16xf32>
    %92 = arith.addf %76, %91 : vector<2x16x16xf32>
    %c0_75 = arith.constant 0 : index
    %c7_76 = arith.constant 7 : index
    %c0_77 = arith.constant 0 : index
    %93 = vector.load %arg4[%c0_75, %c7_76, %c0_77] : memref<2x26x16xf32, #tpu.memory_space<vmem>>, vector<2x16x16xf32>
    %cst_78 = arith.constant 0.0178229306 : f32
    %94 = vector.broadcast %cst_78 : f32 to vector<2x16x16xf32>
    %95 = arith.mulf %94, %93 : vector<2x16x16xf32>
    %96 = arith.addf %80, %95 : vector<2x16x16xf32>
    %c0_79 = arith.constant 0 : index
    %c8_80 = arith.constant 8 : index
    %c0_81 = arith.constant 0 : index
    %97 = vector.load %arg4[%c0_79, %c8_80, %c0_81] : memref<2x26x16xf32, #tpu.memory_space<vmem>>, vector<2x16x16xf32>
    %cst_82 = arith.constant 0.00395863783 : f32
    %98 = vector.broadcast %cst_82 : f32 to vector<2x16x16xf32>
    %99 = arith.mulf %98, %97 : vector<2x16x16xf32>
    %100 = arith.addf %84, %99 : vector<2x16x16xf32>
    %c0_83 = arith.constant 0 : index
    %c9 = arith.constant 9 : index
    %c0_84 = arith.constant 0 : index
    %101 = vector.load %arg4[%c0_83, %c9, %c0_84] : memref<2x26x16xf32, #tpu.memory_space<vmem>>, vector<2x16x16xf32>
    %cst_85 = arith.constant 0.00395863783 : f32
    %102 = vector.broadcast %cst_85 : f32 to vector<2x16x16xf32>
    %103 = arith.mulf %102, %101 : vector<2x16x16xf32>
    %104 = arith.addf %88, %103 : vector<2x16x16xf32>
    %c0_86 = arith.constant 0 : index
    %c0_87 = arith.constant 0 : index
    %c126 = arith.constant 126 : index
    %105 = vector.load %arg3[%c0_86, %c0_87, %c126] : memref<2x26x149xf32, #tpu.memory_space<vmem>>, vector<2x26x16xf32>
    %c0_88 = arith.constant 0 : index
    %c0_89 = arith.constant 0 : index
    %c0_90 = arith.constant 0 : index
    %106 = vector.load %arg4[%c0_88, %c0_89, %c0_90] : memref<2x26x16xf32, #tpu.memory_space<vmem>>, vector<2x26x16xf32>
    tpu.vector_store %arg4[%c0_88, %c0_89, %c0_90], %105 {strides = array<i32>} : memref<2x26x16xf32, #tpu.memory_space<vmem>>, vector<2x26x16xf32>,
    %c0_91 = arith.constant 0 : index
    %c1_92 = arith.constant 1 : index
    %c0_93 = arith.constant 0 : index
    %107 = vector.load %arg4[%c0_91, %c1_92, %c0_93] : memref<2x26x16xf32, #tpu.memory_space<vmem>>, vector<2x16x16xf32>
    %cst_94 = arith.constant 0.00395863783 : f32
    %108 = vector.broadcast %cst_94 : f32 to vector<2x16x16xf32>
    %109 = arith.mulf %108, %107 : vector<2x16x16xf32>
    %110 = arith.addf %92, %109 : vector<2x16x16xf32>
    %c0_95 = arith.constant 0 : index
    %c2_96 = arith.constant 2 : index
    %c0_97 = arith.constant 0 : index
    %111 = vector.load %arg4[%c0_95, %c2_96, %c0_97] : memref<2x26x16xf32, #tpu.memory_space<vmem>>, vector<2x16x16xf32>
    %cst_98 = arith.constant 0.0178229306 : f32
    %112 = vector.broadcast %cst_98 : f32 to vector<2x16x16xf32>
    %113 = arith.mulf %112, %111 : vector<2x16x16xf32>
    %114 = arith.addf %96, %113 : vector<2x16x16xf32>
    %c0_99 = arith.constant 0 : index
    %c3_100 = arith.constant 3 : index
    %c0_101 = arith.constant 0 : index
    %115 = vector.load %arg4[%c0_99, %c3_100, %c0_101] : memref<2x26x16xf32, #tpu.memory_space<vmem>>, vector<2x16x16xf32>
    %cst_102 = arith.constant 0.0178229306 : f32
    %116 = vector.broadcast %cst_102 : f32 to vector<2x16x16xf32>
    %117 = arith.mulf %116, %115 : vector<2x16x16xf32>
    %118 = arith.addf %100, %117 : vector<2x16x16xf32>
    %c0_103 = arith.constant 0 : index
    %c4_104 = arith.constant 4 : index
    %c0_105 = arith.constant 0 : index
    %119 = vector.load %arg4[%c0_103, %c4_104, %c0_105] : memref<2x26x16xf32, #tpu.memory_space<vmem>>, vector<2x16x16xf32>
    %cst_106 = arith.constant 0.0178229306 : f32
    %120 = vector.broadcast %cst_106 : f32 to vector<2x16x16xf32>
    %121 = arith.mulf %120, %119 : vector<2x16x16xf32>
    %122 = arith.addf %104, %121 : vector<2x16x16xf32>
    %c0_107 = arith.constant 0 : index
    %c5_108 = arith.constant 5 : index
    %c0_109 = arith.constant 0 : index
    %123 = vector.load %arg4[%c0_107, %c5_108, %c0_109] : memref<2x26x16xf32, #tpu.memory_space<vmem>>, vector<2x16x16xf32>
    %cst_110 = arith.constant 0.0178229306 : f32
    %124 = vector.broadcast %cst_110 : f32 to vector<2x16x16xf32>
    %125 = arith.mulf %124, %123 : vector<2x16x16xf32>
    %126 = arith.addf %110, %125 : vector<2x16x16xf32>
    %c0_111 = arith.constant 0 : index
    %c6_112 = arith.constant 6 : index
    %c0_113 = arith.constant 0 : index
    %127 = vector.load %arg4[%c0_111, %c6_112, %c0_113] : memref<2x26x16xf32, #tpu.memory_space<vmem>>, vector<2x16x16xf32>
    %cst_114 = arith.constant 0.0178229306 : f32
    %128 = vector.broadcast %cst_114 : f32 to vector<2x16x16xf32>
    %129 = arith.mulf %128, %127 : vector<2x16x16xf32>
    %130 = arith.addf %114, %129 : vector<2x16x16xf32>
    %c0_115 = arith.constant 0 : index
    %c7_116 = arith.constant 7 : index
    %c0_117 = arith.constant 0 : index
    %131 = vector.load %arg4[%c0_115, %c7_116, %c0_117] : memref<2x26x16xf32, #tpu.memory_space<vmem>>, vector<2x16x16xf32>
    %cst_118 = arith.constant 0.0178229306 : f32
    %132 = vector.broadcast %cst_118 : f32 to vector<2x16x16xf32>
    %133 = arith.mulf %132, %131 : vector<2x16x16xf32>
    %134 = arith.addf %118, %133 : vector<2x16x16xf32>
    %c0_119 = arith.constant 0 : index
    %c8_120 = arith.constant 8 : index
    %c0_121 = arith.constant 0 : index
    %135 = vector.load %arg4[%c0_119, %c8_120, %c0_121] : memref<2x26x16xf32, #tpu.memory_space<vmem>>, vector<2x16x16xf32>
    %cst_122 = arith.constant 0.0178229306 : f32
    %136 = vector.broadcast %cst_122 : f32 to vector<2x16x16xf32>
    %137 = arith.mulf %136, %135 : vector<2x16x16xf32>
    %138 = arith.addf %122, %137 : vector<2x16x16xf32>
    %c0_123 = arith.constant 0 : index
    %c9_124 = arith.constant 9 : index
    %c0_125 = arith.constant 0 : index
    %139 = vector.load %arg4[%c0_123, %c9_124, %c0_125] : memref<2x26x16xf32, #tpu.memory_space<vmem>>, vector<2x16x16xf32>
    %cst_126 = arith.constant 0.00395863783 : f32
    %140 = vector.broadcast %cst_126 : f32 to vector<2x16x16xf32>
    %141 = arith.mulf %140, %139 : vector<2x16x16xf32>
    %142 = arith.addf %126, %141 : vector<2x16x16xf32>
    %c0_127 = arith.constant 0 : index
    %c0_128 = arith.constant 0 : index
    %c127 = arith.constant 127 : index
    %143 = vector.load %arg3[%c0_127, %c0_128, %c127] : memref<2x26x149xf32, #tpu.memory_space<vmem>>, vector<2x26x16xf32>
    %c0_129 = arith.constant 0 : index
    %c0_130 = arith.constant 0 : index
    %c0_131 = arith.constant 0 : index
    %144 = vector.load %arg4[%c0_129, %c0_130, %c0_131] : memref<2x26x16xf32, #tpu.memory_space<vmem>>, vector<2x26x16xf32>
    tpu.vector_store %arg4[%c0_129, %c0_130, %c0_131], %143 {strides = array<i32>} : memref<2x26x16xf32, #tpu.memory_space<vmem>>, vector<2x26x16xf32>,
    %c0_132 = arith.constant 0 : index
    %c1_133 = arith.constant 1 : index
    %c0_134 = arith.constant 0 : index
    %145 = vector.load %arg4[%c0_132, %c1_133, %c0_134] : memref<2x26x16xf32, #tpu.memory_space<vmem>>, vector<2x16x16xf32>
    %cst_135 = arith.constant 0.00395863783 : f32
    %146 = vector.broadcast %cst_135 : f32 to vector<2x16x16xf32>
    %147 = arith.mulf %146, %145 : vector<2x16x16xf32>
    %148 = arith.addf %130, %147 : vector<2x16x16xf32>
    %c0_136 = arith.constant 0 : index
    %c2_137 = arith.constant 2 : index
    %c0_138 = arith.constant 0 : index
    %149 = vector.load %arg4[%c0_136, %c2_137, %c0_138] : memref<2x26x16xf32, #tpu.memory_space<vmem>>, vector<2x16x16xf32>
    %cst_139 = arith.constant 0.0178229306 : f32
    %150 = vector.broadcast %cst_139 : f32 to vector<2x16x16xf32>
    %151 = arith.mulf %150, %149 : vector<2x16x16xf32>
    %152 = arith.addf %134, %151 : vector<2x16x16xf32>
    %c0_140 = arith.constant 0 : index
    %c3_141 = arith.constant 3 : index
    %c0_142 = arith.constant 0 : index
    %153 = vector.load %arg4[%c0_140, %c3_141, %c0_142] : memref<2x26x16xf32, #tpu.memory_space<vmem>>, vector<2x16x16xf32>
    %cst_143 = arith.constant 0.0178229306 : f32
    %154 = vector.broadcast %cst_143 : f32 to vector<2x16x16xf32>
    %155 = arith.mulf %154, %153 : vector<2x16x16xf32>
    %156 = arith.addf %138, %155 : vector<2x16x16xf32>
    %c0_144 = arith.constant 0 : index
    %c4_145 = arith.constant 4 : index
    %c0_146 = arith.constant 0 : index
    %157 = vector.load %arg4[%c0_144, %c4_145, %c0_146] : memref<2x26x16xf32, #tpu.memory_space<vmem>>, vector<2x16x16xf32>
    %cst_147 = arith.constant 0.0178229306 : f32
    %158 = vector.broadcast %cst_147 : f32 to vector<2x16x16xf32>
    %159 = arith.mulf %158, %157 : vector<2x16x16xf32>
    %160 = arith.addf %142, %159 : vector<2x16x16xf32>
    %c0_148 = arith.constant 0 : index
    %c5_149 = arith.constant 5 : index
    %c0_150 = arith.constant 0 : index
    %161 = vector.load %arg4[%c0_148, %c5_149, %c0_150] : memref<2x26x16xf32, #tpu.memory_space<vmem>>, vector<2x16x16xf32>
    %cst_151 = arith.constant 0.0178229306 : f32
    %162 = vector.broadcast %cst_151 : f32 to vector<2x16x16xf32>
    %163 = arith.mulf %162, %161 : vector<2x16x16xf32>
    %164 = arith.addf %148, %163 : vector<2x16x16xf32>
    %c0_152 = arith.constant 0 : index
    %c6_153 = arith.constant 6 : index
    %c0_154 = arith.constant 0 : index
    %165 = vector.load %arg4[%c0_152, %c6_153, %c0_154] : memref<2x26x16xf32, #tpu.memory_space<vmem>>, vector<2x16x16xf32>
    %cst_155 = arith.constant 0.0178229306 : f32
    %166 = vector.broadcast %cst_155 : f32 to vector<2x16x16xf32>
    %167 = arith.mulf %166, %165 : vector<2x16x16xf32>
    %168 = arith.addf %152, %167 : vector<2x16x16xf32>
    %c0_156 = arith.constant 0 : index
    %c7_157 = arith.constant 7 : index
    %c0_158 = arith.constant 0 : index
    %169 = vector.load %arg4[%c0_156, %c7_157, %c0_158] : memref<2x26x16xf32, #tpu.memory_space<vmem>>, vector<2x16x16xf32>
    %cst_159 = arith.constant 0.0178229306 : f32
    %170 = vector.broadcast %cst_159 : f32 to vector<2x16x16xf32>
    %171 = arith.mulf %170, %169 : vector<2x16x16xf32>
    %172 = arith.addf %156, %171 : vector<2x16x16xf32>
    %c0_160 = arith.constant 0 : index
    %c8_161 = arith.constant 8 : index
    %c0_162 = arith.constant 0 : index
    %173 = vector.load %arg4[%c0_160, %c8_161, %c0_162] : memref<2x26x16xf32, #tpu.memory_space<vmem>>, vector<2x16x16xf32>
    %cst_163 = arith.constant 0.0178229306 : f32
    %174 = vector.broadcast %cst_163 : f32 to vector<2x16x16xf32>
    %175 = arith.mulf %174, %173 : vector<2x16x16xf32>
    %176 = arith.addf %160, %175 : vector<2x16x16xf32>
    %c0_164 = arith.constant 0 : index
    %c9_165 = arith.constant 9 : index
    %c0_166 = arith.constant 0 : index
    %177 = vector.load %arg4[%c0_164, %c9_165, %c0_166] : memref<2x26x16xf32, #tpu.memory_space<vmem>>, vector<2x16x16xf32>
    %cst_167 = arith.constant 0.00395863783 : f32
    %178 = vector.broadcast %cst_167 : f32 to vector<2x16x16xf32>
    %179 = arith.mulf %178, %177 : vector<2x16x16xf32>
    %180 = arith.addf %164, %179 : vector<2x16x16xf32>
    %c0_168 = arith.constant 0 : index
    %c0_169 = arith.constant 0 : index
    %c128_170 = arith.constant 128 : index
    %181 = vector.load %arg3[%c0_168, %c0_169, %c128_170] : memref<2x26x149xf32, #tpu.memory_space<vmem>>, vector<2x26x16xf32>
    %c0_171 = arith.constant 0 : index
    %c0_172 = arith.constant 0 : index
    %c0_173 = arith.constant 0 : index
    %182 = vector.load %arg4[%c0_171, %c0_172, %c0_173] : memref<2x26x16xf32, #tpu.memory_space<vmem>>, vector<2x26x16xf32>
    tpu.vector_store %arg4[%c0_171, %c0_172, %c0_173], %181 {strides = array<i32>} : memref<2x26x16xf32, #tpu.memory_space<vmem>>, vector<2x26x16xf32>,
    %c0_174 = arith.constant 0 : index
    %c0_175 = arith.constant 0 : index
    %c0_176 = arith.constant 0 : index
    %183 = vector.load %arg4[%c0_174, %c0_175, %c0_176] : memref<2x26x16xf32, #tpu.memory_space<vmem>>, vector<2x16x16xf32>
    %cst_177 = arith.constant 0.00395863783 : f32
    %184 = vector.broadcast %cst_177 : f32 to vector<2x16x16xf32>
    %185 = arith.mulf %184, %183 : vector<2x16x16xf32>
    %186 = arith.addf %168, %185 : vector<2x16x16xf32>
    %c0_178 = arith.constant 0 : index
    %c1_179 = arith.constant 1 : index
    %c0_180 = arith.constant 0 : index
    %187 = vector.load %arg4[%c0_178, %c1_179, %c0_180] : memref<2x26x16xf32, #tpu.memory_space<vmem>>, vector<2x16x16xf32>
    %cst_181 = arith.constant 0.0178229306 : f32
    %188 = vector.broadcast %cst_181 : f32 to vector<2x16x16xf32>
    %189 = arith.mulf %188, %187 : vector<2x16x16xf32>
    %190 = arith.addf %172, %189 : vector<2x16x16xf32>
    %c0_182 = arith.constant 0 : index
    %c2_183 = arith.constant 2 : index
    %c0_184 = arith.constant 0 : index
    %191 = vector.load %arg4[%c0_182, %c2_183, %c0_184] : memref<2x26x16xf32, #tpu.memory_space<vmem>>, vector<2x16x16xf32>
    %cst_185 = arith.constant 0.0178229306 : f32
    %192 = vector.broadcast %cst_185 : f32 to vector<2x16x16xf32>
    %193 = arith.mulf %192, %191 : vector<2x16x16xf32>
    %194 = arith.addf %176, %193 : vector<2x16x16xf32>
    %c0_186 = arith.constant 0 : index
    %c3_187 = arith.constant 3 : index
    %c0_188 = arith.constant 0 : index
    %195 = vector.load %arg4[%c0_186, %c3_187, %c0_188] : memref<2x26x16xf32, #tpu.memory_space<vmem>>, vector<2x16x16xf32>
    %cst_189 = arith.constant 0.0178229306 : f32
    %196 = vector.broadcast %cst_189 : f32 to vector<2x16x16xf32>
    %197 = arith.mulf %196, %195 : vector<2x16x16xf32>
    %198 = arith.addf %180, %197 : vector<2x16x16xf32>
    %c0_190 = arith.constant 0 : index
    %c4_191 = arith.constant 4 : index
    %c0_192 = arith.constant 0 : index
    %199 = vector.load %arg4[%c0_190, %c4_191, %c0_192] : memref<2x26x16xf32, #tpu.memory_space<vmem>>, vector<2x16x16xf32>
    %cst_193 = arith.constant 0.0178229306 : f32
    %200 = vector.broadcast %cst_193 : f32 to vector<2x16x16xf32>
    %201 = arith.mulf %200, %199 : vector<2x16x16xf32>
    %202 = arith.addf %186, %201 : vector<2x16x16xf32>
    %c0_194 = arith.constant 0 : index
    %c5_195 = arith.constant 5 : index
    %c0_196 = arith.constant 0 : index
    %203 = vector.load %arg4[%c0_194, %c5_195, %c0_196] : memref<2x26x16xf32, #tpu.memory_space<vmem>>, vector<2x16x16xf32>
    %cst_197 = arith.constant 0.0178229306 : f32
    %204 = vector.broadcast %cst_197 : f32 to vector<2x16x16xf32>
    %205 = arith.mulf %204, %203 : vector<2x16x16xf32>
    %206 = arith.addf %190, %205 : vector<2x16x16xf32>
    %c0_198 = arith.constant 0 : index
    %c6_199 = arith.constant 6 : index
    %c0_200 = arith.constant 0 : index
    %207 = vector.load %arg4[%c0_198, %c6_199, %c0_200] : memref<2x26x16xf32, #tpu.memory_space<vmem>>, vector<2x16x16xf32>
    %cst_201 = arith.constant 0.0178229306 : f32
    %208 = vector.broadcast %cst_201 : f32 to vector<2x16x16xf32>
    %209 = arith.mulf %208, %207 : vector<2x16x16xf32>
    %210 = arith.addf %194, %209 : vector<2x16x16xf32>
    %c0_202 = arith.constant 0 : index
    %c7_203 = arith.constant 7 : index
    %c0_204 = arith.constant 0 : index
    %211 = vector.load %arg4[%c0_202, %c7_203, %c0_204] : memref<2x26x16xf32, #tpu.memory_space<vmem>>, vector<2x16x16xf32>
    %cst_205 = arith.constant 0.0178229306 : f32
    %212 = vector.broadcast %cst_205 : f32 to vector<2x16x16xf32>
    %213 = arith.mulf %212, %211 : vector<2x16x16xf32>
    %214 = arith.addf %198, %213 : vector<2x16x16xf32>
    %c0_206 = arith.constant 0 : index
    %c8_207 = arith.constant 8 : index
    %c0_208 = arith.constant 0 : index
    %215 = vector.load %arg4[%c0_206, %c8_207, %c0_208] : memref<2x26x16xf32, #tpu.memory_space<vmem>>, vector<2x16x16xf32>
    %cst_209 = arith.constant 0.0178229306 : f32
    %216 = vector.broadcast %cst_209 : f32 to vector<2x16x16xf32>
    %217 = arith.mulf %216, %215 : vector<2x16x16xf32>
    %218 = arith.addf %202, %217 : vector<2x16x16xf32>
    %c0_210 = arith.constant 0 : index
    %c9_211 = arith.constant 9 : index
    %c0_212 = arith.constant 0 : index
    %219 = vector.load %arg4[%c0_210, %c9_211, %c0_212] : memref<2x26x16xf32, #tpu.memory_space<vmem>>, vector<2x16x16xf32>
    %cst_213 = arith.constant 0.0178229306 : f32
    %220 = vector.broadcast %cst_213 : f32 to vector<2x16x16xf32>
    %221 = arith.mulf %220, %219 : vector<2x16x16xf32>
    %222 = arith.addf %206, %221 : vector<2x16x16xf32>
    %c0_214 = arith.constant 0 : index
    %c10 = arith.constant 10 : index
    %c0_215 = arith.constant 0 : index
    %223 = vector.load %arg4[%c0_214, %c10, %c0_215] : memref<2x26x16xf32, #tpu.memory_space<vmem>>, vector<2x16x16xf32>
    %cst_216 = arith.constant 0.00395863783 : f32
    %224 = vector.broadcast %cst_216 : f32 to vector<2x16x16xf32>
    %225 = arith.mulf %224, %223 : vector<2x16x16xf32>
    %226 = arith.addf %210, %225 : vector<2x16x16xf32>
    %c0_217 = arith.constant 0 : index
    %c0_218 = arith.constant 0 : index
    %c129 = arith.constant 129 : index
    %227 = vector.load %arg3[%c0_217, %c0_218, %c129] : memref<2x26x149xf32, #tpu.memory_space<vmem>>, vector<2x26x16xf32>
    %c0_219 = arith.constant 0 : index
    %c0_220 = arith.constant 0 : index
    %c0_221 = arith.constant 0 : index
    %228 = vector.load %arg4[%c0_219, %c0_220, %c0_221] : memref<2x26x16xf32, #tpu.memory_space<vmem>>, vector<2x26x16xf32>
    tpu.vector_store %arg4[%c0_219, %c0_220, %c0_221], %227 {strides = array<i32>} : memref<2x26x16xf32, #tpu.memory_space<vmem>>, vector<2x26x16xf32>,
    %c0_222 = arith.constant 0 : index
    %c1_223 = arith.constant 1 : index
    %c0_224 = arith.constant 0 : index
    %229 = vector.load %arg4[%c0_222, %c1_223, %c0_224] : memref<2x26x16xf32, #tpu.memory_space<vmem>>, vector<2x16x16xf32>
    %cst_225 = arith.constant 0.00395863783 : f32
    %230 = vector.broadcast %cst_225 : f32 to vector<2x16x16xf32>
    %231 = arith.mulf %230, %229 : vector<2x16x16xf32>
    %232 = arith.addf %214, %231 : vector<2x16x16xf32>
    %c0_226 = arith.constant 0 : index
    %c2_227 = arith.constant 2 : index
    %c0_228 = arith.constant 0 : index
    %233 = vector.load %arg4[%c0_226, %c2_227, %c0_228] : memref<2x26x16xf32, #tpu.memory_space<vmem>>, vector<2x16x16xf32>
    %cst_229 = arith.constant 0.0178229306 : f32
    %234 = vector.broadcast %cst_229 : f32 to vector<2x16x16xf32>
    %235 = arith.mulf %234, %233 : vector<2x16x16xf32>
    %236 = arith.addf %218, %235 : vector<2x16x16xf32>
    %c0_230 = arith.constant 0 : index
    %c3_231 = arith.constant 3 : index
    %c0_232 = arith.constant 0 : index
    %237 = vector.load %arg4[%c0_230, %c3_231, %c0_232] : memref<2x26x16xf32, #tpu.memory_space<vmem>>, vector<2x16x16xf32>
    %cst_233 = arith.constant 0.0178229306 : f32
    %238 = vector.broadcast %cst_233 : f32 to vector<2x16x16xf32>
    %239 = arith.mulf %238, %237 : vector<2x16x16xf32>
    %240 = arith.addf %222, %239 : vector<2x16x16xf32>
    %c0_234 = arith.constant 0 : index
    %c4_235 = arith.constant 4 : index
    %c0_236 = arith.constant 0 : index
    %241 = vector.load %arg4[%c0_234, %c4_235, %c0_236] : memref<2x26x16xf32, #tpu.memory_space<vmem>>, vector<2x16x16xf32>
    %cst_237 = arith.constant 0.0178229306 : f32
    %242 = vector.broadcast %cst_237 : f32 to vector<2x16x16xf32>
    %243 = arith.mulf %242, %241 : vector<2x16x16xf32>
    %244 = arith.addf %226, %243 : vector<2x16x16xf32>
    %c0_238 = arith.constant 0 : index
    %c5_239 = arith.constant 5 : index
    %c0_240 = arith.constant 0 : index
    %245 = vector.load %arg4[%c0_238, %c5_239, %c0_240] : memref<2x26x16xf32, #tpu.memory_space<vmem>>, vector<2x16x16xf32>
    %cst_241 = arith.constant 0.0178229306 : f32
    %246 = vector.broadcast %cst_241 : f32 to vector<2x16x16xf32>
    %247 = arith.mulf %246, %245 : vector<2x16x16xf32>
    %248 = arith.addf %232, %247 : vector<2x16x16xf32>
    %c0_242 = arith.constant 0 : index
    %c6_243 = arith.constant 6 : index
    %c0_244 = arith.constant 0 : index
    %249 = vector.load %arg4[%c0_242, %c6_243, %c0_244] : memref<2x26x16xf32, #tpu.memory_space<vmem>>, vector<2x16x16xf32>
    %cst_245 = arith.constant 0.0178229306 : f32
    %250 = vector.broadcast %cst_245 : f32 to vector<2x16x16xf32>
    %251 = arith.mulf %250, %249 : vector<2x16x16xf32>
    %252 = arith.addf %236, %251 : vector<2x16x16xf32>
    %c0_246 = arith.constant 0 : index
    %c7_247 = arith.constant 7 : index
    %c0_248 = arith.constant 0 : index
    %253 = vector.load %arg4[%c0_246, %c7_247, %c0_248] : memref<2x26x16xf32, #tpu.memory_space<vmem>>, vector<2x16x16xf32>
    %cst_249 = arith.constant 0.0178229306 : f32
    %254 = vector.broadcast %cst_249 : f32 to vector<2x16x16xf32>
    %255 = arith.mulf %254, %253 : vector<2x16x16xf32>
    %256 = arith.addf %240, %255 : vector<2x16x16xf32>
    %c0_250 = arith.constant 0 : index
    %c8_251 = arith.constant 8 : index
    %c0_252 = arith.constant 0 : index
    %257 = vector.load %arg4[%c0_250, %c8_251, %c0_252] : memref<2x26x16xf32, #tpu.memory_space<vmem>>, vector<2x16x16xf32>
    %cst_253 = arith.constant 0.0178229306 : f32
    %258 = vector.broadcast %cst_253 : f32 to vector<2x16x16xf32>
    %259 = arith.mulf %258, %257 : vector<2x16x16xf32>
    %260 = arith.addf %244, %259 : vector<2x16x16xf32>
    %c0_254 = arith.constant 0 : index
    %c9_255 = arith.constant 9 : index
    %c0_256 = arith.constant 0 : index
    %261 = vector.load %arg4[%c0_254, %c9_255, %c0_256] : memref<2x26x16xf32, #tpu.memory_space<vmem>>, vector<2x16x16xf32>
    %cst_257 = arith.constant 0.00395863783 : f32
    %262 = vector.broadcast %cst_257 : f32 to vector<2x16x16xf32>
    %263 = arith.mulf %262, %261 : vector<2x16x16xf32>
    %264 = arith.addf %248, %263 : vector<2x16x16xf32>
    %c0_258 = arith.constant 0 : index
    %c0_259 = arith.constant 0 : index
    %c130 = arith.constant 130 : index
    %265 = vector.load %arg3[%c0_258, %c0_259, %c130] : memref<2x26x149xf32, #tpu.memory_space<vmem>>, vector<2x26x16xf32>
    %c0_260 = arith.constant 0 : index
    %c0_261 = arith.constant 0 : index
    %c0_262 = arith.constant 0 : index
    %266 = vector.load %arg4[%c0_260, %c0_261, %c0_262] : memref<2x26x16xf32, #tpu.memory_space<vmem>>, vector<2x26x16xf32>
    tpu.vector_store %arg4[%c0_260, %c0_261, %c0_262], %265 {strides = array<i32>} : memref<2x26x16xf32, #tpu.memory_space<vmem>>, vector<2x26x16xf32>,
    %c0_263 = arith.constant 0 : index
    %c1_264 = arith.constant 1 : index
    %c0_265 = arith.constant 0 : index
    %267 = vector.load %arg4[%c0_263, %c1_264, %c0_265] : memref<2x26x16xf32, #tpu.memory_space<vmem>>, vector<2x16x16xf32>
    %cst_266 = arith.constant 0.00395863783 : f32
    %268 = vector.broadcast %cst_266 : f32 to vector<2x16x16xf32>
    %269 = arith.mulf %268, %267 : vector<2x16x16xf32>
    %270 = arith.addf %252, %269 : vector<2x16x16xf32>
    %c0_267 = arith.constant 0 : index
    %c2_268 = arith.constant 2 : index
    %c0_269 = arith.constant 0 : index
    %271 = vector.load %arg4[%c0_267, %c2_268, %c0_269] : memref<2x26x16xf32, #tpu.memory_space<vmem>>, vector<2x16x16xf32>
    %cst_270 = arith.constant 0.0178229306 : f32
    %272 = vector.broadcast %cst_270 : f32 to vector<2x16x16xf32>
    %273 = arith.mulf %272, %271 : vector<2x16x16xf32>
    %274 = arith.addf %256, %273 : vector<2x16x16xf32>
    %c0_271 = arith.constant 0 : index
    %c3_272 = arith.constant 3 : index
    %c0_273 = arith.constant 0 : index
    %275 = vector.load %arg4[%c0_271, %c3_272, %c0_273] : memref<2x26x16xf32, #tpu.memory_space<vmem>>, vector<2x16x16xf32>
    %cst_274 = arith.constant 0.0178229306 : f32
    %276 = vector.broadcast %cst_274 : f32 to vector<2x16x16xf32>
    %277 = arith.mulf %276, %275 : vector<2x16x16xf32>
    %278 = arith.addf %260, %277 : vector<2x16x16xf32>
    %c0_275 = arith.constant 0 : index
    %c4_276 = arith.constant 4 : index
    %c0_277 = arith.constant 0 : index
    %279 = vector.load %arg4[%c0_275, %c4_276, %c0_277] : memref<2x26x16xf32, #tpu.memory_space<vmem>>, vector<2x16x16xf32>
    %cst_278 = arith.constant 0.0178229306 : f32
    %280 = vector.broadcast %cst_278 : f32 to vector<2x16x16xf32>
    %281 = arith.mulf %280, %279 : vector<2x16x16xf32>
    %282 = arith.addf %264, %281 : vector<2x16x16xf32>
    %c0_279 = arith.constant 0 : index
    %c5_280 = arith.constant 5 : index
    %c0_281 = arith.constant 0 : index
    %283 = vector.load %arg4[%c0_279, %c5_280, %c0_281] : memref<2x26x16xf32, #tpu.memory_space<vmem>>, vector<2x16x16xf32>
    %cst_282 = arith.constant 0.0178229306 : f32
    %284 = vector.broadcast %cst_282 : f32 to vector<2x16x16xf32>
    %285 = arith.mulf %284, %283 : vector<2x16x16xf32>
    %286 = arith.addf %270, %285 : vector<2x16x16xf32>
    %c0_283 = arith.constant 0 : index
    %c6_284 = arith.constant 6 : index
    %c0_285 = arith.constant 0 : index
    %287 = vector.load %arg4[%c0_283, %c6_284, %c0_285] : memref<2x26x16xf32, #tpu.memory_space<vmem>>, vector<2x16x16xf32>
    %cst_286 = arith.constant 0.0178229306 : f32
    %288 = vector.broadcast %cst_286 : f32 to vector<2x16x16xf32>
    %289 = arith.mulf %288, %287 : vector<2x16x16xf32>
    %290 = arith.addf %274, %289 : vector<2x16x16xf32>
    %c0_287 = arith.constant 0 : index
    %c7_288 = arith.constant 7 : index
    %c0_289 = arith.constant 0 : index
    %291 = vector.load %arg4[%c0_287, %c7_288, %c0_289] : memref<2x26x16xf32, #tpu.memory_space<vmem>>, vector<2x16x16xf32>
    %cst_290 = arith.constant 0.0178229306 : f32
    %292 = vector.broadcast %cst_290 : f32 to vector<2x16x16xf32>
    %293 = arith.mulf %292, %291 : vector<2x16x16xf32>
    %294 = arith.addf %278, %293 : vector<2x16x16xf32>
    %c0_291 = arith.constant 0 : index
    %c8_292 = arith.constant 8 : index
    %c0_293 = arith.constant 0 : index
    %295 = vector.load %arg4[%c0_291, %c8_292, %c0_293] : memref<2x26x16xf32, #tpu.memory_space<vmem>>, vector<2x16x16xf32>
    %cst_294 = arith.constant 0.0178229306 : f32
    %296 = vector.broadcast %cst_294 : f32 to vector<2x16x16xf32>
    %297 = arith.mulf %296, %295 : vector<2x16x16xf32>
    %298 = arith.addf %282, %297 : vector<2x16x16xf32>
    %c0_295 = arith.constant 0 : index
    %c9_296 = arith.constant 9 : index
    %c0_297 = arith.constant 0 : index
    %299 = vector.load %arg4[%c0_295, %c9_296, %c0_297] : memref<2x26x16xf32, #tpu.memory_space<vmem>>, vector<2x16x16xf32>
    %cst_298 = arith.constant 0.00395863783 : f32
    %300 = vector.broadcast %cst_298 : f32 to vector<2x16x16xf32>
    %301 = arith.mulf %300, %299 : vector<2x16x16xf32>
    %302 = arith.addf %286, %301 : vector<2x16x16xf32>
    %c0_299 = arith.constant 0 : index
    %c0_300 = arith.constant 0 : index
    %c131 = arith.constant 131 : index
    %303 = vector.load %arg3[%c0_299, %c0_300, %c131] : memref<2x26x149xf32, #tpu.memory_space<vmem>>, vector<2x26x16xf32>
    %c0_301 = arith.constant 0 : index
    %c0_302 = arith.constant 0 : index
    %c0_303 = arith.constant 0 : index
    %304 = vector.load %arg4[%c0_301, %c0_302, %c0_303] : memref<2x26x16xf32, #tpu.memory_space<vmem>>, vector<2x26x16xf32>
    tpu.vector_store %arg4[%c0_301, %c0_302, %c0_303], %303 {strides = array<i32>} : memref<2x26x16xf32, #tpu.memory_space<vmem>>, vector<2x26x16xf32>,
    %c0_304 = arith.constant 0 : index
    %c1_305 = arith.constant 1 : index
    %c0_306 = arith.constant 0 : index
    %305 = vector.load %arg4[%c0_304, %c1_305, %c0_306] : memref<2x26x16xf32, #tpu.memory_space<vmem>>, vector<2x16x16xf32>
    %cst_307 = arith.constant 0.00395863783 : f32
    %306 = vector.broadcast %cst_307 : f32 to vector<2x16x16xf32>
    %307 = arith.mulf %306, %305 : vector<2x16x16xf32>
    %308 = arith.addf %290, %307 : vector<2x16x16xf32>
    %c0_308 = arith.constant 0 : index
    %c2_309 = arith.constant 2 : index
    %c0_310 = arith.constant 0 : index
    %309 = vector.load %arg4[%c0_308, %c2_309, %c0_310] : memref<2x26x16xf32, #tpu.memory_space<vmem>>, vector<2x16x16xf32>
    %cst_311 = arith.constant 0.00395863783 : f32
    %310 = vector.broadcast %cst_311 : f32 to vector<2x16x16xf32>
    %311 = arith.mulf %310, %309 : vector<2x16x16xf32>
    %312 = arith.addf %294, %311 : vector<2x16x16xf32>
    %c0_312 = arith.constant 0 : index
    %c3_313 = arith.constant 3 : index
    %c0_314 = arith.constant 0 : index
    %313 = vector.load %arg4[%c0_312, %c3_313, %c0_314] : memref<2x26x16xf32, #tpu.memory_space<vmem>>, vector<2x16x16xf32>
    %cst_315 = arith.constant 0.0178229306 : f32
    %314 = vector.broadcast %cst_315 : f32 to vector<2x16x16xf32>
    %315 = arith.mulf %314, %313 : vector<2x16x16xf32>
    %316 = arith.addf %298, %315 : vector<2x16x16xf32>
    %c0_316 = arith.constant 0 : index
    %c4_317 = arith.constant 4 : index
    %c0_318 = arith.constant 0 : index
    %317 = vector.load %arg4[%c0_316, %c4_317, %c0_318] : memref<2x26x16xf32, #tpu.memory_space<vmem>>, vector<2x16x16xf32>
    %cst_319 = arith.constant 0.0178229306 : f32
    %318 = vector.broadcast %cst_319 : f32 to vector<2x16x16xf32>
    %319 = arith.mulf %318, %317 : vector<2x16x16xf32>
    %320 = arith.addf %302, %319 : vector<2x16x16xf32>
    %c0_320 = arith.constant 0 : index
    %c5_321 = arith.constant 5 : index
    %c0_322 = arith.constant 0 : index
    %321 = vector.load %arg4[%c0_320, %c5_321, %c0_322] : memref<2x26x16xf32, #tpu.memory_space<vmem>>, vector<2x16x16xf32>
    %cst_323 = arith.constant 0.0178229306 : f32
    %322 = vector.broadcast %cst_323 : f32 to vector<2x16x16xf32>
    %323 = arith.mulf %322, %321 : vector<2x16x16xf32>
    %324 = arith.addf %308, %323 : vector<2x16x16xf32>
    %c0_324 = arith.constant 0 : index
    %c6_325 = arith.constant 6 : index
    %c0_326 = arith.constant 0 : index
    %325 = vector.load %arg4[%c0_324, %c6_325, %c0_326] : memref<2x26x16xf32, #tpu.memory_space<vmem>>, vector<2x16x16xf32>
    %cst_327 = arith.constant 0.0178229306 : f32
    %326 = vector.broadcast %cst_327 : f32 to vector<2x16x16xf32>
    %327 = arith.mulf %326, %325 : vector<2x16x16xf32>
    %328 = arith.addf %312, %327 : vector<2x16x16xf32>
    %c0_328 = arith.constant 0 : index
    %c7_329 = arith.constant 7 : index
    %c0_330 = arith.constant 0 : index
    %329 = vector.load %arg4[%c0_328, %c7_329, %c0_330] : memref<2x26x16xf32, #tpu.memory_space<vmem>>, vector<2x16x16xf32>
    %cst_331 = arith.constant 0.0178229306 : f32
    %330 = vector.broadcast %cst_331 : f32 to vector<2x16x16xf32>
    %331 = arith.mulf %330, %329 : vector<2x16x16xf32>
    %332 = arith.addf %316, %331 : vector<2x16x16xf32>
    %c0_332 = arith.constant 0 : index
    %c8_333 = arith.constant 8 : index
    %c0_334 = arith.constant 0 : index
    %333 = vector.load %arg4[%c0_332, %c8_333, %c0_334] : memref<2x26x16xf32, #tpu.memory_space<vmem>>, vector<2x16x16xf32>
    %cst_335 = arith.constant 0.00395863783 : f32
    %334 = vector.broadcast %cst_335 : f32 to vector<2x16x16xf32>
    %335 = arith.mulf %334, %333 : vector<2x16x16xf32>
    %336 = arith.addf %320, %335 : vector<2x16x16xf32>
    %c0_336 = arith.constant 0 : index
    %c9_337 = arith.constant 9 : index
    %c0_338 = arith.constant 0 : index
    %337 = vector.load %arg4[%c0_336, %c9_337, %c0_338] : memref<2x26x16xf32, #tpu.memory_space<vmem>>, vector<2x16x16xf32>
    %cst_339 = arith.constant 0.00395863783 : f32
    %338 = vector.broadcast %cst_339 : f32 to vector<2x16x16xf32>
    %339 = arith.mulf %338, %337 : vector<2x16x16xf32>
    %340 = arith.addf %324, %339 : vector<2x16x16xf32>
    %c0_340 = arith.constant 0 : index
    %c0_341 = arith.constant 0 : index
    %c132 = arith.constant 132 : index
    %341 = vector.load %arg3[%c0_340, %c0_341, %c132] : memref<2x26x149xf32, #tpu.memory_space<vmem>>, vector<2x26x16xf32>
    %c0_342 = arith.constant 0 : index
    %c0_343 = arith.constant 0 : index
    %c0_344 = arith.constant 0 : index
    %342 = vector.load %arg4[%c0_342, %c0_343, %c0_344] : memref<2x26x16xf32, #tpu.memory_space<vmem>>, vector<2x26x16xf32>
    tpu.vector_store %arg4[%c0_342, %c0_343, %c0_344], %341 {strides = array<i32>} : memref<2x26x16xf32, #tpu.memory_space<vmem>>, vector<2x26x16xf32>,
    %c0_345 = arith.constant 0 : index
    %c2_346 = arith.constant 2 : index
    %c0_347 = arith.constant 0 : index
    %343 = vector.load %arg4[%c0_345, %c2_346, %c0_347] : memref<2x26x16xf32, #tpu.memory_space<vmem>>, vector<2x16x16xf32>
    %cst_348 = arith.constant 0.00395863783 : f32
    %344 = vector.broadcast %cst_348 : f32 to vector<2x16x16xf32>
    %345 = arith.mulf %344, %343 : vector<2x16x16xf32>
    %346 = arith.addf %328, %345 : vector<2x16x16xf32>
    %c0_349 = arith.constant 0 : index
    %c3_350 = arith.constant 3 : index
    %c0_351 = arith.constant 0 : index
    %347 = vector.load %arg4[%c0_349, %c3_350, %c0_351] : memref<2x26x16xf32, #tpu.memory_space<vmem>>, vector<2x16x16xf32>
    %cst_352 = arith.constant 0.00395863783 : f32
    %348 = vector.broadcast %cst_352 : f32 to vector<2x16x16xf32>
    %349 = arith.mulf %348, %347 : vector<2x16x16xf32>
    %350 = arith.addf %332, %349 : vector<2x16x16xf32>
    %c0_353 = arith.constant 0 : index
    %c4_354 = arith.constant 4 : index
    %c0_355 = arith.constant 0 : index
    %351 = vector.load %arg4[%c0_353, %c4_354, %c0_355] : memref<2x26x16xf32, #tpu.memory_space<vmem>>, vector<2x16x16xf32>
    %cst_356 = arith.constant 0.00395863783 : f32
    %352 = vector.broadcast %cst_356 : f32 to vector<2x16x16xf32>
    %353 = arith.mulf %352, %351 : vector<2x16x16xf32>
    %354 = arith.addf %336, %353 : vector<2x16x16xf32>
    %c0_357 = arith.constant 0 : index
    %c5_358 = arith.constant 5 : index
    %c0_359 = arith.constant 0 : index
    %355 = vector.load %arg4[%c0_357, %c5_358, %c0_359] : memref<2x26x16xf32, #tpu.memory_space<vmem>>, vector<2x16x16xf32>
    %cst_360 = arith.constant 0.0178229306 : f32
    %356 = vector.broadcast %cst_360 : f32 to vector<2x16x16xf32>
    %357 = arith.mulf %356, %355 : vector<2x16x16xf32>
    %358 = arith.addf %340, %357 : vector<2x16x16xf32>
    %c0_361 = arith.constant 0 : index
    %c6_362 = arith.constant 6 : index
    %c0_363 = arith.constant 0 : index
    %359 = vector.load %arg4[%c0_361, %c6_362, %c0_363] : memref<2x26x16xf32, #tpu.memory_space<vmem>>, vector<2x16x16xf32>
    %cst_364 = arith.constant 0.00395863783 : f32
    %360 = vector.broadcast %cst_364 : f32 to vector<2x16x16xf32>
    %361 = arith.mulf %360, %359 : vector<2x16x16xf32>
    %362 = arith.addf %346, %361 : vector<2x16x16xf32>
    %c0_365 = arith.constant 0 : index
    %c7_366 = arith.constant 7 : index
    %c0_367 = arith.constant 0 : index
    %363 = vector.load %arg4[%c0_365, %c7_366, %c0_367] : memref<2x26x16xf32, #tpu.memory_space<vmem>>, vector<2x16x16xf32>
    %cst_368 = arith.constant 0.00395863783 : f32
    %364 = vector.broadcast %cst_368 : f32 to vector<2x16x16xf32>
    %365 = arith.mulf %364, %363 : vector<2x16x16xf32>
    %366 = arith.addf %350, %365 : vector<2x16x16xf32>
    %c0_369 = arith.constant 0 : index
    %c8_370 = arith.constant 8 : index
    %c0_371 = arith.constant 0 : index
    %367 = vector.load %arg4[%c0_369, %c8_370, %c0_371] : memref<2x26x16xf32, #tpu.memory_space<vmem>>, vector<2x16x16xf32>
    %cst_372 = arith.constant 0.00395863783 : f32
    %368 = vector.broadcast %cst_372 : f32 to vector<2x16x16xf32>
    %369 = arith.mulf %368, %367 : vector<2x16x16xf32>
    %370 = arith.addf %354, %369 : vector<2x16x16xf32>
    %c0_373 = arith.constant 0 : index
    %c0_374 = arith.constant 0 : index
    %c133 = arith.constant 133 : index
    %371 = vector.load %arg3[%c0_373, %c0_374, %c133] : memref<2x26x149xf32, #tpu.memory_space<vmem>>, vector<2x26x16xf32>
    %c0_375 = arith.constant 0 : index
    %c0_376 = arith.constant 0 : index
    %c0_377 = arith.constant 0 : index
    %372 = vector.load %arg4[%c0_375, %c0_376, %c0_377] : memref<2x26x16xf32, #tpu.memory_space<vmem>>, vector<2x26x16xf32>
    tpu.vector_store %arg4[%c0_375, %c0_376, %c0_377], %371 {strides = array<i32>} : memref<2x26x16xf32, #tpu.memory_space<vmem>>, vector<2x26x16xf32>,
    %c0_378 = arith.constant 0 : index
    %c5_379 = arith.constant 5 : index
    %c0_380 = arith.constant 0 : index
    %373 = vector.load %arg4[%c0_378, %c5_379, %c0_380] : memref<2x26x16xf32, #tpu.memory_space<vmem>>, vector<2x16x16xf32>
    %cst_381 = arith.constant 0.00395863783 : f32
    %374 = vector.broadcast %cst_381 : f32 to vector<2x16x16xf32>
    %375 = arith.mulf %374, %373 : vector<2x16x16xf32>
    %376 = arith.addf %358, %375 : vector<2x16x16xf32>
    %377 = arith.addf %376, %362 : vector<2x16x16xf32>
    %378 = arith.addf %377, %366 : vector<2x16x16xf32>
    %379 = arith.addf %378, %370 : vector<2x16x16xf32>
    %c0_382 = arith.constant 0 : index
    %c0_383 = arith.constant 0 : index
    %c0_384 = arith.constant 0 : index
    %380 = vector.load %arg2[%c0_382, %c0_383, %c0_384] : memref<2x16x16xf32, #tpu.memory_space<vmem>>, vector<2x16x16xf32>
    tpu.vector_store %arg2[%c0_382, %c0_383, %c0_384], %379 {strides = array<i32>} : memref<2x16x16xf32, #tpu.memory_space<vmem>>, vector<2x16x16xf32>,
    return
  }
  func.func @transform_0(%arg0: i32) -> (i32, i32, i32) {
    %c0_i32 = arith.constant 0 : i32
    %c0_i32_0 = arith.constant 0 : i32
    %c0_i32_1 = arith.constant 0 : i32
    return %arg0, %c0_i32, %c0_i32_0 : i32, i32, i32
  }
  func.func @transform_1(%arg0: i32) -> (i32, i32, i32) {
    %c0_i32 = arith.constant 0 : i32
    %c0_i32_0 = arith.constant 0 : i32
    %c0_i32_1 = arith.constant 0 : i32
    return %arg0, %c0_i32, %c0_i32_0 : i32, i32, i32
  }
}

</mosaic_0001>

<llo_original>
// kernel: tpu_custom_call.1
$region0: #{tpu_custom_call.1}
  #allocation0 [shape = 'u32[]', space=smem, size = 0x4, offset = 0x4, fixed_abs, tag = 'smem constant byte address 0x4 - core index']
  #allocation1 [shape = 'u32[72,128]{1,0:T(1,128)}', space=vmem, size = 0x9000, scoped, tag = 'internal scratch']
  #allocation2 [shape = 'f32[2,26,149]{2,1,0:T(8,128)}', space=vmem, size = 0x10000, scoped, tag = 'scratch operand']
  #allocation3 [shape = 'f32[2,26,16]{2,1,0:T(8,128)}', space=vmem, size = 0x8000, scoped, tag = 'scratch operand']
  %s0 = inlined_call_operand.hbm [shape: f32[4,16,16], index: 0, kind: input, shape index: {}]
  %s1 = inlined_call_operand.hbm [shape: f32[4,16,16], index: 1, kind: output, shape index: {}]
  %s2 = sld [smem:[#allocation0]]
  $region41: #{tpu_custom_call.1} parent=0
    _
  %s4 = ssub.s32 1, %s2
  %s5 = scalar_select 0, %s4, %s2
  $region1: #{tpu_custom_call.1} parent=0
    #allocation4 [shape = 'u8[32768]{0}', space=vmem, size = 0x8000, scoped, tag = 'input window, operand 0']
    #allocation5 [shape = 's32[2]{0}', space=sflag, size = 0x8, scoped, tag = 'scoped memory for tpu_custom_call.1']
    #allocation6 [shape = 's32[2]{0}', space=sflag, size = 0x8, scoped, tag = 'scoped memory for tpu_custom_call.1']
    #allocation7 [shape = 'u8[32768]{0}', space=vmem, size = 0x8000, scoped, tag = 'output window, operand 0']
    %6 = vsyncpa [#allocation5], 0
    %s7 = scalar_lea.sflag [#allocation5], 1
    %8 = vsyncpa %s7, 0
    %9 = vsyncpa [#allocation6], 0
    %s10 = scalar_lea.sflag [#allocation6], 1
    %11 = vsyncpa %s10, 0
    loop: start=0, step=1, limit=4
    $region2: #{tpu_custom_call.1} parent=1 // loop_pre_header
      _
    $region3: #{tpu_custom_call.1} parent=1 // loop_header
      %s13 = sphi 0, %s17
      %p14 = scmp.ge.s32.totalorder %s13, 4
      %s23 = sphi 0, %s25
      %s26 = sphi 0, %s23
      %s27 = sphi 0, %s26
      %s43 = sphi 0, %s27
      %s49 = sphi 0, %s51
      %s52 = sphi 0, %s49
      %s53 = sphi 0, %s52
      %s69 = sphi 0, %s53
    $region4: #{tpu_custom_call.1} parent=1 // loop_header_branch
      %16 = sbr.rel (%p14) target = $region8
    $region5: #{tpu_custom_call.1} parent=1 // loop_body
      %s18 = ssub.s32 %s13, 1
      %s19 = ssub.s32 %s13, 2
      %s20 = sadd.s32 %s13, 1
      %s21 = ssub.s32 %s13, %s20
      %p22 = scmp.eq.s32.totalorder %s21, 0
      %s24 = sadd.s32 %s23, 1
      %s25 = scalar_select %p22, %s23, %s24
      %p28 = pneg %p22
      %p29 = scmp.eq.s32.totalorder %s13, 1
      %p30 = por %p28, %p29
      %p31 = scmp.ne.s32.totalorder %s23, %s26
      %p32 = scmp.eq.s32.totalorder %s13, 0
      %p33 = por %p31, %p32
      %p34 = scmp.ne.s32.totalorder %s23, %s26
      %p35 = scmp.eq.s32.totalorder %s18, 1
      %p36 = por %p34, %p35
      %p37 = scmp.ne.s32.totalorder %s26, %s27
      %p38 = scmp.eq.s32.totalorder %s18, 0
      %p39 = por %p37, %p38
      %p40 = scmp.ne.s32.totalorder %s26, %s27
      %p41 = scmp.eq.s32.totalorder %s19, 1
      %p42 = por %p40, %p41
      %p44 = scmp.ne.s32.totalorder %s27, %s43
      %p45 = scmp.eq.s32.totalorder %s19, 0
      %p46 = por %p44, %p45
      %s47 = ssub.s32 %s13, %s20
      %p48 = scmp.eq.s32.totalorder %s47, 0
      %s50 = sadd.s32 %s49, 1
      %s51 = scalar_select %p48, %s49, %s50
      %p54 = pneg %p48
      %p55 = scmp.eq.s32.totalorder %s13, 1
      %p56 = por %p54, %p55
      %p57 = scmp.ne.s32.totalorder %s49, %s52
      %p58 = scmp.eq.s32.totalorder %s13, 0
      %p59 = por %p57, %p58
      %p60 = scmp.ne.s32.totalorder %s49, %s52
      %p61 = scmp.eq.s32.totalorder %s18, 1
      %p62 = por %p60, %p61
      %p63 = scmp.ne.s32.totalorder %s52, %s53
      %p64 = scmp.eq.s32.totalorder %s18, 0
      %p65 = por %p63, %p64
      %p66 = scmp.ne.s32.totalorder %s52, %s53
      %p67 = scmp.eq.s32.totalorder %s19, 1
      %p68 = por %p66, %p67
      %p70 = scmp.ne.s32.totalorder %s53, %s69
      %p71 = scmp.eq.s32.totalorder %s19, 0
      %p72 = por %p70, %p71
      %p73 = scmp.le.s32.totalorder 1, %s13
      %p74 = scmp.lt.s32.totalorder %s13, 3
      %p75 = pnand %p73, %p74
      %p76 = pneg %p75
      // Predicated region
      $region9: #{tpu_custom_call.1} parent=5 // pred_check
        _
      $region10: #{tpu_custom_call.1} parent=5 // pred_check_branch
        %78 = sbr.rel (%p75) target = $region12
      $region11: #{tpu_custom_call.1} parent=5 // pred_region
        %s79 = ssub.s32 %s13, 1
      $region12: #{tpu_custom_call.1} parent=5 // pred_fallthru
        _
      %p80 = scmp.lt.s32.totalorder %s13, 2
      // Predicated region
      $region13: #{tpu_custom_call.1} parent=5 // pred_check
        %p81 = pneg %p80
      $region14: #{tpu_custom_call.1} parent=5 // pred_check_branch
        %83 = sbr.rel (%p81) target = $region16
      $region15: #{tpu_custom_call.1} parent=5 // pred_region
        // Predicated region
        $region17: #{tpu_custom_call.1} parent=15 // pred_check
          %p84 = pneg %p33
        $region18: #{tpu_custom_call.1} parent=15 // pred_check_branch
          %86 = sbr.rel (%p84) target = $region20
        $region19: #{tpu_custom_call.1} parent=15 // pred_region
          %s87 = sand.u32 %s23, 1
          %s88 = scalar_lea.sflag [#allocation5], %s87
          %s89 = sand.u32 %s23, 1
          %s90 = smul.addr %s89, 32
          %s91 = scalar_lea.vmem [#allocation4], %s90
          %s92 = smul.u32 2, %s13
          %94 = vsyncadd %s88, 0
          %s95 = smul.addr %s92, 2
          %s96 = smul.addr %s95, 8
          %s97 = scalar_lea.hbm %s0, %s96
          %s98 = sshll.u32 %s97, 4
          %s99 = int_to_ptr.hbm [resolvable:$true] %s98
          %s100 = sshll.u32 %s91, 4
          %s101 = int_to_ptr.vmem [resolvable:$true] %s100
          %106 = dma.hbm_to_vmem [thread:$0]  %s99, 512, %s101, %s88, 128, 128, 8
        $region20: #{tpu_custom_call.1} parent=15 // pred_fallthru
          _
      $region16: #{tpu_custom_call.1} parent=5 // pred_fallthru
        _
      %p107 = scmp.le.s32.totalorder 1, %s13
      %p108 = scmp.lt.s32.totalorder %s13, 3
      %p109 = pnand %p107, %p108
      %p110 = pneg %p109
      // Predicated region
      $region21: #{tpu_custom_call.1} parent=5 // pred_check
        _
      $region22: #{tpu_custom_call.1} parent=5 // pred_check_branch
        %112 = sbr.rel (%p109) target = $region24
      $region23: #{tpu_custom_call.1} parent=5 // pred_region
        %s113 = ssub.s32 %s13, 1
        %s114 = sand.u32 %s26, 1
        %s115 = scalar_lea.sflag [#allocation5], %s114
        %s116 = sand.u32 %s26, 1
        %s117 = smul.addr %s116, 32
        %s118 = scalar_lea.vmem [#allocation4], %s117
        // Predicated region
        $region25: #{tpu_custom_call.1} parent=23 // pred_check
          %p119 = pneg %p39
        $region26: #{tpu_custom_call.1} parent=23 // pred_check_branch
          %121 = sbr.rel (%p119) target = $region28
        $region27: #{tpu_custom_call.1} parent=23 // pred_region
          %123 = dma.done %s115, 512
        $region28: #{tpu_custom_call.1} parent=23 // pred_fallthru
          _
        %s124 = sand.u32 %s26, 1
        %s125 = scalar_lea.sflag [#allocation5], %s124
        %s126 = sand.u32 %s26, 1
        %s127 = smul.addr %s126, 32
        %s128 = scalar_lea.vmem [#allocation4], %s127
        %p129 = pneg %p39
        %p130 = pneg %p36
        %p131 = pneg %p65
        %p132 = pneg %p62
        %s133 = sand.u32 %s52, 1
        %s134 = scalar_lea.sflag [#allocation6], %s133
        %s135 = sand.u32 %s52, 1
        %s136 = smul.addr %s135, 32
        %s137 = scalar_lea.vmem [#allocation7], %s136
        %s138 = smul.u32 2, %s18
        %s139 = smul.u32 2, %s18
        %v140 = vld [vmem:[%s118] sm:$0xff]
        %v141 = vld [vmem:[%s118 + $0x8] sm:$0xff]
        %v142 = vld [vmem:[%s118 + $0x10] sm:$0xff]
        %v143 = vld [vmem:[%s118 + $0x18] sm:$0xff]
        %v146 = vrot.slane %v140, 5
        %v147 = vrot.slane %v142, 5
        %v150 = vrot.slane %v140, 3
        %v151 = vrot.slane %v142, 3
        %v154 = vrot.slane %v140, 1
        %v155 = vrot.slane %v142, 1
        %v158 = vrot.slane %v140, 7
        %v159 = vrot.slane %v142, 7
        %vm164 = vcmask 1044480
        %v165 = vrot.slane %v141, 3
        %v166 = vsel %vm164, %v150, %v165
        %v167 = vrot.slane %v143, 3
        %v168 = vsel %vm164, %v151, %v167
        %v173 = vrot.slane %v141, 1
        %v174 = vrot.slane %v143, 1
        %v177 = vrot.slane %v141, 7
        %v178 = vrot.slane %v143, 7
        %v181 = vrot.slane %v141, 5
        %v182 = vrot.slane %v143, 5
        %vm185 = vcmask 1040384
        %v186 = vsel %vm185, %v146, %v150
        %v187 = vsel %vm185, %v147, %v151
        %vm188 = vcmask 1041408
        %v189 = vsel %vm188, %v186, %v154
        %v190 = vsel %vm188, %v187, %v155
        %vm191 = vcmask 1042432
        %v192 = vsel %vm191, %v189, %v158
        %v193 = vsel %vm191, %v190, %v159
        %vm194 = vcmask 1043456
        %v195 = vsel %vm194, %v192, %v146
        %v196 = vsel %vm194, %v193, %v147
        %v197 = vsel %vm164, %v195, %v150
        %v198 = vsel %vm164, %v196, %v151
        %v199 = vsel %vm164, %v165, %v173
        %v200 = vsel %vm164, %v167, %v174
        %vm201 = vcmask 1045504
        %v202 = vsel %vm201, %v199, %v177
        %v203 = vsel %vm201, %v200, %v178
        %vm204 = vcmask 1046528
        %v205 = vsel %vm204, %v202, %v181
        %v206 = vsel %vm204, %v203, %v182
        %v207 = vsel %vm185, %v165, %v173
        %v208 = vsel %vm185, %v167, %v174
        %vm209 = vcmask 130048
        %210 = vst.msk [vmem:[#allocation2 + $0x8] sm:$0xff] %vm209, %v197
        %211 = vst.msk [vmem:[#allocation2 + $0x18] sm:$0xff] %vm209, %v166
        %212 = vst.msk [vmem:[#allocation2 + $0x28] sm:$0xff] %vm209, %v205
        %vm213 = vcmask 123904
        %214 = vst.msk [vmem:[#allocation2 + $0x38] sm:$0x3] %vm213, %v207
        %215 = vst.msk [vmem:[#allocation2 + $0x48] sm:$0xff] %vm209, %v198
        %216 = vst.msk [vmem:[#allocation2 + $0x58] sm:$0xff] %vm209, %v168
        %217 = vst.msk [vmem:[#allocation2 + $0x68] sm:$0xff] %vm209, %v206
        %218 = vst.msk [vmem:[#allocation2 + $0x78] sm:$0x3] %vm213, %v208
        %225 = vrot.lane.b32.xlu0 %v197, 123
        %v226 = vpop.permute.xlu0 %225
        %227 = vrot.lane.b32.xlu0 %v166, 123
        %v228 = vpop.permute.xlu0 %227
        %229 = vrot.lane.b32.xlu0 %v205, 123
        %v230 = vpop.permute.xlu0 %229
        %231 = vrot.lane.b32.xlu0 %v207, 123
        %v232 = vpop.permute.xlu0 %231
        %233 = vrot.lane.b32.xlu0 %v198, 123
        %v234 = vpop.permute.xlu0 %233
        %235 = vrot.lane.b32.xlu0 %v168, 123
        %v236 = vpop.permute.xlu0 %235
        %237 = vrot.lane.b32.xlu0 %v206, 123
        %v238 = vpop.permute.xlu0 %237
        %239 = vrot.lane.b32.xlu0 %v208, 123
        %v240 = vpop.permute.xlu0 %239
        %249 = vrot.lane.b32.xlu0 %v197, 125
        %v250 = vpop.permute.xlu0 %249
        %251 = vrot.lane.b32.xlu0 %v166, 125
        %v252 = vpop.permute.xlu0 %251
        %253 = vrot.lane.b32.xlu0 %v205, 125
        %v254 = vpop.permute.xlu0 %253
        %255 = vrot.lane.b32.xlu0 %v207, 125
        %v256 = vpop.permute.xlu0 %255
        %257 = vrot.lane.b32.xlu0 %v198, 125
        %v258 = vpop.permute.xlu0 %257
        %259 = vrot.lane.b32.xlu0 %v168, 125
        %v260 = vpop.permute.xlu0 %259
        %261 = vrot.lane.b32.xlu0 %v206, 125
        %v262 = vpop.permute.xlu0 %261
        %263 = vrot.lane.b32.xlu0 %v208, 125
        %v264 = vpop.permute.xlu0 %263
        %273 = vrot.lane.b32.xlu0 %v197, 127
        %v274 = vpop.permute.xlu0 %273
        %275 = vrot.lane.b32.xlu0 %v166, 127
        %v276 = vpop.permute.xlu0 %275
        %277 = vrot.lane.b32.xlu0 %v205, 127
        %v278 = vpop.permute.xlu0 %277
        %279 = vrot.lane.b32.xlu0 %v207, 127
        %v280 = vpop.permute.xlu0 %279
        %281 = vrot.lane.b32.xlu0 %v198, 127
        %v282 = vpop.permute.xlu0 %281
        %283 = vrot.lane.b32.xlu0 %v168, 127
        %v284 = vpop.permute.xlu0 %283
        %285 = vrot.lane.b32.xlu0 %v206, 127
        %v286 = vpop.permute.xlu0 %285
        %287 = vrot.lane.b32.xlu0 %v208, 127
        %v288 = vpop.permute.xlu0 %287
        %297 = vrot.lane.b32.xlu0 %v197, 1
        %v298 = vpop.permute.xlu0 %297
        %299 = vrot.lane.b32.xlu0 %v166, 1
        %v300 = vpop.permute.xlu0 %299
        %301 = vrot.lane.b32.xlu0 %v205, 1
        %v302 = vpop.permute.xlu0 %301
        %303 = vrot.lane.b32.xlu0 %v207, 1
        %v304 = vpop.permute.xlu0 %303
        %305 = vrot.lane.b32.xlu0 %v198, 1
        %v306 = vpop.permute.xlu0 %305
        %307 = vrot.lane.b32.xlu0 %v168, 1
        %v308 = vpop.permute.xlu0 %307
        %309 = vrot.lane.b32.xlu0 %v206, 1
        %v310 = vpop.permute.xlu0 %309
        %311 = vrot.lane.b32.xlu0 %v208, 1
        %v312 = vpop.permute.xlu0 %311
        %321 = vrot.lane.b32.xlu0 %v197, 3
        %v322 = vpop.permute.xlu0 %321
        %323 = vrot.lane.b32.xlu0 %v166, 3
        %v324 = vpop.permute.xlu0 %323
        %325 = vrot.lane.b32.xlu0 %v205, 3
        %v326 = vpop.permute.xlu0 %325
        %327 = vrot.lane.b32.xlu0 %v207, 3
        %v328 = vpop.permute.xlu0 %327
        %329 = vrot.lane.b32.xlu0 %v198, 3
        %v330 = vpop.permute.xlu0 %329
        %331 = vrot.lane.b32.xlu0 %v168, 3
        %v332 = vpop.permute.xlu0 %331
        %333 = vrot.lane.b32.xlu0 %v206, 3
        %v334 = vpop.permute.xlu0 %333
        %335 = vrot.lane.b32.xlu0 %v208, 3
        %v336 = vpop.permute.xlu0 %335
        %vm345 = vcmask 7168
        %v346 = vsel %vm345, %v226, %v250
        %v347 = vsel %vm345, %v228, %v252
        %v348 = vsel %vm345, %v230, %v254
        %v349 = vsel %vm345, %v232, %v256
        %v350 = vsel %vm345, %v234, %v258
        %v351 = vsel %vm345, %v236, %v260
        %v352 = vsel %vm345, %v238, %v262
        %v353 = vsel %vm345, %v240, %v264
        %vm354 = vcmask 15360
        %v355 = vsel %vm354, %v346, %v274
        %v356 = vsel %vm354, %v347, %v276
        %v357 = vsel %vm354, %v348, %v278
        %v358 = vsel %vm354, %v349, %v280
        %v359 = vsel %vm354, %v350, %v282
        %v360 = vsel %vm354, %v351, %v284
        %v361 = vsel %vm354, %v352, %v286
        %v362 = vsel %vm354, %v353, %v288
        %vm363 = vcmask 23552
        %v364 = vsel %vm363, %v355, %v298
        %v365 = vsel %vm363, %v356, %v300
        %v366 = vsel %vm363, %v357, %v302
        %v367 = vsel %vm363, %v358, %v304
        %v368 = vsel %vm363, %v359, %v306
        %v369 = vsel %vm363, %v360, %v308
        %v370 = vsel %vm363, %v361, %v310
        %v371 = vsel %vm363, %v362, %v312
        %vm372 = vcmask 31744
        %v373 = vsel %vm372, %v364, %v322
        %v374 = vsel %vm372, %v365, %v324
        %v375 = vsel %vm372, %v366, %v326
        %v376 = vsel %vm372, %v367, %v328
        %v377 = vsel %vm372, %v368, %v330
        %v378 = vsel %vm372, %v369, %v332
        %v379 = vsel %vm372, %v370, %v334
        %v380 = vsel %vm372, %v371, %v336
        %381 = vrot.lane.b32.xlu0 %v197, 114
        %v382 = vpop.permute.xlu0 %381
        %383 = vrot.lane.b32.xlu0 %v166, 114
        %v384 = vpop.permute.xlu0 %383
        %385 = vrot.lane.b32.xlu0 %v205, 114
        %v386 = vpop.permute.xlu0 %385
        %387 = vrot.lane.b32.xlu0 %v207, 114
        %v388 = vpop.permute.xlu0 %387
        %389 = vrot.lane.b32.xlu0 %v198, 114
        %v390 = vpop.permute.xlu0 %389
        %391 = vrot.lane.b32.xlu0 %v168, 114
        %v392 = vpop.permute.xlu0 %391
        %393 = vrot.lane.b32.xlu0 %v206, 114
        %v394 = vpop.permute.xlu0 %393
        %395 = vrot.lane.b32.xlu0 %v208, 114
        %v396 = vpop.permute.xlu0 %395
        %405 = vrot.lane.b32.xlu0 %v197, 116
        %v406 = vpop.permute.xlu0 %405
        %407 = vrot.lane.b32.xlu0 %v166, 116
        %v408 = vpop.permute.xlu0 %407
        %409 = vrot.lane.b32.xlu0 %v205, 116
        %v410 = vpop.permute.xlu0 %409
        %411 = vrot.lane.b32.xlu0 %v207, 116
        %v412 = vpop.permute.xlu0 %411
        %413 = vrot.lane.b32.xlu0 %v198, 116
        %v414 = vpop.permute.xlu0 %413
        %415 = vrot.lane.b32.xlu0 %v168, 116
        %v416 = vpop.permute.xlu0 %415
        %417 = vrot.lane.b32.xlu0 %v206, 116
        %v418 = vpop.permute.xlu0 %417
        %419 = vrot.lane.b32.xlu0 %v208, 116
        %v420 = vpop.permute.xlu0 %419
        %429 = vrot.lane.b32.xlu0 %v197, 118
        %v430 = vpop.permute.xlu0 %429
        %431 = vrot.lane.b32.xlu0 %v166, 118
        %v432 = vpop.permute.xlu0 %431
        %433 = vrot.lane.b32.xlu0 %v205, 118
        %v434 = vpop.permute.xlu0 %433
        %435 = vrot.lane.b32.xlu0 %v207, 118
        %v436 = vpop.permute.xlu0 %435
        %437 = vrot.lane.b32.xlu0 %v198, 118
        %v438 = vpop.permute.xlu0 %437
        %439 = vrot.lane.b32.xlu0 %v168, 118
        %v440 = vpop.permute.xlu0 %439
        %441 = vrot.lane.b32.xlu0 %v206, 118
        %v442 = vpop.permute.xlu0 %441
        %443 = vrot.lane.b32.xlu0 %v208, 118
        %v444 = vpop.permute.xlu0 %443
        %453 = vrot.lane.b32.xlu0 %v197, 120
        %v454 = vpop.permute.xlu0 %453
        %455 = vrot.lane.b32.xlu0 %v166, 120
        %v456 = vpop.permute.xlu0 %455
        %457 = vrot.lane.b32.xlu0 %v205, 120
        %v458 = vpop.permute.xlu0 %457
        %459 = vrot.lane.b32.xlu0 %v207, 120
        %v460 = vpop.permute.xlu0 %459
        %461 = vrot.lane.b32.xlu0 %v198, 120
        %v462 = vpop.permute.xlu0 %461
        %463 = vrot.lane.b32.xlu0 %v168, 120
        %v464 = vpop.permute.xlu0 %463
        %465 = vrot.lane.b32.xlu0 %v206, 120
        %v466 = vpop.permute.xlu0 %465
        %467 = vrot.lane.b32.xlu0 %v208, 120
        %v468 = vpop.permute.xlu0 %467
        %477 = vrot.lane.b32.xlu0 %v197, 122
        %v478 = vpop.permute.xlu0 %477
        %479 = vrot.lane.b32.xlu0 %v166, 122
        %v480 = vpop.permute.xlu0 %479
        %481 = vrot.lane.b32.xlu0 %v205, 122
        %v482 = vpop.permute.xlu0 %481
        %483 = vrot.lane.b32.xlu0 %v207, 122
        %v484 = vpop.permute.xlu0 %483
        %485 = vrot.lane.b32.xlu0 %v198, 122
        %v486 = vpop.permute.xlu0 %485
        %487 = vrot.lane.b32.xlu0 %v168, 122
        %v488 = vpop.permute.xlu0 %487
        %489 = vrot.lane.b32.xlu0 %v206, 122
        %v490 = vpop.permute.xlu0 %489
        %491 = vrot.lane.b32.xlu0 %v208, 122
        %v492 = vpop.permute.xlu0 %491
        %v501 = vsel %vm345, %v382, %v406
        %v502 = vsel %vm345, %v384, %v408
        %v503 = vsel %vm345, %v386, %v410
        %v504 = vsel %vm345, %v388, %v412
        %v505 = vsel %vm345, %v390, %v414
        %v506 = vsel %vm345, %v392, %v416
        %v507 = vsel %vm345, %v394, %v418
        %v508 = vsel %vm345, %v396, %v420
        %v509 = vsel %vm354, %v501, %v430
        %v510 = vsel %vm354, %v502, %v432
        %v511 = vsel %vm354, %v503, %v434
        %v512 = vsel %vm354, %v504, %v436
        %v513 = vsel %vm354, %v505, %v438
        %v514 = vsel %vm354, %v506, %v440
        %v515 = vsel %vm354, %v507, %v442
        %v516 = vsel %vm354, %v508, %v444
        %v517 = vsel %vm363, %v509, %v454
        %v518 = vsel %vm363, %v510, %v456
        %v519 = vsel %vm363, %v511, %v458
        %v520 = vsel %vm363, %v512, %v460
        %v521 = vsel %vm363, %v513, %v462
        %v522 = vsel %vm363, %v514, %v464
        %v523 = vsel %vm363, %v515, %v466
        %v524 = vsel %vm363, %v516, %v468
        %v525 = vsel %vm372, %v517, %v478
        %v526 = vsel %vm372, %v518, %v480
        %v527 = vsel %vm372, %v519, %v482
        %v528 = vsel %vm372, %v520, %v484
        %v529 = vsel %vm372, %v521, %v486
        %v530 = vsel %vm372, %v522, %v488
        %v531 = vsel %vm372, %v523, %v490
        %v532 = vsel %vm372, %v524, %v492
        %541 = vrot.lane.b32.xlu0 %v373, 123
        %v542 = vpop.permute.xlu0 %541
        %543 = vrot.lane.b32.xlu0 %v374, 123
        %v544 = vpop.permute.xlu0 %543
        %545 = vrot.lane.b32.xlu0 %v375, 123
        %v546 = vpop.permute.xlu0 %545
        %547 = vrot.lane.b32.xlu0 %v376, 123
        %v548 = vpop.permute.xlu0 %547
        %549 = vrot.lane.b32.xlu0 %v377, 123
        %v550 = vpop.permute.xlu0 %549
        %551 = vrot.lane.b32.xlu0 %v378, 123
        %v552 = vpop.permute.xlu0 %551
        %553 = vrot.lane.b32.xlu0 %v379, 123
        %v554 = vpop.permute.xlu0 %553
        %555 = vrot.lane.b32.xlu0 %v380, 123
        %v556 = vpop.permute.xlu0 %555
        %vm565 = vcmask 1048536
        %566 = vst.msk [vmem:[#allocation2] sm:$0xff] %vm565, %v542
        %567 = vst.msk [vmem:[#allocation2 + $0x10] sm:$0xff] %vm565, %v544
        %568 = vst.msk [vmem:[#allocation2 + $0x20] sm:$0xff] %vm565, %v546
        %vm569 = vcmask 1042392
        %570 = vst.msk [vmem:[#allocation2 + $0x30] sm:$0x3] %vm569, %v548
        %571 = vst.msk [vmem:[#allocation2 + $0x40] sm:$0xff] %vm565, %v550
        %572 = vst.msk [vmem:[#allocation2 + $0x50] sm:$0xff] %vm565, %v552
        %573 = vst.msk [vmem:[#allocation2 + $0x60] sm:$0xff] %vm565, %v554
        %574 = vst.msk [vmem:[#allocation2 + $0x70] sm:$0x3] %vm569, %v556
        %583 = vrot.lane.b32.xlu0 %v525, 16
        %v584 = vpop.permute.xlu0 %583
        %585 = vrot.lane.b32.xlu0 %v526, 16
        %v586 = vpop.permute.xlu0 %585
        %587 = vrot.lane.b32.xlu0 %v527, 16
        %v588 = vpop.permute.xlu0 %587
        %589 = vrot.lane.b32.xlu0 %v528, 16
        %v590 = vpop.permute.xlu0 %589
        %591 = vrot.lane.b32.xlu0 %v529, 16
        %v592 = vpop.permute.xlu0 %591
        %593 = vrot.lane.b32.xlu0 %v530, 16
        %v594 = vpop.permute.xlu0 %593
        %595 = vrot.lane.b32.xlu0 %v531, 16
        %v596 = vpop.permute.xlu0 %595
        %597 = vrot.lane.b32.xlu0 %v532, 16
        %v598 = vpop.permute.xlu0 %597
        %vm607 = vcmask 171136
        %608 = vst.msk [vmem:[#allocation2 + $0x8] sm:$0xff] %vm607, %v584
        %609 = vst.msk [vmem:[#allocation2 + $0x18] sm:$0xff] %vm607, %v586
        %610 = vst.msk [vmem:[#allocation2 + $0x28] sm:$0xff] %vm607, %v588
        %vm611 = vcmask 164992
        %612 = vst.msk [vmem:[#allocation2 + $0x38] sm:$0x3] %vm611, %v590
        %613 = vst.msk [vmem:[#allocation2 + $0x48] sm:$0xff] %vm607, %v592
        %614 = vst.msk [vmem:[#allocation2 + $0x58] sm:$0xff] %vm607, %v594
        %615 = vst.msk [vmem:[#allocation2 + $0x68] sm:$0xff] %vm607, %v596
        %616 = vst.msk [vmem:[#allocation2 + $0x78] sm:$0x3] %vm611, %v598
        %v617 = vld [vmem:[#allocation2] sm:$0xff]
        %v618 = vld [vmem:[#allocation2 + $0x8] sm:$0xff]
        %v619 = vld [vmem:[#allocation2 + $0x10] sm:$0xff]
        %v620 = vld [vmem:[#allocation2 + $0x18] sm:$0xff]
        %v621 = vld [vmem:[#allocation2 + $0x20] sm:$0xff]
        %v622 = vld [vmem:[#allocation2 + $0x28] sm:$0xff]
        %v623 = vld [vmem:[#allocation2 + $0x30] sm:$0x3]
        %v624 = vld [vmem:[#allocation2 + $0x38] sm:$0x3]
        %v625 = vld [vmem:[#allocation2 + $0x40] sm:$0xff]
        %v626 = vld [vmem:[#allocation2 + $0x48] sm:$0xff]
        %v627 = vld [vmem:[#allocation2 + $0x50] sm:$0xff]
        %v628 = vld [vmem:[#allocation2 + $0x58] sm:$0xff]
        %v629 = vld [vmem:[#allocation2 + $0x60] sm:$0xff]
        %v630 = vld [vmem:[#allocation2 + $0x68] sm:$0xff]
        %v631 = vld [vmem:[#allocation2 + $0x70] sm:$0x3]
        %v632 = vld [vmem:[#allocation2 + $0x78] sm:$0x3]
        %649 = vrot.lane.b32.xlu0 %v617, 5
        %v650 = vpop.permute.xlu0 %649
        %651 = vrot.lane.b32.xlu0 %v618, 5
        %v652 = vpop.permute.xlu0 %651
        %653 = vrot.lane.b32.xlu0 %v619, 5
        %v654 = vpop.permute.xlu0 %653
        %655 = vrot.lane.b32.xlu0 %v620, 5
        %v656 = vpop.permute.xlu0 %655
        %657 = vrot.lane.b32.xlu0 %v621, 5
        %v658 = vpop.permute.xlu0 %657
        %659 = vrot.lane.b32.xlu0 %v622, 5
        %v660 = vpop.permute.xlu0 %659
        %661 = vrot.lane.b32.xlu0 %v623, 5
        %v662 = vpop.permute.xlu0 %661
        %663 = vrot.lane.b32.xlu0 %v624, 5
        %v664 = vpop.permute.xlu0 %663
        %665 = vrot.lane.b32.xlu0 %v625, 5
        %v666 = vpop.permute.xlu0 %665
        %667 = vrot.lane.b32.xlu0 %v626, 5
        %v668 = vpop.permute.xlu0 %667
        %669 = vrot.lane.b32.xlu0 %v627, 5
        %v670 = vpop.permute.xlu0 %669
        %671 = vrot.lane.b32.xlu0 %v628, 5
        %v672 = vpop.permute.xlu0 %671
        %673 = vrot.lane.b32.xlu0 %v629, 5
        %v674 = vpop.permute.xlu0 %673
        %675 = vrot.lane.b32.xlu0 %v630, 5
        %v676 = vpop.permute.xlu0 %675
        %677 = vrot.lane.b32.xlu0 %v631, 5
        %v678 = vpop.permute.xlu0 %677
        %679 = vrot.lane.b32.xlu0 %v632, 5
        %v680 = vpop.permute.xlu0 %679
        %vm681 = vcmask 39936
        %v682 = vsel %vm681, %v650, %v652
        %v683 = vsel %vm681, %v654, %v656
        %v684 = vsel %vm681, %v658, %v660
        %v685 = vsel %vm681, %v662, %v664
        %v686 = vsel %vm681, %v666, %v668
        %v687 = vsel %vm681, %v670, %v672
        %v688 = vsel %vm681, %v674, %v676
        %v689 = vsel %vm681, %v678, %v680
        %698 = vst.msk [vmem:[#allocation3] sm:$0xff] %vm209, %v682
        %699 = vst.msk [vmem:[#allocation3 + $0x8] sm:$0xff] %vm209, %v683
        %700 = vst.msk [vmem:[#allocation3 + $0x10] sm:$0xff] %vm209, %v684
        %701 = vst.msk [vmem:[#allocation3 + $0x18] sm:$0x3] %vm213, %v685
        %702 = vst.msk [vmem:[#allocation3 + $0x20] sm:$0xff] %vm209, %v686
        %703 = vst.msk [vmem:[#allocation3 + $0x28] sm:$0xff] %vm209, %v687
        %704 = vst.msk [vmem:[#allocation3 + $0x30] sm:$0xff] %vm209, %v688
        %705 = vst.msk [vmem:[#allocation3 + $0x38] sm:$0x3] %vm213, %v689
        %v706 = vld [vmem:[#allocation3 + $0x5] sm:$0xff]
        %v707 = vld [vmem:[#allocation3 + $0xd] sm:$0xff]
        %v708 = vld [vmem:[#allocation3 + $0x25] sm:$0xff]
        %v709 = vld [vmem:[#allocation3 + $0x2d] sm:$0xff]
        %v710 = vmul.f32 %v706, 0.003958638
        %v711 = vmul.f32 %v707, 0.003958638
        %v712 = vmul.f32 %v708, 0.003958638
        %v713 = vmul.f32 %v709, 0.003958638
        %v714 = vadd.f32 %v710, 0.0
        %v715 = vadd.f32 %v711, 0.0
        %v716 = vadd.f32 %v712, 0.0
        %v717 = vadd.f32 %v713, 0.0
        %v718 = vld [vmem:[#allocation2] sm:$0xff]
        %v719 = vld [vmem:[#allocation2 + $0x8] sm:$0xff]
        %v720 = vld [vmem:[#allocation2 + $0x10] sm:$0xff]
        %v721 = vld [vmem:[#allocation2 + $0x18] sm:$0xff]
        %v722 = vld [vmem:[#allocation2 + $0x20] sm:$0xff]
        %v723 = vld [vmem:[#allocation2 + $0x28] sm:$0xff]
        %v724 = vld [vmem:[#allocation2 + $0x30] sm:$0x3]
        %v725 = vld [vmem:[#allocation2 + $0x38] sm:$0x3]
        %v726 = vld [vmem:[#allocation2 + $0x40] sm:$0xff]
        %v727 = vld [vmem:[#allocation2 + $0x48] sm:$0xff]
        %v728 = vld [vmem:[#allocation2 + $0x50] sm:$0xff]
        %v729 = vld [vmem:[#allocation2 + $0x58] sm:$0xff]
        %v730 = vld [vmem:[#allocation2 + $0x60] sm:$0xff]
        %v731 = vld [vmem:[#allocation2 + $0x68] sm:$0xff]
        %v732 = vld [vmem:[#allocation2 + $0x70] sm:$0x3]
        %v733 = vld [vmem:[#allocation2 + $0x78] sm:$0x3]
        %750 = vrot.lane.b32.xlu0 %v718, 4
        %v751 = vpop.permute.xlu0 %750
        %752 = vrot.lane.b32.xlu0 %v719, 4
        %v753 = vpop.permute.xlu0 %752
        %754 = vrot.lane.b32.xlu0 %v720, 4
        %v755 = vpop.permute.xlu0 %754
        %756 = vrot.lane.b32.xlu0 %v721, 4
        %v757 = vpop.permute.xlu0 %756
        %758 = vrot.lane.b32.xlu0 %v722, 4
        %v759 = vpop.permute.xlu0 %758
        %760 = vrot.lane.b32.xlu0 %v723, 4
        %v761 = vpop.permute.xlu0 %760
        %762 = vrot.lane.b32.xlu0 %v724, 4
        %v763 = vpop.permute.xlu0 %762
        %764 = vrot.lane.b32.xlu0 %v725, 4
        %v765 = vpop.permute.xlu0 %764
        %766 = vrot.lane.b32.xlu0 %v726, 4
        %v767 = vpop.permute.xlu0 %766
        %768 = vrot.lane.b32.xlu0 %v727, 4
        %v769 = vpop.permute.xlu0 %768
        %770 = vrot.lane.b32.xlu0 %v728, 4
        %v771 = vpop.permute.xlu0 %770
        %772 = vrot.lane.b32.xlu0 %v729, 4
        %v773 = vpop.permute.xlu0 %772
        %774 = vrot.lane.b32.xlu0 %v730, 4
        %v775 = vpop.permute.xlu0 %774
        %776 = vrot.lane.b32.xlu0 %v731, 4
        %v777 = vpop.permute.xlu0 %776
        %778 = vrot.lane.b32.xlu0 %v732, 4
        %v779 = vpop.permute.xlu0 %778
        %780 = vrot.lane.b32.xlu0 %v733, 4
        %v781 = vpop.permute.xlu0 %780
        %v782 = vsel %vm372, %v751, %v753
        %v783 = vsel %vm372, %v755, %v757
        %v784 = vsel %vm372, %v759, %v761
        %v785 = vsel %vm372, %v763, %v765
        %v786 = vsel %vm372, %v767, %v769
        %v787 = vsel %vm372, %v771, %v773
        %v788 = vsel %vm372, %v775, %v777
        %v789 = vsel %vm372, %v779, %v781
        %798 = vst.msk [vmem:[#allocation3] sm:$0xff] %vm209, %v782
        %799 = vst.msk [vmem:[#allocation3 + $0x8] sm:$0xff] %vm209, %v783
        %800 = vst.msk [vmem:[#allocation3 + $0x10] sm:$0xff] %vm209, %v784
        %801 = vst.msk [vmem:[#allocation3 + $0x18] sm:$0x3] %vm213, %v785
        %802 = vst.msk [vmem:[#allocation3 + $0x20] sm:$0xff] %vm209, %v786
        %803 = vst.msk [vmem:[#allocation3 + $0x28] sm:$0xff] %vm209, %v787
        %804 = vst.msk [vmem:[#allocation3 + $0x30] sm:$0xff] %vm209, %v788
        %805 = vst.msk [vmem:[#allocation3 + $0x38] sm:$0x3] %vm213, %v789
        %v806 = vld [vmem:[#allocation3 + $0x2] sm:$0xff]
        %v807 = vld [vmem:[#allocation3 + $0xa] sm:$0xff]
        %v808 = vld [vmem:[#allocation3 + $0x22] sm:$0xff]
        %v809 = vld [vmem:[#allocation3 + $0x2a] sm:$0xff]
        %v810 = vmul.f32 %v806, 0.003958638
        %v811 = vmul.f32 %v807, 0.003958638
        %v812 = vmul.f32 %v808, 0.003958638
        %v813 = vmul.f32 %v809, 0.003958638
        %v814 = vadd.f32 %v810, 0.0
        %v815 = vadd.f32 %v811, 0.0
        %v816 = vadd.f32 %v812, 0.0
        %v817 = vadd.f32 %v813, 0.0
        %v818 = vld [vmem:[#allocation3 + $0x3] sm:$0xff]
        %v819 = vld [vmem:[#allocation3 + $0xb] sm:$0xff]
        %v820 = vld [vmem:[#allocation3 + $0x23] sm:$0xff]
        %v821 = vld [vmem:[#allocation3 + $0x2b] sm:$0xff]
        %v822 = vmul.f32 %v818, 0.003958638
        %v823 = vmul.f32 %v819, 0.003958638
        %v824 = vmul.f32 %v820, 0.003958638
        %v825 = vmul.f32 %v821, 0.003958638
        %v826 = vadd.f32 %v822, 0.0
        %v827 = vadd.f32 %v823, 0.0
        %v828 = vadd.f32 %v824, 0.0
        %v829 = vadd.f32 %v825, 0.0
        %v830 = vld [vmem:[#allocation3 + $0x4] sm:$0xff]
        %v831 = vld [vmem:[#allocation3 + $0xc] sm:$0xff]
        %v832 = vld [vmem:[#allocation3 + $0x24] sm:$0xff]
        %v833 = vld [vmem:[#allocation3 + $0x2c] sm:$0xff]
        %v834 = vmul.f32 %v830, 0.003958638
        %v835 = vmul.f32 %v831, 0.003958638
        %v836 = vmul.f32 %v832, 0.003958638
        %v837 = vmul.f32 %v833, 0.003958638
        %v838 = vadd.f32 %v834, 0.0
        %v839 = vadd.f32 %v835, 0.0
        %v840 = vadd.f32 %v836, 0.0
        %v841 = vadd.f32 %v837, 0.0
        %v842 = vld [vmem:[#allocation3 + $0x5] sm:$0xff]
        %v843 = vld [vmem:[#allocation3 + $0xd] sm:$0xff]
        %v844 = vld [vmem:[#allocation3 + $0x25] sm:$0xff]
        %v845 = vld [vmem:[#allocation3 + $0x2d] sm:$0xff]
        %v846 = vmul.f32 %v842, 0.01782293
        %v847 = vmul.f32 %v843, 0.01782293
        %v848 = vmul.f32 %v844, 0.01782293
        %v849 = vmul.f32 %v845, 0.01782293
        %v850 = vadd.f32 %v714, %v846
        %v851 = vadd.f32 %v715, %v847
        %v852 = vadd.f32 %v716, %v848
        %v853 = vadd.f32 %v717, %v849
        %v854 = vld [vmem:[#allocation3 + $0x6] sm:$0xff]
        %v855 = vld [vmem:[#allocation3 + $0xe] sm:$0xff]
        %v856 = vld [vmem:[#allocation3 + $0x26] sm:$0xff]
        %v857 = vld [vmem:[#allocation3 + $0x2e] sm:$0xff]
        %v858 = vmul.f32 %v854, 0.003958638
        %v859 = vmul.f32 %v855, 0.003958638
        %v860 = vmul.f32 %v856, 0.003958638
        %v861 = vmul.f32 %v857, 0.003958638
        %v862 = vadd.f32 %v814, %v858
        %v863 = vadd.f32 %v815, %v859
        %v864 = vadd.f32 %v816, %v860
        %v865 = vadd.f32 %v817, %v861
        %v866 = vld [vmem:[#allocation3 + $0x7] sm:$0xff]
        %v867 = vld [vmem:[#allocation3 + $0xf] sm:$0xff]
        %v868 = vld [vmem:[#allocation3 + $0x27] sm:$0xff]
        %v869 = vld [vmem:[#allocation3 + $0x2f] sm:$0xff]
        %v870 = vmul.f32 %v866, 0.003958638
        %v871 = vmul.f32 %v867, 0.003958638
        %v872 = vmul.f32 %v868, 0.003958638
        %v873 = vmul.f32 %v869, 0.003958638
        %v874 = vadd.f32 %v826, %v870
        %v875 = vadd.f32 %v827, %v871
        %v876 = vadd.f32 %v828, %v872
        %v877 = vadd.f32 %v829, %v873
        %v878 = vld [vmem:[#allocation3 + $0x8] sm:$0xff]
        %v879 = vld [vmem:[#allocation3 + $0x10] sm:$0xff]
        %v880 = vld [vmem:[#allocation3 + $0x28] sm:$0xff]
        %v881 = vld [vmem:[#allocation3 + $0x30] sm:$0xff]
        %v882 = vmul.f32 %v878, 0.003958638
        %v883 = vmul.f32 %v879, 0.003958638
        %v884 = vmul.f32 %v880, 0.003958638
        %v885 = vmul.f32 %v881, 0.003958638
        %v886 = vadd.f32 %v838, %v882
        %v887 = vadd.f32 %v839, %v883
        %v888 = vadd.f32 %v840, %v884
        %v889 = vadd.f32 %v841, %v885
        %v890 = vld [vmem:[#allocation2] sm:$0xff]
        %v891 = vld [vmem:[#allocation2 + $0x8] sm:$0xff]
        %v892 = vld [vmem:[#allocation2 + $0x10] sm:$0xff]
        %v893 = vld [vmem:[#allocation2 + $0x18] sm:$0xff]
        %v894 = vld [vmem:[#allocation2 + $0x20] sm:$0xff]
        %v895 = vld [vmem:[#allocation2 + $0x28] sm:$0xff]
        %v896 = vld [vmem:[#allocation2 + $0x30] sm:$0x3]
        %v897 = vld [vmem:[#allocation2 + $0x38] sm:$0x3]
        %v898 = vld [vmem:[#allocation2 + $0x40] sm:$0xff]
        %v899 = vld [vmem:[#allocation2 + $0x48] sm:$0xff]
        %v900 = vld [vmem:[#allocation2 + $0x50] sm:$0xff]
        %v901 = vld [vmem:[#allocation2 + $0x58] sm:$0xff]
        %v902 = vld [vmem:[#allocation2 + $0x60] sm:$0xff]
        %v903 = vld [vmem:[#allocation2 + $0x68] sm:$0xff]
        %v904 = vld [vmem:[#allocation2 + $0x70] sm:$0x3]
        %v905 = vld [vmem:[#allocation2 + $0x78] sm:$0x3]
        %922 = vrot.lane.b32.xlu0 %v890, 3
        %v923 = vpop.permute.xlu0 %922
        %924 = vrot.lane.b32.xlu0 %v891, 3
        %v925 = vpop.permute.xlu0 %924
        %926 = vrot.lane.b32.xlu0 %v892, 3
        %v927 = vpop.permute.xlu0 %926
        %928 = vrot.lane.b32.xlu0 %v893, 3
        %v929 = vpop.permute.xlu0 %928
        %930 = vrot.lane.b32.xlu0 %v894, 3
        %v931 = vpop.permute.xlu0 %930
        %932 = vrot.lane.b32.xlu0 %v895, 3
        %v933 = vpop.permute.xlu0 %932
        %934 = vrot.lane.b32.xlu0 %v896, 3
        %v935 = vpop.permute.xlu0 %934
        %936 = vrot.lane.b32.xlu0 %v897, 3
        %v937 = vpop.permute.xlu0 %936
        %938 = vrot.lane.b32.xlu0 %v898, 3
        %v939 = vpop.permute.xlu0 %938
        %940 = vrot.lane.b32.xlu0 %v899, 3
        %v941 = vpop.permute.xlu0 %940
        %942 = vrot.lane.b32.xlu0 %v900, 3
        %v943 = vpop.permute.xlu0 %942
        %944 = vrot.lane.b32.xlu0 %v901, 3
        %v945 = vpop.permute.xlu0 %944
        %946 = vrot.lane.b32.xlu0 %v902, 3
        %v947 = vpop.permute.xlu0 %946
        %948 = vrot.lane.b32.xlu0 %v903, 3
        %v949 = vpop.permute.xlu0 %948
        %950 = vrot.lane.b32.xlu0 %v904, 3
        %v951 = vpop.permute.xlu0 %950
        %952 = vrot.lane.b32.xlu0 %v905, 3
        %v953 = vpop.permute.xlu0 %952
        %v954 = vsel %vm363, %v923, %v925
        %v955 = vsel %vm363, %v927, %v929
        %v956 = vsel %vm363, %v931, %v933
        %v957 = vsel %vm363, %v935, %v937
        %v958 = vsel %vm363, %v939, %v941
        %v959 = vsel %vm363, %v943, %v945
        %v960 = vsel %vm363, %v947, %v949
        %v961 = vsel %vm363, %v951, %v953
        %970 = vst.msk [vmem:[#allocation3] sm:$0xff] %vm209, %v954
        %971 = vst.msk [vmem:[#allocation3 + $0x8] sm:$0xff] %vm209, %v955
        %972 = vst.msk [vmem:[#allocation3 + $0x10] sm:$0xff] %vm209, %v956
        %973 = vst.msk [vmem:[#allocation3 + $0x18] sm:$0x3] %vm213, %v957
        %974 = vst.msk [vmem:[#allocation3 + $0x20] sm:$0xff] %vm209, %v958
        %975 = vst.msk [vmem:[#allocation3 + $0x28] sm:$0xff] %vm209, %v959
        %976 = vst.msk [vmem:[#allocation3 + $0x30] sm:$0xff] %vm209, %v960
        %977 = vst.msk [vmem:[#allocation3 + $0x38] sm:$0x3] %vm213, %v961
        %v978 = vld [vmem:[#allocation3 + $0x1] sm:$0xff]
        %v979 = vld [vmem:[#allocation3 + $0x9] sm:$0xff]
        %v980 = vld [vmem:[#allocation3 + $0x21] sm:$0xff]
        %v981 = vld [vmem:[#allocation3 + $0x29] sm:$0xff]
        %v982 = vmul.f32 %v978, 0.003958638
        %v983 = vmul.f32 %v979, 0.003958638
        %v984 = vmul.f32 %v980, 0.003958638
        %v985 = vmul.f32 %v981, 0.003958638
        %v986 = vadd.f32 %v850, %v982
        %v987 = vadd.f32 %v851, %v983
        %v988 = vadd.f32 %v852, %v984
        %v989 = vadd.f32 %v853, %v985
        %v990 = vld [vmem:[#allocation3 + $0x2] sm:$0xff]
        %v991 = vld [vmem:[#allocation3 + $0xa] sm:$0xff]
        %v992 = vld [vmem:[#allocation3 + $0x22] sm:$0xff]
        %v993 = vld [vmem:[#allocation3 + $0x2a] sm:$0xff]
        %v994 = vmul.f32 %v990, 0.003958638
        %v995 = vmul.f32 %v991, 0.003958638
        %v996 = vmul.f32 %v992, 0.003958638
        %v997 = vmul.f32 %v993, 0.003958638
        %v998 = vadd.f32 %v862, %v994
        %v999 = vadd.f32 %v863, %v995
        %v1000 = vadd.f32 %v864, %v996
        %v1001 = vadd.f32 %v865, %v997
        %v1002 = vld [vmem:[#allocation3 + $0x3] sm:$0xff]
        %v1003 = vld [vmem:[#allocation3 + $0xb] sm:$0xff]
        %v1004 = vld [vmem:[#allocation3 + $0x23] sm:$0xff]
        %v1005 = vld [vmem:[#allocation3 + $0x2b] sm:$0xff]
        %v1006 = vmul.f32 %v1002, 0.01782293
        %v1007 = vmul.f32 %v1003, 0.01782293
        %v1008 = vmul.f32 %v1004, 0.01782293
        %v1009 = vmul.f32 %v1005, 0.01782293
        %v1010 = vadd.f32 %v874, %v1006
        %v1011 = vadd.f32 %v875, %v1007
        %v1012 = vadd.f32 %v876, %v1008
        %v1013 = vadd.f32 %v877, %v1009
        %v1014 = vld [vmem:[#allocation3 + $0x4] sm:$0xff]
        %v1015 = vld [vmem:[#allocation3 + $0xc] sm:$0xff]
        %v1016 = vld [vmem:[#allocation3 + $0x24] sm:$0xff]
        %v1017 = vld [vmem:[#allocation3 + $0x2c] sm:$0xff]
        %v1018 = vmul.f32 %v1014, 0.01782293
        %v1019 = vmul.f32 %v1015, 0.01782293
        %v1020 = vmul.f32 %v1016, 0.01782293
        %v1021 = vmul.f32 %v1017, 0.01782293
        %v1022 = vadd.f32 %v886, %v1018
        %v1023 = vadd.f32 %v887, %v1019
        %v1024 = vadd.f32 %v888, %v1020
        %v1025 = vadd.f32 %v889, %v1021
        %v1026 = vld [vmem:[#allocation3 + $0x5] sm:$0xff]
        %v1027 = vld [vmem:[#allocation3 + $0xd] sm:$0xff]
        %v1028 = vld [vmem:[#allocation3 + $0x25] sm:$0xff]
        %v1029 = vld [vmem:[#allocation3 + $0x2d] sm:$0xff]
        %v1030 = vmul.f32 %v1026, 0.01782293
        %v1031 = vmul.f32 %v1027, 0.01782293
        %v1032 = vmul.f32 %v1028, 0.01782293
        %v1033 = vmul.f32 %v1029, 0.01782293
        %v1034 = vadd.f32 %v986, %v1030
        %v1035 = vadd.f32 %v987, %v1031
        %v1036 = vadd.f32 %v988, %v1032
        %v1037 = vadd.f32 %v989, %v1033
        %v1038 = vld [vmem:[#allocation3 + $0x6] sm:$0xff]
        %v1039 = vld [vmem:[#allocation3 + $0xe] sm:$0xff]
        %v1040 = vld [vmem:[#allocation3 + $0x26] sm:$0xff]
        %v1041 = vld [vmem:[#allocation3 + $0x2e] sm:$0xff]
        %v1042 = vmul.f32 %v1038, 0.01782293
        %v1043 = vmul.f32 %v1039, 0.01782293
        %v1044 = vmul.f32 %v1040, 0.01782293
        %v1045 = vmul.f32 %v1041, 0.01782293
        %v1046 = vadd.f32 %v998, %v1042
        %v1047 = vadd.f32 %v999, %v1043
        %v1048 = vadd.f32 %v1000, %v1044
        %v1049 = vadd.f32 %v1001, %v1045
        %v1050 = vld [vmem:[#allocation3 + $0x7] sm:$0xff]
        %v1051 = vld [vmem:[#allocation3 + $0xf] sm:$0xff]
        %v1052 = vld [vmem:[#allocation3 + $0x27] sm:$0xff]
        %v1053 = vld [vmem:[#allocation3 + $0x2f] sm:$0xff]
        %v1054 = vmul.f32 %v1050, 0.01782293
        %v1055 = vmul.f32 %v1051, 0.01782293
        %v1056 = vmul.f32 %v1052, 0.01782293
        %v1057 = vmul.f32 %v1053, 0.01782293
        %v1058 = vadd.f32 %v1010, %v1054
        %v1059 = vadd.f32 %v1011, %v1055
        %v1060 = vadd.f32 %v1012, %v1056
        %v1061 = vadd.f32 %v1013, %v1057
        %v1062 = vld [vmem:[#allocation3 + $0x8] sm:$0xff]
        %v1063 = vld [vmem:[#allocation3 + $0x10] sm:$0xff]
        %v1064 = vld [vmem:[#allocation3 + $0x28] sm:$0xff]
        %v1065 = vld [vmem:[#allocation3 + $0x30] sm:$0xff]
        %v1066 = vmul.f32 %v1062, 0.003958638
        %v1067 = vmul.f32 %v1063, 0.003958638
        %v1068 = vmul.f32 %v1064, 0.003958638
        %v1069 = vmul.f32 %v1065, 0.003958638
        %v1070 = vadd.f32 %v1022, %v1066
        %v1071 = vadd.f32 %v1023, %v1067
        %v1072 = vadd.f32 %v1024, %v1068
        %v1073 = vadd.f32 %v1025, %v1069
        %v1074 = vld [vmem:[#allocation3 + $0x11] sm:$0xff]
        %v1075 = vld [vmem:[#allocation3 + $0x31] sm:$0xff]
        %v1076 = vmul.f32 %v1074, 0.003958638
        %v1077 = vmul.f32 %v1075, 0.003958638
        %v1078 = vadd.f32 %v1034, %v983
        %v1079 = vadd.f32 %v1035, %v1076
        %v1080 = vadd.f32 %v1036, %v985
        %v1081 = vadd.f32 %v1037, %v1077
        %v1082 = vld [vmem:[#allocation2] sm:$0xff]
        %v1083 = vld [vmem:[#allocation2 + $0x8] sm:$0xff]
        %v1084 = vld [vmem:[#allocation2 + $0x10] sm:$0xff]
        %v1085 = vld [vmem:[#allocation2 + $0x18] sm:$0xff]
        %v1086 = vld [vmem:[#allocation2 + $0x20] sm:$0xff]
        %v1087 = vld [vmem:[#allocation2 + $0x28] sm:$0xff]
        %v1088 = vld [vmem:[#allocation2 + $0x30] sm:$0x3]
        %v1089 = vld [vmem:[#allocation2 + $0x38] sm:$0x3]
        %v1090 = vld [vmem:[#allocation2 + $0x40] sm:$0xff]
        %v1091 = vld [vmem:[#allocation2 + $0x48] sm:$0xff]
        %v1092 = vld [vmem:[#allocation2 + $0x50] sm:$0xff]
        %v1093 = vld [vmem:[#allocation2 + $0x58] sm:$0xff]
        %v1094 = vld [vmem:[#allocation2 + $0x60] sm:$0xff]
        %v1095 = vld [vmem:[#allocation2 + $0x68] sm:$0xff]
        %v1096 = vld [vmem:[#allocation2 + $0x70] sm:$0x3]
        %v1097 = vld [vmem:[#allocation2 + $0x78] sm:$0x3]
        %1114 = vrot.lane.b32.xlu0 %v1082, 2
        %v1115 = vpop.permute.xlu0 %1114
        %1116 = vrot.lane.b32.xlu0 %v1083, 2
        %v1117 = vpop.permute.xlu0 %1116
        %1118 = vrot.lane.b32.xlu0 %v1084, 2
        %v1119 = vpop.permute.xlu0 %1118
        %1120 = vrot.lane.b32.xlu0 %v1085, 2
        %v1121 = vpop.permute.xlu0 %1120
        %1122 = vrot.lane.b32.xlu0 %v1086, 2
        %v1123 = vpop.permute.xlu0 %1122
        %1124 = vrot.lane.b32.xlu0 %v1087, 2
        %v1125 = vpop.permute.xlu0 %1124
        %1126 = vrot.lane.b32.xlu0 %v1088, 2
        %v1127 = vpop.permute.xlu0 %1126
        %1128 = vrot.lane.b32.xlu0 %v1089, 2
        %v1129 = vpop.permute.xlu0 %1128
        %1130 = vrot.lane.b32.xlu0 %v1090, 2
        %v1131 = vpop.permute.xlu0 %1130
        %1132 = vrot.lane.b32.xlu0 %v1091, 2
        %v1133 = vpop.permute.xlu0 %1132
        %1134 = vrot.lane.b32.xlu0 %v1092, 2
        %v1135 = vpop.permute.xlu0 %1134
        %1136 = vrot.lane.b32.xlu0 %v1093, 2
        %v1137 = vpop.permute.xlu0 %1136
        %1138 = vrot.lane.b32.xlu0 %v1094, 2
        %v1139 = vpop.permute.xlu0 %1138
        %1140 = vrot.lane.b32.xlu0 %v1095, 2
        %v1141 = vpop.permute.xlu0 %1140
        %1142 = vrot.lane.b32.xlu0 %v1096, 2
        %v1143 = vpop.permute.xlu0 %1142
        %1144 = vrot.lane.b32.xlu0 %v1097, 2
        %v1145 = vpop.permute.xlu0 %1144
        %v1146 = vsel %vm354, %v1115, %v1117
        %v1147 = vsel %vm354, %v1119, %v1121
        %v1148 = vsel %vm354, %v1123, %v1125
        %v1149 = vsel %vm354, %v1127, %v1129
        %v1150 = vsel %vm354, %v1131, %v1133
        %v1151 = vsel %vm354, %v1135, %v1137
        %v1152 = vsel %vm354, %v1139, %v1141
        %v1153 = vsel %vm354, %v1143, %v1145
        %1162 = vst.msk [vmem:[#allocation3] sm:$0xff] %vm209, %v1146
        %1163 = vst.msk [vmem:[#allocation3 + $0x8] sm:$0xff] %vm209, %v1147
        %1164 = vst.msk [vmem:[#allocation3 + $0x10] sm:$0xff] %vm209, %v1148
        %1165 = vst.msk [vmem:[#allocation3 + $0x18] sm:$0x3] %vm213, %v1149
        %1166 = vst.msk [vmem:[#allocation3 + $0x20] sm:$0xff] %vm209, %v1150
        %1167 = vst.msk [vmem:[#allocation3 + $0x28] sm:$0xff] %vm209, %v1151
        %1168 = vst.msk [vmem:[#allocation3 + $0x30] sm:$0xff] %vm209, %v1152
        %1169 = vst.msk [vmem:[#allocation3 + $0x38] sm:$0x3] %vm213, %v1153
        %v1170 = vld [vmem:[#allocation3 + $0x1] sm:$0xff]
        %v1171 = vld [vmem:[#allocation3 + $0x9] sm:$0xff]
        %v1172 = vld [vmem:[#allocation3 + $0x21] sm:$0xff]
        %v1173 = vld [vmem:[#allocation3 + $0x29] sm:$0xff]
        %v1174 = vmul.f32 %v1170, 0.003958638
        %v1175 = vmul.f32 %v1171, 0.003958638
        %v1176 = vmul.f32 %v1172, 0.003958638
        %v1177 = vmul.f32 %v1173, 0.003958638
        %v1178 = vadd.f32 %v1046, %v1174
        %v1179 = vadd.f32 %v1047, %v1175
        %v1180 = vadd.f32 %v1048, %v1176
        %v1181 = vadd.f32 %v1049, %v1177
        %v1182 = vld [vmem:[#allocation3 + $0x2] sm:$0xff]
        %v1183 = vld [vmem:[#allocation3 + $0xa] sm:$0xff]
        %v1184 = vld [vmem:[#allocation3 + $0x22] sm:$0xff]
        %v1185 = vld [vmem:[#allocation3 + $0x2a] sm:$0xff]
        %v1186 = vmul.f32 %v1182, 0.01782293
        %v1187 = vmul.f32 %v1183, 0.01782293
        %v1188 = vmul.f32 %v1184, 0.01782293
        %v1189 = vmul.f32 %v1185, 0.01782293
        %v1190 = vadd.f32 %v1058, %v1186
        %v1191 = vadd.f32 %v1059, %v1187
        %v1192 = vadd.f32 %v1060, %v1188
        %v1193 = vadd.f32 %v1061, %v1189
        %v1194 = vld [vmem:[#allocation3 + $0x3] sm:$0xff]
        %v1195 = vld [vmem:[#allocation3 + $0xb] sm:$0xff]
        %v1196 = vld [vmem:[#allocation3 + $0x23] sm:$0xff]
        %v1197 = vld [vmem:[#allocation3 + $0x2b] sm:$0xff]
        %v1198 = vmul.f32 %v1194, 0.01782293
        %v1199 = vmul.f32 %v1195, 0.01782293
        %v1200 = vmul.f32 %v1196, 0.01782293
        %v1201 = vmul.f32 %v1197, 0.01782293
        %v1202 = vadd.f32 %v1070, %v1198
        %v1203 = vadd.f32 %v1071, %v1199
        %v1204 = vadd.f32 %v1072, %v1200
        %v1205 = vadd.f32 %v1073, %v1201
        %v1206 = vld [vmem:[#allocation3 + $0x4] sm:$0xff]
        %v1207 = vld [vmem:[#allocation3 + $0xc] sm:$0xff]
        %v1208 = vld [vmem:[#allocation3 + $0x24] sm:$0xff]
        %v1209 = vld [vmem:[#allocation3 + $0x2c] sm:$0xff]
        %v1210 = vmul.f32 %v1206, 0.01782293
        %v1211 = vmul.f32 %v1207, 0.01782293
        %v1212 = vmul.f32 %v1208, 0.01782293
        %v1213 = vmul.f32 %v1209, 0.01782293
        %v1214 = vadd.f32 %v1078, %v1210
        %v1215 = vadd.f32 %v1079, %v1211
        %v1216 = vadd.f32 %v1080, %v1212
        %v1217 = vadd.f32 %v1081, %v1213
        %v1218 = vld [vmem:[#allocation3 + $0x5] sm:$0xff]
        %v1219 = vld [vmem:[#allocation3 + $0xd] sm:$0xff]
        %v1220 = vld [vmem:[#allocation3 + $0x25] sm:$0xff]
        %v1221 = vld [vmem:[#allocation3 + $0x2d] sm:$0xff]
        %v1222 = vmul.f32 %v1218, 0.01782293
        %v1223 = vmul.f32 %v1219, 0.01782293
        %v1224 = vmul.f32 %v1220, 0.01782293
        %v1225 = vmul.f32 %v1221, 0.01782293
        %v1226 = vadd.f32 %v1178, %v1222
        %v1227 = vadd.f32 %v1179, %v1223
        %v1228 = vadd.f32 %v1180, %v1224
        %v1229 = vadd.f32 %v1181, %v1225
        %v1230 = vld [vmem:[#allocation3 + $0x6] sm:$0xff]
        %v1231 = vld [vmem:[#allocation3 + $0xe] sm:$0xff]
        %v1232 = vld [vmem:[#allocation3 + $0x26] sm:$0xff]
        %v1233 = vld [vmem:[#allocation3 + $0x2e] sm:$0xff]
        %v1234 = vmul.f32 %v1230, 0.01782293
        %v1235 = vmul.f32 %v1231, 0.01782293
        %v1236 = vmul.f32 %v1232, 0.01782293
        %v1237 = vmul.f32 %v1233, 0.01782293
        %v1238 = vadd.f32 %v1190, %v1234
        %v1239 = vadd.f32 %v1191, %v1235
        %v1240 = vadd.f32 %v1192, %v1236
        %v1241 = vadd.f32 %v1193, %v1237
        %v1242 = vld [vmem:[#allocation3 + $0x7] sm:$0xff]
        %v1243 = vld [vmem:[#allocation3 + $0xf] sm:$0xff]
        %v1244 = vld [vmem:[#allocation3 + $0x27] sm:$0xff]
        %v1245 = vld [vmem:[#allocation3 + $0x2f] sm:$0xff]
        %v1246 = vmul.f32 %v1242, 0.01782293
        %v1247 = vmul.f32 %v1243, 0.01782293
        %v1248 = vmul.f32 %v1244, 0.01782293
        %v1249 = vmul.f32 %v1245, 0.01782293
        %v1250 = vadd.f32 %v1202, %v1246
        %v1251 = vadd.f32 %v1203, %v1247
        %v1252 = vadd.f32 %v1204, %v1248
        %v1253 = vadd.f32 %v1205, %v1249
        %v1254 = vld [vmem:[#allocation3 + $0x8] sm:$0xff]
        %v1255 = vld [vmem:[#allocation3 + $0x10] sm:$0xff]
        %v1256 = vld [vmem:[#allocation3 + $0x28] sm:$0xff]
        %v1257 = vld [vmem:[#allocation3 + $0x30] sm:$0xff]
        %v1258 = vmul.f32 %v1254, 0.01782293
        %v1259 = vmul.f32 %v1255, 0.01782293
        %v1260 = vmul.f32 %v1256, 0.01782293
        %v1261 = vmul.f32 %v1257, 0.01782293
        %v1262 = vadd.f32 %v1214, %v1258
        %v1263 = vadd.f32 %v1215, %v1259
        %v1264 = vadd.f32 %v1216, %v1260
        %v1265 = vadd.f32 %v1217, %v1261
        %v1266 = vld [vmem:[#allocation3 + $0x11] sm:$0xff]
        %v1267 = vld [vmem:[#allocation3 + $0x31] sm:$0xff]
        %v1268 = vmul.f32 %v1266, 0.003958638
        %v1269 = vmul.f32 %v1267, 0.003958638
        %v1270 = vadd.f32 %v1226, %v1175
        %v1271 = vadd.f32 %v1227, %v1268
        %v1272 = vadd.f32 %v1228, %v1177
        %v1273 = vadd.f32 %v1229, %v1269
        %v1274 = vld [vmem:[#allocation2] sm:$0xff]
        %v1275 = vld [vmem:[#allocation2 + $0x8] sm:$0xff]
        %v1276 = vld [vmem:[#allocation2 + $0x10] sm:$0xff]
        %v1277 = vld [vmem:[#allocation2 + $0x18] sm:$0xff]
        %v1278 = vld [vmem:[#allocation2 + $0x20] sm:$0xff]
        %v1279 = vld [vmem:[#allocation2 + $0x28] sm:$0xff]
        %v1280 = vld [vmem:[#allocation2 + $0x30] sm:$0x3]
        %v1281 = vld [vmem:[#allocation2 + $0x38] sm:$0x3]
        %v1282 = vld [vmem:[#allocation2 + $0x40] sm:$0xff]
        %v1283 = vld [vmem:[#allocation2 + $0x48] sm:$0xff]
        %v1284 = vld [vmem:[#allocation2 + $0x50] sm:$0xff]
        %v1285 = vld [vmem:[#allocation2 + $0x58] sm:$0xff]
        %v1286 = vld [vmem:[#allocation2 + $0x60] sm:$0xff]
        %v1287 = vld [vmem:[#allocation2 + $0x68] sm:$0xff]
        %v1288 = vld [vmem:[#allocation2 + $0x70] sm:$0x3]
        %v1289 = vld [vmem:[#allocation2 + $0x78] sm:$0x3]
        %1306 = vrot.lane.b32.xlu0 %v1274, 1
        %v1307 = vpop.permute.xlu0 %1306
        %1308 = vrot.lane.b32.xlu0 %v1275, 1
        %v1309 = vpop.permute.xlu0 %1308
        %1310 = vrot.lane.b32.xlu0 %v1276, 1
        %v1311 = vpop.permute.xlu0 %1310
        %1312 = vrot.lane.b32.xlu0 %v1277, 1
        %v1313 = vpop.permute.xlu0 %1312
        %1314 = vrot.lane.b32.xlu0 %v1278, 1
        %v1315 = vpop.permute.xlu0 %1314
        %1316 = vrot.lane.b32.xlu0 %v1279, 1
        %v1317 = vpop.permute.xlu0 %1316
        %1318 = vrot.lane.b32.xlu0 %v1280, 1
        %v1319 = vpop.permute.xlu0 %1318
        %1320 = vrot.lane.b32.xlu0 %v1281, 1
        %v1321 = vpop.permute.xlu0 %1320
        %1322 = vrot.lane.b32.xlu0 %v1282, 1
        %v1323 = vpop.permute.xlu0 %1322
        %1324 = vrot.lane.b32.xlu0 %v1283, 1
        %v1325 = vpop.permute.xlu0 %1324
        %1326 = vrot.lane.b32.xlu0 %v1284, 1
        %v1327 = vpop.permute.xlu0 %1326
        %1328 = vrot.lane.b32.xlu0 %v1285, 1
        %v1329 = vpop.permute.xlu0 %1328
        %1330 = vrot.lane.b32.xlu0 %v1286, 1
        %v1331 = vpop.permute.xlu0 %1330
        %1332 = vrot.lane.b32.xlu0 %v1287, 1
        %v1333 = vpop.permute.xlu0 %1332
        %1334 = vrot.lane.b32.xlu0 %v1288, 1
        %v1335 = vpop.permute.xlu0 %1334
        %1336 = vrot.lane.b32.xlu0 %v1289, 1
        %v1337 = vpop.permute.xlu0 %1336
        %v1338 = vsel %vm345, %v1307, %v1309
        %v1339 = vsel %vm345, %v1311, %v1313
        %v1340 = vsel %vm345, %v1315, %v1317
        %v1341 = vsel %vm345, %v1319, %v1321
        %v1342 = vsel %vm345, %v1323, %v1325
        %v1343 = vsel %vm345, %v1327, %v1329
        %v1344 = vsel %vm345, %v1331, %v1333
        %v1345 = vsel %vm345, %v1335, %v1337
        %1354 = vst.msk [vmem:[#allocation3] sm:$0xff] %vm209, %v1338
        %1355 = vst.msk [vmem:[#allocation3 + $0x8] sm:$0xff] %vm209, %v1339
        %1356 = vst.msk [vmem:[#allocation3 + $0x10] sm:$0xff] %vm209, %v1340
        %1357 = vst.msk [vmem:[#allocation3 + $0x18] sm:$0x3] %vm213, %v1341
        %1358 = vst.msk [vmem:[#allocation3 + $0x20] sm:$0xff] %vm209, %v1342
        %1359 = vst.msk [vmem:[#allocation3 + $0x28] sm:$0xff] %vm209, %v1343
        %1360 = vst.msk [vmem:[#allocation3 + $0x30] sm:$0xff] %vm209, %v1344
        %1361 = vst.msk [vmem:[#allocation3 + $0x38] sm:$0x3] %vm213, %v1345
        %v1362 = vld [vmem:[#allocation3 + $0x1] sm:$0xff]
        %v1363 = vld [vmem:[#allocation3 + $0x9] sm:$0xff]
        %v1364 = vld [vmem:[#allocation3 + $0x21] sm:$0xff]
        %v1365 = vld [vmem:[#allocation3 + $0x29] sm:$0xff]
        %v1366 = vmul.f32 %v1362, 0.003958638
        %v1367 = vmul.f32 %v1363, 0.003958638
        %v1368 = vmul.f32 %v1364, 0.003958638
        %v1369 = vmul.f32 %v1365, 0.003958638
        %v1370 = vadd.f32 %v1238, %v1366
        %v1371 = vadd.f32 %v1239, %v1367
        %v1372 = vadd.f32 %v1240, %v1368
        %v1373 = vadd.f32 %v1241, %v1369
        %v1374 = vld [vmem:[#allocation3 + $0x2] sm:$0xff]
        %v1375 = vld [vmem:[#allocation3 + $0xa] sm:$0xff]
        %v1376 = vld [vmem:[#allocation3 + $0x22] sm:$0xff]
        %v1377 = vld [vmem:[#allocation3 + $0x2a] sm:$0xff]
        %v1378 = vmul.f32 %v1374, 0.01782293
        %v1379 = vmul.f32 %v1375, 0.01782293
        %v1380 = vmul.f32 %v1376, 0.01782293
        %v1381 = vmul.f32 %v1377, 0.01782293
        %v1382 = vadd.f32 %v1250, %v1378
        %v1383 = vadd.f32 %v1251, %v1379
        %v1384 = vadd.f32 %v1252, %v1380
        %v1385 = vadd.f32 %v1253, %v1381
        %v1386 = vld [vmem:[#allocation3 + $0x3] sm:$0xff]
        %v1387 = vld [vmem:[#allocation3 + $0xb] sm:$0xff]
        %v1388 = vld [vmem:[#allocation3 + $0x23] sm:$0xff]
        %v1389 = vld [vmem:[#allocation3 + $0x2b] sm:$0xff]
        %v1390 = vmul.f32 %v1386, 0.01782293
        %v1391 = vmul.f32 %v1387, 0.01782293
        %v1392 = vmul.f32 %v1388, 0.01782293
        %v1393 = vmul.f32 %v1389, 0.01782293
        %v1394 = vadd.f32 %v1262, %v1390
        %v1395 = vadd.f32 %v1263, %v1391
        %v1396 = vadd.f32 %v1264, %v1392
        %v1397 = vadd.f32 %v1265, %v1393
        %v1398 = vld [vmem:[#allocation3 + $0x4] sm:$0xff]
        %v1399 = vld [vmem:[#allocation3 + $0xc] sm:$0xff]
        %v1400 = vld [vmem:[#allocation3 + $0x24] sm:$0xff]
        %v1401 = vld [vmem:[#allocation3 + $0x2c] sm:$0xff]
        %v1402 = vmul.f32 %v1398, 0.01782293
        %v1403 = vmul.f32 %v1399, 0.01782293
        %v1404 = vmul.f32 %v1400, 0.01782293
        %v1405 = vmul.f32 %v1401, 0.01782293
        %v1406 = vadd.f32 %v1270, %v1402
        %v1407 = vadd.f32 %v1271, %v1403
        %v1408 = vadd.f32 %v1272, %v1404
        %v1409 = vadd.f32 %v1273, %v1405
        %v1410 = vld [vmem:[#allocation3 + $0x5] sm:$0xff]
        %v1411 = vld [vmem:[#allocation3 + $0xd] sm:$0xff]
        %v1412 = vld [vmem:[#allocation3 + $0x25] sm:$0xff]
        %v1413 = vld [vmem:[#allocation3 + $0x2d] sm:$0xff]
        %v1414 = vmul.f32 %v1410, 0.01782293
        %v1415 = vmul.f32 %v1411, 0.01782293
        %v1416 = vmul.f32 %v1412, 0.01782293
        %v1417 = vmul.f32 %v1413, 0.01782293
        %v1418 = vadd.f32 %v1370, %v1414
        %v1419 = vadd.f32 %v1371, %v1415
        %v1420 = vadd.f32 %v1372, %v1416
        %v1421 = vadd.f32 %v1373, %v1417
        %v1422 = vld [vmem:[#allocation3 + $0x6] sm:$0xff]
        %v1423 = vld [vmem:[#allocation3 + $0xe] sm:$0xff]
        %v1424 = vld [vmem:[#allocation3 + $0x26] sm:$0xff]
        %v1425 = vld [vmem:[#allocation3 + $0x2e] sm:$0xff]
        %v1426 = vmul.f32 %v1422, 0.01782293
        %v1427 = vmul.f32 %v1423, 0.01782293
        %v1428 = vmul.f32 %v1424, 0.01782293
        %v1429 = vmul.f32 %v1425, 0.01782293
        %v1430 = vadd.f32 %v1382, %v1426
        %v1431 = vadd.f32 %v1383, %v1427
        %v1432 = vadd.f32 %v1384, %v1428
        %v1433 = vadd.f32 %v1385, %v1429
        %v1434 = vld [vmem:[#allocation3 + $0x7] sm:$0xff]
        %v1435 = vld [vmem:[#allocation3 + $0xf] sm:$0xff]
        %v1436 = vld [vmem:[#allocation3 + $0x27] sm:$0xff]
        %v1437 = vld [vmem:[#allocation3 + $0x2f] sm:$0xff]
        %v1438 = vmul.f32 %v1434, 0.01782293
        %v1439 = vmul.f32 %v1435, 0.01782293
        %v1440 = vmul.f32 %v1436, 0.01782293
        %v1441 = vmul.f32 %v1437, 0.01782293
        %v1442 = vadd.f32 %v1394, %v1438
        %v1443 = vadd.f32 %v1395, %v1439
        %v1444 = vadd.f32 %v1396, %v1440
        %v1445 = vadd.f32 %v1397, %v1441
        %v1446 = vld [vmem:[#allocation3 + $0x8] sm:$0xff]
        %v1447 = vld [vmem:[#allocation3 + $0x10] sm:$0xff]
        %v1448 = vld [vmem:[#allocation3 + $0x28] sm:$0xff]
        %v1449 = vld [vmem:[#allocation3 + $0x30] sm:$0xff]
        %v1450 = vmul.f32 %v1446, 0.01782293
        %v1451 = vmul.f32 %v1447, 0.01782293
        %v1452 = vmul.f32 %v1448, 0.01782293
        %v1453 = vmul.f32 %v1449, 0.01782293
        %v1454 = vadd.f32 %v1406, %v1450
        %v1455 = vadd.f32 %v1407, %v1451
        %v1456 = vadd.f32 %v1408, %v1452
        %v1457 = vadd.f32 %v1409, %v1453
        %v1458 = vld [vmem:[#allocation3 + $0x11] sm:$0xff]
        %v1459 = vld [vmem:[#allocation3 + $0x31] sm:$0xff]
        %v1460 = vmul.f32 %v1458, 0.003958638
        %v1461 = vmul.f32 %v1459, 0.003958638
        %v1462 = vadd.f32 %v1418, %v1367
        %v1463 = vadd.f32 %v1419, %v1460
        %v1464 = vadd.f32 %v1420, %v1369
        %v1465 = vadd.f32 %v1421, %v1461
        %v1466 = vld [vmem:[#allocation2 + $0x8] sm:$0xff]
        %v1467 = vld [vmem:[#allocation2 + $0x18] sm:$0xff]
        %v1468 = vld [vmem:[#allocation2 + $0x28] sm:$0xff]
        %v1469 = vld [vmem:[#allocation2 + $0x38] sm:$0x3]
        %v1470 = vld [vmem:[#allocation2 + $0x48] sm:$0xff]
        %v1471 = vld [vmem:[#allocation2 + $0x58] sm:$0xff]
        %v1472 = vld [vmem:[#allocation2 + $0x68] sm:$0xff]
        %v1473 = vld [vmem:[#allocation2 + $0x78] sm:$0x3]
        %1474 = vst.msk [vmem:[#allocation3] sm:$0xff] %vm209, %v1466
        %1475 = vst.msk [vmem:[#allocation3 + $0x8] sm:$0xff] %vm209, %v1467
        %1476 = vst.msk [vmem:[#allocation3 + $0x10] sm:$0xff] %vm209, %v1468
        %1477 = vst.msk [vmem:[#allocation3 + $0x18] sm:$0x3] %vm213, %v1469
        %1478 = vst.msk [vmem:[#allocation3 + $0x20] sm:$0xff] %vm209, %v1470
        %1479 = vst.msk [vmem:[#allocation3 + $0x28] sm:$0xff] %vm209, %v1471
        %1480 = vst.msk [vmem:[#allocation3 + $0x30] sm:$0xff] %vm209, %v1472
        %1481 = vst.msk [vmem:[#allocation3 + $0x38] sm:$0x3] %vm213, %v1473
        %v1482 = vld [vmem:[#allocation3] sm:$0xff]
        %v1483 = vld [vmem:[#allocation3 + $0x8] sm:$0xff]
        %v1484 = vld [vmem:[#allocation3 + $0x20] sm:$0xff]
        %v1485 = vld [vmem:[#allocation3 + $0x28] sm:$0xff]
        %v1486 = vmul.f32 %v1482, 0.003958638
        %v1487 = vmul.f32 %v1483, 0.003958638
        %v1488 = vmul.f32 %v1484, 0.003958638
        %v1489 = vmul.f32 %v1485, 0.003958638
        %v1490 = vadd.f32 %v1430, %v1486
        %v1491 = vadd.f32 %v1431, %v1487
        %v1492 = vadd.f32 %v1432, %v1488
        %v1493 = vadd.f32 %v1433, %v1489
        %v1494 = vld [vmem:[#allocation3 + $0x1] sm:$0xff]
        %v1495 = vld [vmem:[#allocation3 + $0x9] sm:$0xff]
        %v1496 = vld [vmem:[#allocation3 + $0x21] sm:$0xff]
        %v1497 = vld [vmem:[#allocation3 + $0x29] sm:$0xff]
        %v1498 = vmul.f32 %v1494, 0.01782293
        %v1499 = vmul.f32 %v1495, 0.01782293
        %v1500 = vmul.f32 %v1496, 0.01782293
        %v1501 = vmul.f32 %v1497, 0.01782293
        %v1502 = vadd.f32 %v1442, %v1498
        %v1503 = vadd.f32 %v1443, %v1499
        %v1504 = vadd.f32 %v1444, %v1500
        %v1505 = vadd.f32 %v1445, %v1501
        %v1506 = vld [vmem:[#allocation3 + $0x2] sm:$0xff]
        %v1507 = vld [vmem:[#allocation3 + $0xa] sm:$0xff]
        %v1508 = vld [vmem:[#allocation3 + $0x22] sm:$0xff]
        %v1509 = vld [vmem:[#allocation3 + $0x2a] sm:$0xff]
        %v1510 = vmul.f32 %v1506, 0.01782293
        %v1511 = vmul.f32 %v1507, 0.01782293
        %v1512 = vmul.f32 %v1508, 0.01782293
        %v1513 = vmul.f32 %v1509, 0.01782293
        %v1514 = vadd.f32 %v1454, %v1510
        %v1515 = vadd.f32 %v1455, %v1511
        %v1516 = vadd.f32 %v1456, %v1512
        %v1517 = vadd.f32 %v1457, %v1513
        %v1518 = vld [vmem:[#allocation3 + $0x3] sm:$0xff]
        %v1519 = vld [vmem:[#allocation3 + $0xb] sm:$0xff]
        %v1520 = vld [vmem:[#allocation3 + $0x23] sm:$0xff]
        %v1521 = vld [vmem:[#allocation3 + $0x2b] sm:$0xff]
        %v1522 = vmul.f32 %v1518, 0.01782293
        %v1523 = vmul.f32 %v1519, 0.01782293
        %v1524 = vmul.f32 %v1520, 0.01782293
        %v1525 = vmul.f32 %v1521, 0.01782293
        %v1526 = vadd.f32 %v1462, %v1522
        %v1527 = vadd.f32 %v1463, %v1523
        %v1528 = vadd.f32 %v1464, %v1524
        %v1529 = vadd.f32 %v1465, %v1525
        %v1530 = vld [vmem:[#allocation3 + $0x4] sm:$0xff]
        %v1531 = vld [vmem:[#allocation3 + $0xc] sm:$0xff]
        %v1532 = vld [vmem:[#allocation3 + $0x24] sm:$0xff]
        %v1533 = vld [vmem:[#allocation3 + $0x2c] sm:$0xff]
        %v1534 = vmul.f32 %v1530, 0.01782293
        %v1535 = vmul.f32 %v1531, 0.01782293
        %v1536 = vmul.f32 %v1532, 0.01782293
        %v1537 = vmul.f32 %v1533, 0.01782293
        %v1538 = vadd.f32 %v1490, %v1534
        %v1539 = vadd.f32 %v1491, %v1535
        %v1540 = vadd.f32 %v1492, %v1536
        %v1541 = vadd.f32 %v1493, %v1537
        %v1542 = vld [vmem:[#allocation3 + $0x5] sm:$0xff]
        %v1543 = vld [vmem:[#allocation3 + $0xd] sm:$0xff]
        %v1544 = vld [vmem:[#allocation3 + $0x25] sm:$0xff]
        %v1545 = vld [vmem:[#allocation3 + $0x2d] sm:$0xff]
        %v1546 = vmul.f32 %v1542, 0.01782293
        %v1547 = vmul.f32 %v1543, 0.01782293
        %v1548 = vmul.f32 %v1544, 0.01782293
        %v1549 = vmul.f32 %v1545, 0.01782293
        %v1550 = vadd.f32 %v1502, %v1546
        %v1551 = vadd.f32 %v1503, %v1547
        %v1552 = vadd.f32 %v1504, %v1548
        %v1553 = vadd.f32 %v1505, %v1549
        %v1554 = vld [vmem:[#allocation3 + $0x6] sm:$0xff]
        %v1555 = vld [vmem:[#allocation3 + $0xe] sm:$0xff]
        %v1556 = vld [vmem:[#allocation3 + $0x26] sm:$0xff]
        %v1557 = vld [vmem:[#allocation3 + $0x2e] sm:$0xff]
        %v1558 = vmul.f32 %v1554, 0.01782293
        %v1559 = vmul.f32 %v1555, 0.01782293
        %v1560 = vmul.f32 %v1556, 0.01782293
        %v1561 = vmul.f32 %v1557, 0.01782293
        %v1562 = vadd.f32 %v1514, %v1558
        %v1563 = vadd.f32 %v1515, %v1559
        %v1564 = vadd.f32 %v1516, %v1560
        %v1565 = vadd.f32 %v1517, %v1561
        %v1566 = vld [vmem:[#allocation3 + $0x7] sm:$0xff]
        %v1567 = vld [vmem:[#allocation3 + $0xf] sm:$0xff]
        %v1568 = vld [vmem:[#allocation3 + $0x27] sm:$0xff]
        %v1569 = vld [vmem:[#allocation3 + $0x2f] sm:$0xff]
        %v1570 = vmul.f32 %v1566, 0.01782293
        %v1571 = vmul.f32 %v1567, 0.01782293
        %v1572 = vmul.f32 %v1568, 0.01782293
        %v1573 = vmul.f32 %v1569, 0.01782293
        %v1574 = vadd.f32 %v1526, %v1570
        %v1575 = vadd.f32 %v1527, %v1571
        %v1576 = vadd.f32 %v1528, %v1572
        %v1577 = vadd.f32 %v1529, %v1573
        %v1578 = vld [vmem:[#allocation3 + $0x10] sm:$0xff]
        %v1579 = vld [vmem:[#allocation3 + $0x30] sm:$0xff]
        %v1580 = vmul.f32 %v1483, 0.01782293
        %v1581 = vmul.f32 %v1578, 0.01782293
        %v1582 = vmul.f32 %v1485, 0.01782293
        %v1583 = vmul.f32 %v1579, 0.01782293
        %v1584 = vadd.f32 %v1538, %v1580
        %v1585 = vadd.f32 %v1539, %v1581
        %v1586 = vadd.f32 %v1540, %v1582
        %v1587 = vadd.f32 %v1541, %v1583
        %v1588 = vld [vmem:[#allocation3 + $0x11] sm:$0xff]
        %v1589 = vld [vmem:[#allocation3 + $0x31] sm:$0xff]
        %v1590 = vmul.f32 %v1588, 0.01782293
        %v1591 = vmul.f32 %v1589, 0.01782293
        %v1592 = vadd.f32 %v1550, %v1499
        %v1593 = vadd.f32 %v1551, %v1590
        %v1594 = vadd.f32 %v1552, %v1501
        %v1595 = vadd.f32 %v1553, %v1591
        %v1596 = vld [vmem:[#allocation3 + $0x12] sm:$0xff]
        %v1597 = vld [vmem:[#allocation3 + $0x32] sm:$0xff]
        %v1598 = vmul.f32 %v1507, 0.003958638
        %v1599 = vmul.f32 %v1596, 0.003958638
        %v1600 = vmul.f32 %v1509, 0.003958638
        %v1601 = vmul.f32 %v1597, 0.003958638
        %v1602 = vadd.f32 %v1562, %v1598
        %v1603 = vadd.f32 %v1563, %v1599
        %v1604 = vadd.f32 %v1564, %v1600
        %v1605 = vadd.f32 %v1565, %v1601
        %v1606 = vld [vmem:[#allocation2 + $0x8] sm:$0xff]
        %v1607 = vld [vmem:[#allocation2 + $0x18] sm:$0xff]
        %v1608 = vld [vmem:[#allocation2 + $0x28] sm:$0xff]
        %v1609 = vld [vmem:[#allocation2 + $0x38] sm:$0x3]
        %v1610 = vld [vmem:[#allocation2 + $0x48] sm:$0xff]
        %v1611 = vld [vmem:[#allocation2 + $0x58] sm:$0xff]
        %v1612 = vld [vmem:[#allocation2 + $0x68] sm:$0xff]
        %v1613 = vld [vmem:[#allocation2 + $0x78] sm:$0x3]
        %1622 = vrot.lane.b32.xlu0 %v1606, 127
        %v1623 = vpop.permute.xlu0 %1622
        %1624 = vrot.lane.b32.xlu0 %v1607, 127
        %v1625 = vpop.permute.xlu0 %1624
        %1626 = vrot.lane.b32.xlu0 %v1608, 127
        %v1627 = vpop.permute.xlu0 %1626
        %1628 = vrot.lane.b32.xlu0 %v1609, 127
        %v1629 = vpop.permute.xlu0 %1628
        %1630 = vrot.lane.b32.xlu0 %v1610, 127
        %v1631 = vpop.permute.xlu0 %1630
        %1632 = vrot.lane.b32.xlu0 %v1611, 127
        %v1633 = vpop.permute.xlu0 %1632
        %1634 = vrot.lane.b32.xlu0 %v1612, 127
        %v1635 = vpop.permute.xlu0 %1634
        %1636 = vrot.lane.b32.xlu0 %v1613, 127
        %v1637 = vpop.permute.xlu0 %1636
        %1646 = vst.msk [vmem:[#allocation3] sm:$0xff] %vm209, %v1623
        %1647 = vst.msk [vmem:[#allocation3 + $0x8] sm:$0xff] %vm209, %v1625
        %1648 = vst.msk [vmem:[#allocation3 + $0x10] sm:$0xff] %vm209, %v1627
        %1649 = vst.msk [vmem:[#allocation3 + $0x18] sm:$0x3] %vm213, %v1629
        %1650 = vst.msk [vmem:[#allocation3 + $0x20] sm:$0xff] %vm209, %v1631
        %1651 = vst.msk [vmem:[#allocation3 + $0x28] sm:$0xff] %vm209, %v1633
        %1652 = vst.msk [vmem:[#allocation3 + $0x30] sm:$0xff] %vm209, %v1635
        %1653 = vst.msk [vmem:[#allocation3 + $0x38] sm:$0x3] %vm213, %v1637
        %v1654 = vld [vmem:[#allocation3 + $0x1] sm:$0xff]
        %v1655 = vld [vmem:[#allocation3 + $0x9] sm:$0xff]
        %v1656 = vld [vmem:[#allocation3 + $0x21] sm:$0xff]
        %v1657 = vld [vmem:[#allocation3 + $0x29] sm:$0xff]
        %v1658 = vmul.f32 %v1654, 0.003958638
        %v1659 = vmul.f32 %v1655, 0.003958638
        %v1660 = vmul.f32 %v1656, 0.003958638
        %v1661 = vmul.f32 %v1657, 0.003958638
        %v1662 = vadd.f32 %v1574, %v1658
        %v1663 = vadd.f32 %v1575, %v1659
        %v1664 = vadd.f32 %v1576, %v1660
        %v1665 = vadd.f32 %v1577, %v1661
        %v1666 = vld [vmem:[#allocation3 + $0x2] sm:$0xff]
        %v1667 = vld [vmem:[#allocation3 + $0xa] sm:$0xff]
        %v1668 = vld [vmem:[#allocation3 + $0x22] sm:$0xff]
        %v1669 = vld [vmem:[#allocation3 + $0x2a] sm:$0xff]
        %v1670 = vmul.f32 %v1666, 0.01782293
        %v1671 = vmul.f32 %v1667, 0.01782293
        %v1672 = vmul.f32 %v1668, 0.01782293
        %v1673 = vmul.f32 %v1669, 0.01782293
        %v1674 = vadd.f32 %v1584, %v1670
        %v1675 = vadd.f32 %v1585, %v1671
        %v1676 = vadd.f32 %v1586, %v1672
        %v1677 = vadd.f32 %v1587, %v1673
        %v1678 = vld [vmem:[#allocation3 + $0x3] sm:$0xff]
        %v1679 = vld [vmem:[#allocation3 + $0xb] sm:$0xff]
        %v1680 = vld [vmem:[#allocation3 + $0x23] sm:$0xff]
        %v1681 = vld [vmem:[#allocation3 + $0x2b] sm:$0xff]
        %v1682 = vmul.f32 %v1678, 0.01782293
        %v1683 = vmul.f32 %v1679, 0.01782293
        %v1684 = vmul.f32 %v1680, 0.01782293
        %v1685 = vmul.f32 %v1681, 0.01782293
        %v1686 = vadd.f32 %v1592, %v1682
        %v1687 = vadd.f32 %v1593, %v1683
        %v1688 = vadd.f32 %v1594, %v1684
        %v1689 = vadd.f32 %v1595, %v1685
        %v1690 = vld [vmem:[#allocation3 + $0x4] sm:$0xff]
        %v1691 = vld [vmem:[#allocation3 + $0xc] sm:$0xff]
        %v1692 = vld [vmem:[#allocation3 + $0x24] sm:$0xff]
        %v1693 = vld [vmem:[#allocation3 + $0x2c] sm:$0xff]
        %v1694 = vmul.f32 %v1690, 0.01782293
        %v1695 = vmul.f32 %v1691, 0.01782293
        %v1696 = vmul.f32 %v1692, 0.01782293
        %v1697 = vmul.f32 %v1693, 0.01782293
        %v1698 = vadd.f32 %v1602, %v1694
        %v1699 = vadd.f32 %v1603, %v1695
        %v1700 = vadd.f32 %v1604, %v1696
        %v1701 = vadd.f32 %v1605, %v1697
        %v1702 = vld [vmem:[#allocation3 + $0x5] sm:$0xff]
        %v1703 = vld [vmem:[#allocation3 + $0xd] sm:$0xff]
        %v1704 = vld [vmem:[#allocation3 + $0x25] sm:$0xff]
        %v1705 = vld [vmem:[#allocation3 + $0x2d] sm:$0xff]
        %v1706 = vmul.f32 %v1702, 0.01782293
        %v1707 = vmul.f32 %v1703, 0.01782293
        %v1708 = vmul.f32 %v1704, 0.01782293
        %v1709 = vmul.f32 %v1705, 0.01782293
        %v1710 = vadd.f32 %v1662, %v1706
        %v1711 = vadd.f32 %v1663, %v1707
        %v1712 = vadd.f32 %v1664, %v1708
        %v1713 = vadd.f32 %v1665, %v1709
        %v1714 = vld [vmem:[#allocation3 + $0x6] sm:$0xff]
        %v1715 = vld [vmem:[#allocation3 + $0xe] sm:$0xff]
        %v1716 = vld [vmem:[#allocation3 + $0x26] sm:$0xff]
        %v1717 = vld [vmem:[#allocation3 + $0x2e] sm:$0xff]
        %v1718 = vmul.f32 %v1714, 0.01782293
        %v1719 = vmul.f32 %v1715, 0.01782293
        %v1720 = vmul.f32 %v1716, 0.01782293
        %v1721 = vmul.f32 %v1717, 0.01782293
        %v1722 = vadd.f32 %v1674, %v1718
        %v1723 = vadd.f32 %v1675, %v1719
        %v1724 = vadd.f32 %v1676, %v1720
        %v1725 = vadd.f32 %v1677, %v1721
        %v1726 = vld [vmem:[#allocation3 + $0x7] sm:$0xff]
        %v1727 = vld [vmem:[#allocation3 + $0xf] sm:$0xff]
        %v1728 = vld [vmem:[#allocation3 + $0x27] sm:$0xff]
        %v1729 = vld [vmem:[#allocation3 + $0x2f] sm:$0xff]
        %v1730 = vmul.f32 %v1726, 0.01782293
        %v1731 = vmul.f32 %v1727, 0.01782293
        %v1732 = vmul.f32 %v1728, 0.01782293
        %v1733 = vmul.f32 %v1729, 0.01782293
        %v1734 = vadd.f32 %v1686, %v1730
        %v1735 = vadd.f32 %v1687, %v1731
        %v1736 = vadd.f32 %v1688, %v1732
        %v1737 = vadd.f32 %v1689, %v1733
        %v1738 = vld [vmem:[#allocation3 + $0x8] sm:$0xff]
        %v1739 = vld [vmem:[#allocation3 + $0x10] sm:$0xff]
        %v1740 = vld [vmem:[#allocation3 + $0x28] sm:$0xff]
        %v1741 = vld [vmem:[#allocation3 + $0x30] sm:$0xff]
        %v1742 = vmul.f32 %v1738, 0.01782293
        %v1743 = vmul.f32 %v1739, 0.01782293
        %v1744 = vmul.f32 %v1740, 0.01782293
        %v1745 = vmul.f32 %v1741, 0.01782293
        %v1746 = vadd.f32 %v1698, %v1742
        %v1747 = vadd.f32 %v1699, %v1743
        %v1748 = vadd.f32 %v1700, %v1744
        %v1749 = vadd.f32 %v1701, %v1745
        %v1750 = vld [vmem:[#allocation3 + $0x11] sm:$0xff]
        %v1751 = vld [vmem:[#allocation3 + $0x31] sm:$0xff]
        %v1752 = vmul.f32 %v1750, 0.003958638
        %v1753 = vmul.f32 %v1751, 0.003958638
        %v1754 = vadd.f32 %v1710, %v1659
        %v1755 = vadd.f32 %v1711, %v1752
        %v1756 = vadd.f32 %v1712, %v1661
        %v1757 = vadd.f32 %v1713, %v1753
        %v1758 = vld [vmem:[#allocation2 + $0x8] sm:$0xff]
        %v1759 = vld [vmem:[#allocation2 + $0x18] sm:$0xff]
        %v1760 = vld [vmem:[#allocation2 + $0x28] sm:$0xff]
        %v1761 = vld [vmem:[#allocation2 + $0x38] sm:$0x3]
        %v1762 = vld [vmem:[#allocation2 + $0x48] sm:$0xff]
        %v1763 = vld [vmem:[#allocation2 + $0x58] sm:$0xff]
        %v1764 = vld [vmem:[#allocation2 + $0x68] sm:$0xff]
        %v1765 = vld [vmem:[#allocation2 + $0x78] sm:$0x3]
        %1774 = vrot.lane.b32.xlu0 %v1758, 126
        %v1775 = vpop.permute.xlu0 %1774
        %1776 = vrot.lane.b32.xlu0 %v1759, 126
        %v1777 = vpop.permute.xlu0 %1776
        %1778 = vrot.lane.b32.xlu0 %v1760, 126
        %v1779 = vpop.permute.xlu0 %1778
        %1780 = vrot.lane.b32.xlu0 %v1761, 126
        %v1781 = vpop.permute.xlu0 %1780
        %1782 = vrot.lane.b32.xlu0 %v1762, 126
        %v1783 = vpop.permute.xlu0 %1782
        %1784 = vrot.lane.b32.xlu0 %v1763, 126
        %v1785 = vpop.permute.xlu0 %1784
        %1786 = vrot.lane.b32.xlu0 %v1764, 126
        %v1787 = vpop.permute.xlu0 %1786
        %1788 = vrot.lane.b32.xlu0 %v1765, 126
        %v1789 = vpop.permute.xlu0 %1788
        %1798 = vst.msk [vmem:[#allocation3] sm:$0xff] %vm209, %v1775
        %1799 = vst.msk [vmem:[#allocation3 + $0x8] sm:$0xff] %vm209, %v1777
        %1800 = vst.msk [vmem:[#allocation3 + $0x10] sm:$0xff] %vm209, %v1779
        %1801 = vst.msk [vmem:[#allocation3 + $0x18] sm:$0x3] %vm213, %v1781
        %1802 = vst.msk [vmem:[#allocation3 + $0x20] sm:$0xff] %vm209, %v1783
        %1803 = vst.msk [vmem:[#allocation3 + $0x28] sm:$0xff] %vm209, %v1785
        %1804 = vst.msk [vmem:[#allocation3 + $0x30] sm:$0xff] %vm209, %v1787
        %1805 = vst.msk [vmem:[#allocation3 + $0x38] sm:$0x3] %vm213, %v1789
        %v1806 = vld [vmem:[#allocation3 + $0x1] sm:$0xff]
        %v1807 = vld [vmem:[#allocation3 + $0x9] sm:$0xff]
        %v1808 = vld [vmem:[#allocation3 + $0x21] sm:$0xff]
        %v1809 = vld [vmem:[#allocation3 + $0x29] sm:$0xff]
        %v1810 = vmul.f32 %v1806, 0.003958638
        %v1811 = vmul.f32 %v1807, 0.003958638
        %v1812 = vmul.f32 %v1808, 0.003958638
        %v1813 = vmul.f32 %v1809, 0.003958638
        %v1814 = vadd.f32 %v1722, %v1810
        %v1815 = vadd.f32 %v1723, %v1811
        %v1816 = vadd.f32 %v1724, %v1812
        %v1817 = vadd.f32 %v1725, %v1813
        %v1818 = vld [vmem:[#allocation3 + $0x2] sm:$0xff]
        %v1819 = vld [vmem:[#allocation3 + $0xa] sm:$0xff]
        %v1820 = vld [vmem:[#allocation3 + $0x22] sm:$0xff]
        %v1821 = vld [vmem:[#allocation3 + $0x2a] sm:$0xff]
        %v1822 = vmul.f32 %v1818, 0.01782293
        %v1823 = vmul.f32 %v1819, 0.01782293
        %v1824 = vmul.f32 %v1820, 0.01782293
        %v1825 = vmul.f32 %v1821, 0.01782293
        %v1826 = vadd.f32 %v1734, %v1822
        %v1827 = vadd.f32 %v1735, %v1823
        %v1828 = vadd.f32 %v1736, %v1824
        %v1829 = vadd.f32 %v1737, %v1825
        %v1830 = vld [vmem:[#allocation3 + $0x3] sm:$0xff]
        %v1831 = vld [vmem:[#allocation3 + $0xb] sm:$0xff]
        %v1832 = vld [vmem:[#allocation3 + $0x23] sm:$0xff]
        %v1833 = vld [vmem:[#allocation3 + $0x2b] sm:$0xff]
        %v1834 = vmul.f32 %v1830, 0.01782293
        %v1835 = vmul.f32 %v1831, 0.01782293
        %v1836 = vmul.f32 %v1832, 0.01782293
        %v1837 = vmul.f32 %v1833, 0.01782293
        %v1838 = vadd.f32 %v1746, %v1834
        %v1839 = vadd.f32 %v1747, %v1835
        %v1840 = vadd.f32 %v1748, %v1836
        %v1841 = vadd.f32 %v1749, %v1837
        %v1842 = vld [vmem:[#allocation3 + $0x4] sm:$0xff]
        %v1843 = vld [vmem:[#allocation3 + $0xc] sm:$0xff]
        %v1844 = vld [vmem:[#allocation3 + $0x24] sm:$0xff]
        %v1845 = vld [vmem:[#allocation3 + $0x2c] sm:$0xff]
        %v1846 = vmul.f32 %v1842, 0.01782293
        %v1847 = vmul.f32 %v1843, 0.01782293
        %v1848 = vmul.f32 %v1844, 0.01782293
        %v1849 = vmul.f32 %v1845, 0.01782293
        %v1850 = vadd.f32 %v1754, %v1846
        %v1851 = vadd.f32 %v1755, %v1847
        %v1852 = vadd.f32 %v1756, %v1848
        %v1853 = vadd.f32 %v1757, %v1849
        %v1854 = vld [vmem:[#allocation3 + $0x5] sm:$0xff]
        %v1855 = vld [vmem:[#allocation3 + $0xd] sm:$0xff]
        %v1856 = vld [vmem:[#allocation3 + $0x25] sm:$0xff]
        %v1857 = vld [vmem:[#allocation3 + $0x2d] sm:$0xff]
        %v1858 = vmul.f32 %v1854, 0.01782293
        %v1859 = vmul.f32 %v1855, 0.01782293
        %v1860 = vmul.f32 %v1856, 0.01782293
        %v1861 = vmul.f32 %v1857, 0.01782293
        %v1862 = vadd.f32 %v1814, %v1858
        %v1863 = vadd.f32 %v1815, %v1859
        %v1864 = vadd.f32 %v1816, %v1860
        %v1865 = vadd.f32 %v1817, %v1861
        %v1866 = vld [vmem:[#allocation3 + $0x6] sm:$0xff]
        %v1867 = vld [vmem:[#allocation3 + $0xe] sm:$0xff]
        %v1868 = vld [vmem:[#allocation3 + $0x26] sm:$0xff]
        %v1869 = vld [vmem:[#allocation3 + $0x2e] sm:$0xff]
        %v1870 = vmul.f32 %v1866, 0.01782293
        %v1871 = vmul.f32 %v1867, 0.01782293
        %v1872 = vmul.f32 %v1868, 0.01782293
        %v1873 = vmul.f32 %v1869, 0.01782293
        %v1874 = vadd.f32 %v1826, %v1870
        %v1875 = vadd.f32 %v1827, %v1871
        %v1876 = vadd.f32 %v1828, %v1872
        %v1877 = vadd.f32 %v1829, %v1873
        %v1878 = vld [vmem:[#allocation3 + $0x7] sm:$0xff]
        %v1879 = vld [vmem:[#allocation3 + $0xf] sm:$0xff]
        %v1880 = vld [vmem:[#allocation3 + $0x27] sm:$0xff]
        %v1881 = vld [vmem:[#allocation3 + $0x2f] sm:$0xff]
        %v1882 = vmul.f32 %v1878, 0.01782293
        %v1883 = vmul.f32 %v1879, 0.01782293
        %v1884 = vmul.f32 %v1880, 0.01782293
        %v1885 = vmul.f32 %v1881, 0.01782293
        %v1886 = vadd.f32 %v1838, %v1882
        %v1887 = vadd.f32 %v1839, %v1883
        %v1888 = vadd.f32 %v1840, %v1884
        %v1889 = vadd.f32 %v1841, %v1885
        %v1890 = vld [vmem:[#allocation3 + $0x8] sm:$0xff]
        %v1891 = vld [vmem:[#allocation3 + $0x10] sm:$0xff]
        %v1892 = vld [vmem:[#allocation3 + $0x28] sm:$0xff]
        %v1893 = vld [vmem:[#allocation3 + $0x30] sm:$0xff]
        %v1894 = vmul.f32 %v1890, 0.01782293
        %v1895 = vmul.f32 %v1891, 0.01782293
        %v1896 = vmul.f32 %v1892, 0.01782293
        %v1897 = vmul.f32 %v1893, 0.01782293
        %v1898 = vadd.f32 %v1850, %v1894
        %v1899 = vadd.f32 %v1851, %v1895
        %v1900 = vadd.f32 %v1852, %v1896
        %v1901 = vadd.f32 %v1853, %v1897
        %v1902 = vld [vmem:[#allocation3 + $0x11] sm:$0xff]
        %v1903 = vld [vmem:[#allocation3 + $0x31] sm:$0xff]
        %v1904 = vmul.f32 %v1902, 0.003958638
        %v1905 = vmul.f32 %v1903, 0.003958638
        %v1906 = vadd.f32 %v1862, %v1811
        %v1907 = vadd.f32 %v1863, %v1904
        %v1908 = vadd.f32 %v1864, %v1813
        %v1909 = vadd.f32 %v1865, %v1905
        %v1910 = vld [vmem:[#allocation2 + $0x8] sm:$0xff]
        %v1911 = vld [vmem:[#allocation2 + $0x18] sm:$0xff]
        %v1912 = vld [vmem:[#allocation2 + $0x28] sm:$0xff]
        %v1913 = vld [vmem:[#allocation2 + $0x38] sm:$0x3]
        %v1914 = vld [vmem:[#allocation2 + $0x48] sm:$0xff]
        %v1915 = vld [vmem:[#allocation2 + $0x58] sm:$0xff]
        %v1916 = vld [vmem:[#allocation2 + $0x68] sm:$0xff]
        %v1917 = vld [vmem:[#allocation2 + $0x78] sm:$0x3]
        %1926 = vrot.lane.b32.xlu0 %v1910, 125
        %v1927 = vpop.permute.xlu0 %1926
        %1928 = vrot.lane.b32.xlu0 %v1911, 125
        %v1929 = vpop.permute.xlu0 %1928
        %1930 = vrot.lane.b32.xlu0 %v1912, 125
        %v1931 = vpop.permute.xlu0 %1930
        %1932 = vrot.lane.b32.xlu0 %v1913, 125
        %v1933 = vpop.permute.xlu0 %1932
        %1934 = vrot.lane.b32.xlu0 %v1914, 125
        %v1935 = vpop.permute.xlu0 %1934
        %1936 = vrot.lane.b32.xlu0 %v1915, 125
        %v1937 = vpop.permute.xlu0 %1936
        %1938 = vrot.lane.b32.xlu0 %v1916, 125
        %v1939 = vpop.permute.xlu0 %1938
        %1940 = vrot.lane.b32.xlu0 %v1917, 125
        %v1941 = vpop.permute.xlu0 %1940
        %1950 = vst.msk [vmem:[#allocation3] sm:$0xff] %vm209, %v1927
        %1951 = vst.msk [vmem:[#allocation3 + $0x8] sm:$0xff] %vm209, %v1929
        %1952 = vst.msk [vmem:[#allocation3 + $0x10] sm:$0xff] %vm209, %v1931
        %1953 = vst.msk [vmem:[#allocation3 + $0x18] sm:$0x3] %vm213, %v1933
        %1954 = vst.msk [vmem:[#allocation3 + $0x20] sm:$0xff] %vm209, %v1935
        %1955 = vst.msk [vmem:[#allocation3 + $0x28] sm:$0xff] %vm209, %v1937
        %1956 = vst.msk [vmem:[#allocation3 + $0x30] sm:$0xff] %vm209, %v1939
        %1957 = vst.msk [vmem:[#allocation3 + $0x38] sm:$0x3] %vm213, %v1941
        %v1958 = vld [vmem:[#allocation3 + $0x1] sm:$0xff]
        %v1959 = vld [vmem:[#allocation3 + $0x9] sm:$0xff]
        %v1960 = vld [vmem:[#allocation3 + $0x21] sm:$0xff]
        %v1961 = vld [vmem:[#allocation3 + $0x29] sm:$0xff]
        %v1962 = vmul.f32 %v1958, 0.003958638
        %v1963 = vmul.f32 %v1959, 0.003958638
        %v1964 = vmul.f32 %v1960, 0.003958638
        %v1965 = vmul.f32 %v1961, 0.003958638
        %v1966 = vadd.f32 %v1874, %v1962
        %v1967 = vadd.f32 %v1875, %v1963
        %v1968 = vadd.f32 %v1876, %v1964
        %v1969 = vadd.f32 %v1877, %v1965
        %v1970 = vld [vmem:[#allocation3 + $0x2] sm:$0xff]
        %v1971 = vld [vmem:[#allocation3 + $0xa] sm:$0xff]
        %v1972 = vld [vmem:[#allocation3 + $0x22] sm:$0xff]
        %v1973 = vld [vmem:[#allocation3 + $0x2a] sm:$0xff]
        %v1974 = vmul.f32 %v1970, 0.003958638
        %v1975 = vmul.f32 %v1971, 0.003958638
        %v1976 = vmul.f32 %v1972, 0.003958638
        %v1977 = vmul.f32 %v1973, 0.003958638
        %v1978 = vadd.f32 %v1886, %v1974
        %v1979 = vadd.f32 %v1887, %v1975
        %v1980 = vadd.f32 %v1888, %v1976
        %v1981 = vadd.f32 %v1889, %v1977
        %v1982 = vld [vmem:[#allocation3 + $0x3] sm:$0xff]
        %v1983 = vld [vmem:[#allocation3 + $0xb] sm:$0xff]
        %v1984 = vld [vmem:[#allocation3 + $0x23] sm:$0xff]
        %v1985 = vld [vmem:[#allocation3 + $0x2b] sm:$0xff]
        %v1986 = vmul.f32 %v1982, 0.01782293
        %v1987 = vmul.f32 %v1983, 0.01782293
        %v1988 = vmul.f32 %v1984, 0.01782293
        %v1989 = vmul.f32 %v1985, 0.01782293
        %v1990 = vadd.f32 %v1898, %v1986
        %v1991 = vadd.f32 %v1899, %v1987
        %v1992 = vadd.f32 %v1900, %v1988
        %v1993 = vadd.f32 %v1901, %v1989
        %v1994 = vld [vmem:[#allocation3 + $0x4] sm:$0xff]
        %v1995 = vld [vmem:[#allocation3 + $0xc] sm:$0xff]
        %v1996 = vld [vmem:[#allocation3 + $0x24] sm:$0xff]
        %v1997 = vld [vmem:[#allocation3 + $0x2c] sm:$0xff]
        %v1998 = vmul.f32 %v1994, 0.01782293
        %v1999 = vmul.f32 %v1995, 0.01782293
        %v2000 = vmul.f32 %v1996, 0.01782293
        %v2001 = vmul.f32 %v1997, 0.01782293
        %v2002 = vadd.f32 %v1906, %v1998
        %v2003 = vadd.f32 %v1907, %v1999
        %v2004 = vadd.f32 %v1908, %v2000
        %v2005 = vadd.f32 %v1909, %v2001
        %v2006 = vld [vmem:[#allocation3 + $0x5] sm:$0xff]
        %v2007 = vld [vmem:[#allocation3 + $0xd] sm:$0xff]
        %v2008 = vld [vmem:[#allocation3 + $0x25] sm:$0xff]
        %v2009 = vld [vmem:[#allocation3 + $0x2d] sm:$0xff]
        %v2010 = vmul.f32 %v2006, 0.01782293
        %v2011 = vmul.f32 %v2007, 0.01782293
        %v2012 = vmul.f32 %v2008, 0.01782293
        %v2013 = vmul.f32 %v2009, 0.01782293
        %v2014 = vadd.f32 %v1966, %v2010
        %v2015 = vadd.f32 %v1967, %v2011
        %v2016 = vadd.f32 %v1968, %v2012
        %v2017 = vadd.f32 %v1969, %v2013
        %v2018 = vld [vmem:[#allocation3 + $0x6] sm:$0xff]
        %v2019 = vld [vmem:[#allocation3 + $0xe] sm:$0xff]
        %v2020 = vld [vmem:[#allocation3 + $0x26] sm:$0xff]
        %v2021 = vld [vmem:[#allocation3 + $0x2e] sm:$0xff]
        %v2022 = vmul.f32 %v2018, 0.01782293
        %v2023 = vmul.f32 %v2019, 0.01782293
        %v2024 = vmul.f32 %v2020, 0.01782293
        %v2025 = vmul.f32 %v2021, 0.01782293
        %v2026 = vadd.f32 %v1978, %v2022
        %v2027 = vadd.f32 %v1979, %v2023
        %v2028 = vadd.f32 %v1980, %v2024
        %v2029 = vadd.f32 %v1981, %v2025
        %v2030 = vld [vmem:[#allocation3 + $0x7] sm:$0xff]
        %v2031 = vld [vmem:[#allocation3 + $0xf] sm:$0xff]
        %v2032 = vld [vmem:[#allocation3 + $0x27] sm:$0xff]
        %v2033 = vld [vmem:[#allocation3 + $0x2f] sm:$0xff]
        %v2034 = vmul.f32 %v2030, 0.01782293
        %v2035 = vmul.f32 %v2031, 0.01782293
        %v2036 = vmul.f32 %v2032, 0.01782293
        %v2037 = vmul.f32 %v2033, 0.01782293
        %v2038 = vadd.f32 %v1990, %v2034
        %v2039 = vadd.f32 %v1991, %v2035
        %v2040 = vadd.f32 %v1992, %v2036
        %v2041 = vadd.f32 %v1993, %v2037
        %v2042 = vld [vmem:[#allocation3 + $0x8] sm:$0xff]
        %v2043 = vld [vmem:[#allocation3 + $0x10] sm:$0xff]
        %v2044 = vld [vmem:[#allocation3 + $0x28] sm:$0xff]
        %v2045 = vld [vmem:[#allocation3 + $0x30] sm:$0xff]
        %v2046 = vmul.f32 %v2042, 0.003958638
        %v2047 = vmul.f32 %v2043, 0.003958638
        %v2048 = vmul.f32 %v2044, 0.003958638
        %v2049 = vmul.f32 %v2045, 0.003958638
        %v2050 = vadd.f32 %v2002, %v2046
        %v2051 = vadd.f32 %v2003, %v2047
        %v2052 = vadd.f32 %v2004, %v2048
        %v2053 = vadd.f32 %v2005, %v2049
        %v2054 = vld [vmem:[#allocation3 + $0x11] sm:$0xff]
        %v2055 = vld [vmem:[#allocation3 + $0x31] sm:$0xff]
        %v2056 = vmul.f32 %v2054, 0.003958638
        %v2057 = vmul.f32 %v2055, 0.003958638
        %v2058 = vadd.f32 %v2014, %v1963
        %v2059 = vadd.f32 %v2015, %v2056
        %v2060 = vadd.f32 %v2016, %v1965
        %v2061 = vadd.f32 %v2017, %v2057
        %v2062 = vld [vmem:[#allocation2 + $0x8] sm:$0xff]
        %v2063 = vld [vmem:[#allocation2 + $0x18] sm:$0xff]
        %v2064 = vld [vmem:[#allocation2 + $0x28] sm:$0xff]
        %v2065 = vld [vmem:[#allocation2 + $0x38] sm:$0x3]
        %v2066 = vld [vmem:[#allocation2 + $0x48] sm:$0xff]
        %v2067 = vld [vmem:[#allocation2 + $0x58] sm:$0xff]
        %v2068 = vld [vmem:[#allocation2 + $0x68] sm:$0xff]
        %v2069 = vld [vmem:[#allocation2 + $0x78] sm:$0x3]
        %2078 = vrot.lane.b32.xlu0 %v2062, 124
        %v2079 = vpop.permute.xlu0 %2078
        %2080 = vrot.lane.b32.xlu0 %v2063, 124
        %v2081 = vpop.permute.xlu0 %2080
        %2082 = vrot.lane.b32.xlu0 %v2064, 124
        %v2083 = vpop.permute.xlu0 %2082
        %2084 = vrot.lane.b32.xlu0 %v2065, 124
        %v2085 = vpop.permute.xlu0 %2084
        %2086 = vrot.lane.b32.xlu0 %v2066, 124
        %v2087 = vpop.permute.xlu0 %2086
        %2088 = vrot.lane.b32.xlu0 %v2067, 124
        %v2089 = vpop.permute.xlu0 %2088
        %2090 = vrot.lane.b32.xlu0 %v2068, 124
        %v2091 = vpop.permute.xlu0 %2090
        %2092 = vrot.lane.b32.xlu0 %v2069, 124
        %v2093 = vpop.permute.xlu0 %2092
        %2102 = vst.msk [vmem:[#allocation3] sm:$0xff] %vm209, %v2079
        %2103 = vst.msk [vmem:[#allocation3 + $0x8] sm:$0xff] %vm209, %v2081
        %2104 = vst.msk [vmem:[#allocation3 + $0x10] sm:$0xff] %vm209, %v2083
        %2105 = vst.msk [vmem:[#allocation3 + $0x18] sm:$0x3] %vm213, %v2085
        %2106 = vst.msk [vmem:[#allocation3 + $0x20] sm:$0xff] %vm209, %v2087
        %2107 = vst.msk [vmem:[#allocation3 + $0x28] sm:$0xff] %vm209, %v2089
        %2108 = vst.msk [vmem:[#allocation3 + $0x30] sm:$0xff] %vm209, %v2091
        %2109 = vst.msk [vmem:[#allocation3 + $0x38] sm:$0x3] %vm213, %v2093
        %v2110 = vld [vmem:[#allocation3 + $0x2] sm:$0xff]
        %v2111 = vld [vmem:[#allocation3 + $0xa] sm:$0xff]
        %v2112 = vld [vmem:[#allocation3 + $0x22] sm:$0xff]
        %v2113 = vld [vmem:[#allocation3 + $0x2a] sm:$0xff]
        %v2114 = vmul.f32 %v2110, 0.003958638
        %v2115 = vmul.f32 %v2111, 0.003958638
        %v2116 = vmul.f32 %v2112, 0.003958638
        %v2117 = vmul.f32 %v2113, 0.003958638
        %v2118 = vadd.f32 %v2026, %v2114
        %v2119 = vadd.f32 %v2027, %v2115
        %v2120 = vadd.f32 %v2028, %v2116
        %v2121 = vadd.f32 %v2029, %v2117
        %v2122 = vld [vmem:[#allocation3 + $0x3] sm:$0xff]
        %v2123 = vld [vmem:[#allocation3 + $0xb] sm:$0xff]
        %v2124 = vld [vmem:[#allocation3 + $0x23] sm:$0xff]
        %v2125 = vld [vmem:[#allocation3 + $0x2b] sm:$0xff]
        %v2126 = vmul.f32 %v2122, 0.003958638
        %v2127 = vmul.f32 %v2123, 0.003958638
        %v2128 = vmul.f32 %v2124, 0.003958638
        %v2129 = vmul.f32 %v2125, 0.003958638
        %v2130 = vadd.f32 %v2038, %v2126
        %v2131 = vadd.f32 %v2039, %v2127
        %v2132 = vadd.f32 %v2040, %v2128
        %v2133 = vadd.f32 %v2041, %v2129
        %v2134 = vld [vmem:[#allocation3 + $0x4] sm:$0xff]
        %v2135 = vld [vmem:[#allocation3 + $0xc] sm:$0xff]
        %v2136 = vld [vmem:[#allocation3 + $0x24] sm:$0xff]
        %v2137 = vld [vmem:[#allocation3 + $0x2c] sm:$0xff]
        %v2138 = vmul.f32 %v2134, 0.003958638
        %v2139 = vmul.f32 %v2135, 0.003958638
        %v2140 = vmul.f32 %v2136, 0.003958638
        %v2141 = vmul.f32 %v2137, 0.003958638
        %v2142 = vadd.f32 %v2050, %v2138
        %v2143 = vadd.f32 %v2051, %v2139
        %v2144 = vadd.f32 %v2052, %v2140
        %v2145 = vadd.f32 %v2053, %v2141
        %v2146 = vld [vmem:[#allocation3 + $0x5] sm:$0xff]
        %v2147 = vld [vmem:[#allocation3 + $0xd] sm:$0xff]
        %v2148 = vld [vmem:[#allocation3 + $0x25] sm:$0xff]
        %v2149 = vld [vmem:[#allocation3 + $0x2d] sm:$0xff]
        %v2150 = vmul.f32 %v2146, 0.01782293
        %v2151 = vmul.f32 %v2147, 0.01782293
        %v2152 = vmul.f32 %v2148, 0.01782293
        %v2153 = vmul.f32 %v2149, 0.01782293
        %v2154 = vadd.f32 %v2058, %v2150
        %v2155 = vadd.f32 %v2059, %v2151
        %v2156 = vadd.f32 %v2060, %v2152
        %v2157 = vadd.f32 %v2061, %v2153
        %v2158 = vld [vmem:[#allocation3 + $0x6] sm:$0xff]
        %v2159 = vld [vmem:[#allocation3 + $0xe] sm:$0xff]
        %v2160 = vld [vmem:[#allocation3 + $0x26] sm:$0xff]
        %v2161 = vld [vmem:[#allocation3 + $0x2e] sm:$0xff]
        %v2162 = vmul.f32 %v2158, 0.003958638
        %v2163 = vmul.f32 %v2159, 0.003958638
        %v2164 = vmul.f32 %v2160, 0.003958638
        %v2165 = vmul.f32 %v2161, 0.003958638
        %v2166 = vadd.f32 %v2118, %v2162
        %v2167 = vadd.f32 %v2119, %v2163
        %v2168 = vadd.f32 %v2120, %v2164
        %v2169 = vadd.f32 %v2121, %v2165
        %v2170 = vld [vmem:[#allocation3 + $0x7] sm:$0xff]
        %v2171 = vld [vmem:[#allocation3 + $0xf] sm:$0xff]
        %v2172 = vld [vmem:[#allocation3 + $0x27] sm:$0xff]
        %v2173 = vld [vmem:[#allocation3 + $0x2f] sm:$0xff]
        %v2174 = vmul.f32 %v2170, 0.003958638
        %v2175 = vmul.f32 %v2171, 0.003958638
        %v2176 = vmul.f32 %v2172, 0.003958638
        %v2177 = vmul.f32 %v2173, 0.003958638
        %v2178 = vadd.f32 %v2130, %v2174
        %v2179 = vadd.f32 %v2131, %v2175
        %v2180 = vadd.f32 %v2132, %v2176
        %v2181 = vadd.f32 %v2133, %v2177
        %v2182 = vld [vmem:[#allocation3 + $0x8] sm:$0xff]
        %v2183 = vld [vmem:[#allocation3 + $0x10] sm:$0xff]
        %v2184 = vld [vmem:[#allocation3 + $0x28] sm:$0xff]
        %v2185 = vld [vmem:[#allocation3 + $0x30] sm:$0xff]
        %v2186 = vmul.f32 %v2182, 0.003958638
        %v2187 = vmul.f32 %v2183, 0.003958638
        %v2188 = vmul.f32 %v2184, 0.003958638
        %v2189 = vmul.f32 %v2185, 0.003958638
        %v2190 = vadd.f32 %v2142, %v2186
        %v2191 = vadd.f32 %v2143, %v2187
        %v2192 = vadd.f32 %v2144, %v2188
        %v2193 = vadd.f32 %v2145, %v2189
        %v2194 = vld [vmem:[#allocation2 + $0x8] sm:$0xff]
        %v2195 = vld [vmem:[#allocation2 + $0x18] sm:$0xff]
        %v2196 = vld [vmem:[#allocation2 + $0x28] sm:$0xff]
        %v2197 = vld [vmem:[#allocation2 + $0x38] sm:$0x3]
        %v2198 = vld [vmem:[#allocation2 + $0x48] sm:$0xff]
        %v2199 = vld [vmem:[#allocation2 + $0x58] sm:$0xff]
        %v2200 = vld [vmem:[#allocation2 + $0x68] sm:$0xff]
        %v2201 = vld [vmem:[#allocation2 + $0x78] sm:$0x3]
        %2210 = vrot.lane.b32.xlu0 %v2194, 123
        %v2211 = vpop.permute.xlu0 %2210
        %2212 = vrot.lane.b32.xlu0 %v2195, 123
        %v2213 = vpop.permute.xlu0 %2212
        %2214 = vrot.lane.b32.xlu0 %v2196, 123
        %v2215 = vpop.permute.xlu0 %2214
        %2216 = vrot.lane.b32.xlu0 %v2197, 123
        %v2217 = vpop.permute.xlu0 %2216
        %2218 = vrot.lane.b32.xlu0 %v2198, 123
        %v2219 = vpop.permute.xlu0 %2218
        %2220 = vrot.lane.b32.xlu0 %v2199, 123
        %v2221 = vpop.permute.xlu0 %2220
        %2222 = vrot.lane.b32.xlu0 %v2200, 123
        %v2223 = vpop.permute.xlu0 %2222
        %2224 = vrot.lane.b32.xlu0 %v2201, 123
        %v2225 = vpop.permute.xlu0 %2224
        %2234 = vst.msk [vmem:[#allocation3] sm:$0xff] %vm209, %v2211
        %2235 = vst.msk [vmem:[#allocation3 + $0x8] sm:$0xff] %vm209, %v2213
        %2236 = vst.msk [vmem:[#allocation3 + $0x10] sm:$0xff] %vm209, %v2215
        %2237 = vst.msk [vmem:[#allocation3 + $0x18] sm:$0x3] %vm213, %v2217
        %2238 = vst.msk [vmem:[#allocation3 + $0x20] sm:$0xff] %vm209, %v2219
        %2239 = vst.msk [vmem:[#allocation3 + $0x28] sm:$0xff] %vm209, %v2221
        %2240 = vst.msk [vmem:[#allocation3 + $0x30] sm:$0xff] %vm209, %v2223
        %2241 = vst.msk [vmem:[#allocation3 + $0x38] sm:$0x3] %vm213, %v2225
        %v2242 = vld [vmem:[#allocation3 + $0x5] sm:$0xff]
        %v2243 = vld [vmem:[#allocation3 + $0xd] sm:$0xff]
        %v2244 = vld [vmem:[#allocation3 + $0x25] sm:$0xff]
        %v2245 = vld [vmem:[#allocation3 + $0x2d] sm:$0xff]
        %v2246 = vmul.f32 %v2242, 0.003958638
        %v2247 = vmul.f32 %v2243, 0.003958638
        %v2248 = vmul.f32 %v2244, 0.003958638
        %v2249 = vmul.f32 %v2245, 0.003958638
        %v2250 = vadd.f32 %v2154, %v2246
        %v2251 = vadd.f32 %v2155, %v2247
        %v2252 = vadd.f32 %v2156, %v2248
        %v2253 = vadd.f32 %v2157, %v2249
        %v2254 = vadd.f32 %v2250, %v2166
        %v2255 = vadd.f32 %v2251, %v2167
        %v2256 = vadd.f32 %v2252, %v2168
        %v2257 = vadd.f32 %v2253, %v2169
        %v2258 = vadd.f32 %v2254, %v2178
        %v2259 = vadd.f32 %v2255, %v2179
        %v2260 = vadd.f32 %v2256, %v2180
        %v2261 = vadd.f32 %v2257, %v2181
        %v2262 = vadd.f32 %v2258, %v2190
        %v2263 = vadd.f32 %v2259, %v2191
        %v2264 = vadd.f32 %v2260, %v2192
        %v2265 = vadd.f32 %v2261, %v2193
        %2266 = vst.msk [vmem:[%s137] sm:$0xff] %vm209, %v2262
        %2267 = vst.msk [vmem:[%s137 + $0x8] sm:$0xff] %vm209, %v2263
        %2268 = vst.msk [vmem:[%s137 + $0x10] sm:$0xff] %vm209, %v2264
        %2269 = vst.msk [vmem:[%s137 + $0x18] sm:$0xff] %vm209, %v2265
        %s2270 = sand.u32 %s52, 1
        %s2271 = scalar_lea.sflag [#allocation6], %s2270
        %s2272 = sand.u32 %s52, 1
        %s2273 = smul.addr %s2272, 32
        %s2274 = scalar_lea.vmem [#allocation7], %s2273
        // Predicated region
        $region29: #{tpu_custom_call.1} parent=23 // pred_check
          %p2275 = pneg %p62
        $region30: #{tpu_custom_call.1} parent=23 // pred_check_branch
          %2277 = sbr.rel (%p2275) target = $region32
        $region31: #{tpu_custom_call.1} parent=23 // pred_region
          %s2278 = smul.u32 2, %s18
          %2280 = vsyncadd %s2271, 0
          %s2281 = smul.addr %s2278, 2
          %s2282 = smul.addr %s2281, 8
          %s2283 = scalar_lea.hbm %s1, %s2282
          %s2284 = sshll.u32 %s2274, 4
          %s2285 = int_to_ptr.vmem [resolvable:$true] %s2284
          %s2286 = sshll.u32 %s2283, 4
          %s2287 = int_to_ptr.hbm [resolvable:$true] %s2286
          %2292 = dma.vmem_to_hbm [thread:$0]  %s2285, 512, %s2287, %s2271, 128, 128, 8
        $region32: #{tpu_custom_call.1} parent=23 // pred_fallthru
          _
      $region24: #{tpu_custom_call.1} parent=5 // pred_fallthru
        _
      %p2293 = scmp.le.s32.totalorder 2, %s13
      // Predicated region
      $region33: #{tpu_custom_call.1} parent=5 // pred_check
        %p2294 = pneg %p2293
      $region34: #{tpu_custom_call.1} parent=5 // pred_check_branch
        %2296 = sbr.rel (%p2294) target = $region36
      $region35: #{tpu_custom_call.1} parent=5 // pred_region
        %s2297 = ssub.s32 %s13, 2
        // Predicated region
        $region37: #{tpu_custom_call.1} parent=35 // pred_check
          %p2298 = pneg %p68
        $region38: #{tpu_custom_call.1} parent=35 // pred_check_branch
          %2300 = sbr.rel (%p2298) target = $region40
        $region39: #{tpu_custom_call.1} parent=35 // pred_region
          %s2301 = sand.u32 %s53, 1
          %s2302 = scalar_lea.sflag [#allocation6], %s2301
          %s2303 = sand.u32 %s53, 1
          %s2304 = smul.addr %s2303, 32
          %s2305 = scalar_lea.vmem [#allocation7], %s2304
          %2307 = dma.done %s2302, 512
        $region40: #{tpu_custom_call.1} parent=35 // pred_fallthru
          _
      $region36: #{tpu_custom_call.1} parent=5 // pred_fallthru
        _
    $region6: #{tpu_custom_call.1} parent=1 // loop_footer
      %s17 = sadd.s32 1, %s13
    $region7: #{tpu_custom_call.1} parent=1 // loop_footer_branch
      %12 = sbr.rel target = $region3
    $region8: #{tpu_custom_call.1} parent=1 // loop_exit
      _
    %2308 = vsyncpa [#allocation5], 1
    %s2309 = scalar_lea.sflag [#allocation5], 1
    %2310 = vsyncpa %s2309, 1
    %2311 = vsyncpa [#allocation6], 1
    %s2312 = scalar_lea.sflag [#allocation6], 1
    %2313 = vsyncpa %s2312, 1

</llo_original>
